<compile_context>
chip_gen: v7x
topology: tpu7x:2x2x1
jax: 0.10.0
libtpu: 0.0.40
codegen_flags: <defaults>
</compile_context>

<pallas_src>
import functools

import jax
import jax.numpy as jnp
import numpy as np
from jax.experimental import pallas as pl
from jax.experimental.pallas import tpu as pltpu


def _residual_stack_kernel(x_ref, w1_ref, w2_ref, out_ref, xpad_ref, *,
                           num_layers, matmul_dtype):
    """Fused ResidualStack forward for NB images.

    x_ref   : (NB, H, W, C)        input images (NHWC)
    w1_ref  : (L, 9*C, Crh)        im2col 3x3 conv weights, (dy, dx, c) order
    w2_ref  : (L, Crh, C)          1x1 conv weights
    out_ref : (NB, H, W, C)        output
    xpad_ref: (NB, H+2, W+2, C)    f32 VMEM scratch, zero-padded activation
    """
    NB, H, W, C = x_ref.shape
    Crh = w1_ref.shape[-1]

    if num_layers == 0:
        out_ref[...] = jnp.maximum(x_ref[...], 0.0).astype(out_ref.dtype)
        return

    # Zero only the 1-pixel border of the padded slab (the interior is always
    # overwritten below); far cheaper than clearing the whole slab and safe
    # under megacore sharding since it runs every grid step.
    zrow = jnp.zeros((NB, 1, W + 2, C), xpad_ref.dtype)
    xpad_ref[:, pl.ds(0, 1), :, :] = zrow
    xpad_ref[:, pl.ds(H + 1, 1), :, :] = zrow
    zcol = jnp.zeros((NB, H + 2, 1, C), xpad_ref.dtype)
    xpad_ref[:, :, pl.ds(0, 1), :] = zcol
    xpad_ref[:, :, pl.ds(W + 1, 1), :] = zcol

    # Interior = input activation, kept in f32 working precision.
    xpad_ref[:, pl.ds(1, H), pl.ds(1, W), :] = x_ref[...].astype(xpad_ref.dtype)

    M = NB * H * W
    for l in range(num_layers):
        # Pre-conv ReLU hoisted: computed ONCE per layer on the padded slab.
        # (ReLU(0) == 0, so the zero border stays exact.)
        relu_pad = jnp.maximum(xpad_ref[...], 0.0)            # (NB, H+2, W+2, C)

        # im2col patch: 3 dx-shifted (sublane) windows concatenated along the
        # channel axis, then 3 cheap dy (major-axis) row slices concatenated
        # again -> channel order is (dy, dx, c), matching w1_ref's layout.
        shifted = jnp.concatenate(
            [relu_pad[:, :, dx:dx + W, :] for dx in range(3)],
            axis=-1)                                          # (NB, H+2, W, 3C)
        patch = jnp.concatenate(
            [shifted[:, dy:dy + H] for dy in range(3)],
            axis=-1)                                          # (NB, H, W, 9C)
        patch = patch.reshape(M, 9 * C)
        if matmul_dtype is not None:
            patch = patch.astype(matmul_dtype)

        # 3x3 conv as ONE MXU matmul, f32 accumulation inside the MXU.
        h = jnp.dot(patch, w1_ref[l], preferred_element_type=jnp.float32)
        h = jnp.maximum(h, 0.0)                               # ReLU after 3x3 conv
        if matmul_dtype is not None:
            h = h.astype(matmul_dtype)
        y = jnp.dot(h, w2_ref[l], preferred_element_type=jnp.float32)  # 1x1 conv

        # Residual add against the un-ReLU'd interior of the scratch.
        x_in = xpad_ref[:, pl.ds(1, H), pl.ds(1, W), :]       # (NB, H, W, C)
        new = x_in.astype(jnp.float32) + y.reshape(NB, H, W, C)

        if l + 1 < num_layers:
            # Feed the next layer: write the interior back into the slab.
            xpad_ref[:, pl.ds(1, H), pl.ds(1, W), :] = new.astype(xpad_ref.dtype)
        else:
            # Final stack ReLU fused here -> no extra HBM round trip.
            out_ref[...] = jnp.maximum(new, 0.0).astype(out_ref.dtype)


def _per_image_vmem_bytes(H, W, C, Crh, x_bytes=4):
    """Rough per-image VMEM footprint (slab + compiler temporaries + I/O)."""
    pad = (H + 2) * (W + 2) * C * 4                  # f32 padded slab
    temps = (H + 2) * (W + 2) * C * 4 * 16           # relu/shifted/patch/new etc.
    h_tmp = H * W * Crh * 4                          # post-3x3 intermediate
    io = 2 * 2 * H * W * C * x_bytes                 # double-buffered in+out blocks
    return pad + temps + h_tmp + io


def _pick_nb(N, H, W, C, Crh, budget_bytes=24 * 1024 * 1024):
    """Largest divisor of N whose per-step footprint fits the VMEM budget."""
    per = _per_image_vmem_bytes(H, W, C, Crh)
    best = 1
    for d in range(1, N + 1):
        if N % d == 0 and d * per <= budget_bytes:
            best = d
    return best


def residual_stack_forward(x_nchw, w1_stack, w2_stack, *, matmul_dtype=None,
                           nb=None):
    """ResidualStack forward.

    x_nchw  : (N, C, H, W)
    w1_stack: (L, 3, 3, Cin, Crh)   HWIO 3x3 conv weights per layer
    w2_stack: (L, Crh, Cout)        1x1 conv weights per layer (Cout == Cin)
    matmul_dtype: e.g. jnp.bfloat16 on v6e/v7x for MXU throughput (f32 acc and
                  f32 activations/residual regardless).
    nb      : images folded into one grid step (auto-picked if None).
    """
    N, C, H, W = x_nchw.shape
    L = w1_stack.shape[0]
    Cin, Crh = w1_stack.shape[3], w1_stack.shape[4]
    assert Cin == C and w2_stack.shape == (L, Crh, C), \
        "residual add needs Cin == Cout"

    x = jnp.transpose(x_nchw, (0, 2, 3, 1))            # NCHW -> NHWC
    w1 = w1_stack.reshape(L, 9 * Cin, Crh)             # im2col (dy, dx, c) order
    w2 = w2_stack
    if matmul_dtype is not None:
        w1 = w1.astype(matmul_dtype)
        w2 = w2.astype(matmul_dtype)

    if nb is None:
        nb = _pick_nb(N, H, W, C, Crh)
    assert N % nb == 0, "nb must divide the batch size"

    per_img = _per_image_vmem_bytes(H, W, C, Crh)
    weight_bytes = (L * 9 * C * Crh + L * Crh * C) * (
        2 if matmul_dtype == jnp.bfloat16 else 4)
    vmem_limit = int(min(64 * 1024 * 1024,
                         max(32 * 1024 * 1024,
                             2 * (nb * per_img + 2 * weight_bytes))))

    kernel = functools.partial(_residual_stack_kernel,
                               num_layers=L, matmul_dtype=matmul_dtype)

    out = pl.pallas_call(
        kernel,
        out_shape=jax.ShapeDtypeStruct((N, H, W, C), x.dtype),
        grid=(N // nb,),
        in_specs=[
            # NB images per grid step, pipelined.
            pl.BlockSpec((nb, H, W, C), lambda n: (n, 0, 0, 0)),
            # Weights: constant index_map -> fetched once, resident in VMEM.
            pl.BlockSpec((L, 9 * Cin, Crh), lambda n: (0, 0, 0)),
            pl.BlockSpec((L, Crh, C), lambda n: (0, 0, 0)),
        ],
        out_specs=pl.BlockSpec((nb, H, W, C), lambda n: (n, 0, 0, 0)),
        scratch_shapes=[pltpu.VMEM((nb, H + 2, W + 2, C), jnp.float32)],
        compiler_params=pltpu.CompilerParams(
            dimension_semantics=("parallel",),          # megacore sharding
            vmem_limit_bytes=vmem_limit),
    )(x, w1, w2)

    return jnp.transpose(out, (0, 3, 1, 2))             # NHWC -> NCHW


def reference_forward(x_nchw, w1_stack, w2_stack):
    """Plain-JAX reference (matches PyTorch ResidualStack.forward)."""
    x = x_nchw
    dn = jax.lax.conv_dimension_numbers(x.shape, (1, 1, 3, 3),
                                        ("NCHW", "OIHW", "NCHW"))
    L = w1_stack.shape[0]
    for l in range(L):
        w1_oihw = jnp.transpose(w1_stack[l], (3, 2, 0, 1))
        w2_oihw = jnp.transpose(w2_stack[l], (1, 0))[:, :, None, None]
        h = jnp.maximum(x, 0.0)
        h = jax.lax.conv_general_dilated(h, w1_oihw, (1, 1), ((1, 1), (1, 1)),
                                         dimension_numbers=dn)
        h = jnp.maximum(h, 0.0)
        h = jax.lax.conv_general_dilated(h, w2_oihw, (1, 1), "VALID",
                                         dimension_numbers=dn)
        x = x + h
    return jnp.maximum(x, 0.0)


def init_params(key, in_channels, num_hiddens, num_residual_layers,
                num_residual_hiddens):
    assert in_channels == num_hiddens, "residual add requires Cin == num_hiddens"
    k1, k2 = jax.random.split(key)
    w1 = jax.random.normal(
        k1, (num_residual_layers, 3, 3, in_channels, num_residual_hiddens),
        jnp.float32) / np.sqrt(in_channels * 9)
    w2 = jax.random.normal(
        k2, (num_residual_layers, num_residual_hiddens, num_hiddens),
        jnp.float32) / np.sqrt(num_residual_hiddens)
    return w1, w2


if __name__ == "__main__":
    # Small shapes: batch=2, in_channels=num_hiddens=4, spatial=16x16,
    # 2 residual layers, 8 residual hiddens.
    N, C, H, W = 2, 4, 16, 16
    num_hiddens = 4
    num_residual_layers = 2
    num_residual_hiddens = 8

    key = jax.random.PRNGKey(0)
    kx, kp = jax.random.split(key)
    x = jax.random.normal(kx, (N, C, H, W), jnp.float32)
    w1_stack, w2_stack = init_params(kp, C, num_hiddens, num_residual_layers,
                                     num_residual_hiddens)

    fwd = jax.jit(residual_stack_forward)
    out = jax.block_until_ready(fwd(x, w1_stack, w2_stack))

    ref = jax.block_until_ready(reference_forward(x, w1_stack, w2_stack))
    assert out.shape == (N, num_hiddens, H, W)
    np.testing.assert_allclose(np.asarray(out), np.asarray(ref),
                               rtol=1e-4, atol=1e-4)
    print("KERNEL_OK")
</pallas_src>

<mosaic_0001>
module attributes {stable_mosaic.version = 11 : i64} {
  func.func @_residual_stack_kernel(%arg0: i32, %arg1: memref<2x16x16x4xf32, #tpu.memory_space<vmem>>, %arg2: memref<2x36x8xf32, #tpu.memory_space<vmem>>, %arg3: memref<2x8x4xf32, #tpu.memory_space<vmem>>, %arg4: memref<2x16x16x4xf32, #tpu.memory_space<vmem>>, %arg5: memref<2x18x18x4xf32, #tpu.memory_space<vmem>>) attributes {dimension_semantics = [#tpu.dimension_semantics<parallel>], iteration_bounds = array<i64: 1>, scalar_prefetch = 0 : i64, scratch_operands = 1 : i64, tpu.core_type = #tpu.core_type<tc>, window_params = [{transform_indices = @transform_0, window_bounds = array<i64: 2, 16, 16, 4>}, {pipeline_mode = #tpu.pipeline_mode<synchronous>, transform_indices = @transform_1, window_bounds = array<i64: 2, 36, 8>}, {pipeline_mode = #tpu.pipeline_mode<synchronous>, transform_indices = @transform_2, window_bounds = array<i64: 2, 8, 4>}, {transform_indices = @transform_3, window_bounds = array<i64: 2, 16, 16, 4>}]} {
    %cst = arith.constant 0.000000e+00 : f32
    %0 = vector.broadcast %cst : f32 to vector<2x1x18x4xf32>
    %c0 = arith.constant 0 : index
    %c0_0 = arith.constant 0 : index
    %c0_1 = arith.constant 0 : index
    %c0_2 = arith.constant 0 : index
    %1 = vector.load %arg5[%c0, %c0_0, %c0_1, %c0_2] : memref<2x18x18x4xf32, #tpu.memory_space<vmem>>, vector<2x1x18x4xf32>
    tpu.vector_store %arg5[%c0, %c0_0, %c0_1, %c0_2], %0 {strides = array<i32>} : memref<2x18x18x4xf32, #tpu.memory_space<vmem>>, vector<2x1x18x4xf32>,
    %c0_3 = arith.constant 0 : index
    %c17 = arith.constant 17 : index
    %c0_4 = arith.constant 0 : index
    %c0_5 = arith.constant 0 : index
    %2 = vector.load %arg5[%c0_3, %c17, %c0_4, %c0_5] : memref<2x18x18x4xf32, #tpu.memory_space<vmem>>, vector<2x1x18x4xf32>
    tpu.vector_store %arg5[%c0_3, %c17, %c0_4, %c0_5], %0 {strides = array<i32>} : memref<2x18x18x4xf32, #tpu.memory_space<vmem>>, vector<2x1x18x4xf32>,
    %cst_6 = arith.constant 0.000000e+00 : f32
    %3 = vector.broadcast %cst_6 : f32 to vector<2x18x1x4xf32>
    %c0_7 = arith.constant 0 : index
    %c0_8 = arith.constant 0 : index
    %c0_9 = arith.constant 0 : index
    %c0_10 = arith.constant 0 : index
    %4 = vector.load %arg5[%c0_7, %c0_8, %c0_9, %c0_10] : memref<2x18x18x4xf32, #tpu.memory_space<vmem>>, vector<2x18x1x4xf32>
    tpu.vector_store %arg5[%c0_7, %c0_8, %c0_9, %c0_10], %3 {strides = array<i32>} : memref<2x18x18x4xf32, #tpu.memory_space<vmem>>, vector<2x18x1x4xf32>,
    %c0_11 = arith.constant 0 : index
    %c0_12 = arith.constant 0 : index
    %c17_13 = arith.constant 17 : index
    %c0_14 = arith.constant 0 : index
    %5 = vector.load %arg5[%c0_11, %c0_12, %c17_13, %c0_14] : memref<2x18x18x4xf32, #tpu.memory_space<vmem>>, vector<2x18x1x4xf32>
    tpu.vector_store %arg5[%c0_11, %c0_12, %c17_13, %c0_14], %3 {strides = array<i32>} : memref<2x18x18x4xf32, #tpu.memory_space<vmem>>, vector<2x18x1x4xf32>,
    %c0_15 = arith.constant 0 : index
    %c0_16 = arith.constant 0 : index
    %c0_17 = arith.constant 0 : index
    %c0_18 = arith.constant 0 : index
    %6 = vector.load %arg1[%c0_15, %c0_16, %c0_17, %c0_18] : memref<2x16x16x4xf32, #tpu.memory_space<vmem>>, vector<2x16x16x4xf32>
    %c0_19 = arith.constant 0 : index
    %c1 = arith.constant 1 : index
    %c1_20 = arith.constant 1 : index
    %c0_21 = arith.constant 0 : index
    %7 = vector.load %arg5[%c0_19, %c1, %c1_20, %c0_21] : memref<2x18x18x4xf32, #tpu.memory_space<vmem>>, vector<2x16x16x4xf32>
    tpu.vector_store %arg5[%c0_19, %c1, %c1_20, %c0_21], %6 {strides = array<i32>} : memref<2x18x18x4xf32, #tpu.memory_space<vmem>>, vector<2x16x16x4xf32>,
    %c0_22 = arith.constant 0 : index
    %c0_23 = arith.constant 0 : index
    %c0_24 = arith.constant 0 : index
    %c0_25 = arith.constant 0 : index
    %8 = vector.load %arg5[%c0_22, %c0_23, %c0_24, %c0_25] : memref<2x18x18x4xf32, #tpu.memory_space<vmem>>, vector<2x18x18x4xf32>
    %cst_26 = arith.constant 0.000000e+00 : f32
    %9 = vector.broadcast %cst_26 : f32 to vector<2x18x18x4xf32>
    %10 = arith.maximumf %8, %9 : vector<2x18x18x4xf32>
    %11 = vector.extract_strided_slice %10 {offsets = [0, 0, 0, 0], sizes = [2, 18, 16, 4], strides = [1, 1, 1, 1]} : vector<2x18x18x4xf32> to vector<2x18x16x4xf32>
    %12 = vector.extract_strided_slice %10 {offsets = [0, 0, 1, 0], sizes = [2, 18, 16, 4], strides = [1, 1, 1, 1]} : vector<2x18x18x4xf32> to vector<2x18x16x4xf32>
    %13 = vector.extract_strided_slice %10 {offsets = [0, 0, 2, 0], sizes = [2, 18, 16, 4], strides = [1, 1, 1, 1]} : vector<2x18x18x4xf32> to vector<2x18x16x4xf32>
    %14 = tpu.concatenate %11, %12, %13 in 3 : vector<2x18x16x4xf32>, vector<2x18x16x4xf32>, vector<2x18x16x4xf32> -> vector<2x18x16x12xf32>
    %15 = vector.extract_strided_slice %14 {offsets = [0, 0, 0, 0], sizes = [2, 16, 16, 12], strides = [1, 1, 1, 1]} : vector<2x18x16x12xf32> to vector<2x16x16x12xf32>
    %16 = vector.extract_strided_slice %14 {offsets = [0, 1, 0, 0], sizes = [2, 16, 16, 12], strides = [1, 1, 1, 1]} : vector<2x18x16x12xf32> to vector<2x16x16x12xf32>
    %17 = vector.extract_strided_slice %14 {offsets = [0, 2, 0, 0], sizes = [2, 16, 16, 12], strides = [1, 1, 1, 1]} : vector<2x18x16x12xf32> to vector<2x16x16x12xf32>
    %18 = tpu.concatenate %15, %16, %17 in 3 : vector<2x16x16x12xf32>, vector<2x16x16x12xf32>, vector<2x16x16x12xf32> -> vector<2x16x16x36xf32>
    %19 = vector.shape_cast %18 : vector<2x16x16x36xf32> to vector<512x36xf32>
    %c0_27 = arith.constant 0 : index
    %c0_28 = arith.constant 0 : index
    %c0_29 = arith.constant 0 : index
    %20 = vector.load %arg2[%c0_27, %c0_28, %c0_29] : memref<2x36x8xf32, #tpu.memory_space<vmem>>, vector<1x36x8xf32>
    %21 = vector.shape_cast %20 : vector<1x36x8xf32> to vector<36x8xf32>
    %cst_30 = arith.constant dense<0.000000e+00> : vector<512x8xf32>
    %22 = tpu.matmul %19, %21, %cst_30 {dimension_numbers = #tpu.dot_dimension_numbers<[1], [0], [0], [1], [0, 0, 1, 1], [], []>} : vector<512x36xf32>, vector<36x8xf32>, vector<512x8xf32> -> vector<512x8xf32>
    %cst_31 = arith.constant 0.000000e+00 : f32
    %23 = vector.broadcast %cst_31 : f32 to vector<512x8xf32>
    %24 = arith.maximumf %22, %23 : vector<512x8xf32>
    %c0_32 = arith.constant 0 : index
    %c0_33 = arith.constant 0 : index
    %c0_34 = arith.constant 0 : index
    %25 = vector.load %arg3[%c0_32, %c0_33, %c0_34] : memref<2x8x4xf32, #tpu.memory_space<vmem>>, vector<1x8x4xf32>
    %26 = vector.shape_cast %25 : vector<1x8x4xf32> to vector<8x4xf32>
    %cst_35 = arith.constant dense<0.000000e+00> : vector<512x4xf32>
    %27 = tpu.matmul %24, %26, %cst_35 {dimension_numbers = #tpu.dot_dimension_numbers<[1], [0], [0], [1], [0, 0, 1, 1], [], []>} : vector<512x8xf32>, vector<8x4xf32>, vector<512x4xf32> -> vector<512x4xf32>
    %c0_36 = arith.constant 0 : index
    %c1_37 = arith.constant 1 : index
    %c1_38 = arith.constant 1 : index
    %c0_39 = arith.constant 0 : index
    %28 = vector.load %arg5[%c0_36, %c1_37, %c1_38, %c0_39] : memref<2x18x18x4xf32, #tpu.memory_space<vmem>>, vector<2x16x16x4xf32>
    %29 = vector.shape_cast %27 : vector<512x4xf32> to vector<2x16x16x4xf32>
    %30 = arith.addf %28, %29 : vector<2x16x16x4xf32>
    %c0_40 = arith.constant 0 : index
    %c1_41 = arith.constant 1 : index
    %c1_42 = arith.constant 1 : index
    %c0_43 = arith.constant 0 : index
    %31 = vector.load %arg5[%c0_40, %c1_41, %c1_42, %c0_43] : memref<2x18x18x4xf32, #tpu.memory_space<vmem>>, vector<2x16x16x4xf32>
    tpu.vector_store %arg5[%c0_40, %c1_41, %c1_42, %c0_43], %30 {strides = array<i32>} : memref<2x18x18x4xf32, #tpu.memory_space<vmem>>, vector<2x16x16x4xf32>,
    %c0_44 = arith.constant 0 : index
    %c0_45 = arith.constant 0 : index
    %c0_46 = arith.constant 0 : index
    %c0_47 = arith.constant 0 : index
    %32 = vector.load %arg5[%c0_44, %c0_45, %c0_46, %c0_47] : memref<2x18x18x4xf32, #tpu.memory_space<vmem>>, vector<2x18x18x4xf32>
    %cst_48 = arith.constant 0.000000e+00 : f32
    %33 = vector.broadcast %cst_48 : f32 to vector<2x18x18x4xf32>
    %34 = arith.maximumf %32, %33 : vector<2x18x18x4xf32>
    %35 = vector.extract_strided_slice %34 {offsets = [0, 0, 0, 0], sizes = [2, 18, 16, 4], strides = [1, 1, 1, 1]} : vector<2x18x18x4xf32> to vector<2x18x16x4xf32>
    %36 = vector.extract_strided_slice %34 {offsets = [0, 0, 1, 0], sizes = [2, 18, 16, 4], strides = [1, 1, 1, 1]} : vector<2x18x18x4xf32> to vector<2x18x16x4xf32>
    %37 = vector.extract_strided_slice %34 {offsets = [0, 0, 2, 0], sizes = [2, 18, 16, 4], strides = [1, 1, 1, 1]} : vector<2x18x18x4xf32> to vector<2x18x16x4xf32>
    %38 = tpu.concatenate %35, %36, %37 in 3 : vector<2x18x16x4xf32>, vector<2x18x16x4xf32>, vector<2x18x16x4xf32> -> vector<2x18x16x12xf32>
    %39 = vector.extract_strided_slice %38 {offsets = [0, 0, 0, 0], sizes = [2, 16, 16, 12], strides = [1, 1, 1, 1]} : vector<2x18x16x12xf32> to vector<2x16x16x12xf32>
    %40 = vector.extract_strided_slice %38 {offsets = [0, 1, 0, 0], sizes = [2, 16, 16, 12], strides = [1, 1, 1, 1]} : vector<2x18x16x12xf32> to vector<2x16x16x12xf32>
    %41 = vector.extract_strided_slice %38 {offsets = [0, 2, 0, 0], sizes = [2, 16, 16, 12], strides = [1, 1, 1, 1]} : vector<2x18x16x12xf32> to vector<2x16x16x12xf32>
    %42 = tpu.concatenate %39, %40, %41 in 3 : vector<2x16x16x12xf32>, vector<2x16x16x12xf32>, vector<2x16x16x12xf32> -> vector<2x16x16x36xf32>
    %43 = vector.shape_cast %42 : vector<2x16x16x36xf32> to vector<512x36xf32>
    %c1_49 = arith.constant 1 : index
    %c0_50 = arith.constant 0 : index
    %c0_51 = arith.constant 0 : index
    %44 = vector.load %arg2[%c1_49, %c0_50, %c0_51] : memref<2x36x8xf32, #tpu.memory_space<vmem>>, vector<1x36x8xf32>
    %45 = vector.shape_cast %44 : vector<1x36x8xf32> to vector<36x8xf32>
    %cst_52 = arith.constant dense<0.000000e+00> : vector<512x8xf32>
    %46 = tpu.matmul %43, %45, %cst_52 {dimension_numbers = #tpu.dot_dimension_numbers<[1], [0], [0], [1], [0, 0, 1, 1], [], []>} : vector<512x36xf32>, vector<36x8xf32>, vector<512x8xf32> -> vector<512x8xf32>
    %cst_53 = arith.constant 0.000000e+00 : f32
    %47 = vector.broadcast %cst_53 : f32 to vector<512x8xf32>
    %48 = arith.maximumf %46, %47 : vector<512x8xf32>
    %c1_54 = arith.constant 1 : index
    %c0_55 = arith.constant 0 : index
    %c0_56 = arith.constant 0 : index
    %49 = vector.load %arg3[%c1_54, %c0_55, %c0_56] : memref<2x8x4xf32, #tpu.memory_space<vmem>>, vector<1x8x4xf32>
    %50 = vector.shape_cast %49 : vector<1x8x4xf32> to vector<8x4xf32>
    %cst_57 = arith.constant dense<0.000000e+00> : vector<512x4xf32>
    %51 = tpu.matmul %48, %50, %cst_57 {dimension_numbers = #tpu.dot_dimension_numbers<[1], [0], [0], [1], [0, 0, 1, 1], [], []>} : vector<512x8xf32>, vector<8x4xf32>, vector<512x4xf32> -> vector<512x4xf32>
    %c0_58 = arith.constant 0 : index
    %c1_59 = arith.constant 1 : index
    %c1_60 = arith.constant 1 : index
    %c0_61 = arith.constant 0 : index
    %52 = vector.load %arg5[%c0_58, %c1_59, %c1_60, %c0_61] : memref<2x18x18x4xf32, #tpu.memory_space<vmem>>, vector<2x16x16x4xf32>
    %53 = vector.shape_cast %51 : vector<512x4xf32> to vector<2x16x16x4xf32>
    %54 = arith.addf %52, %53 : vector<2x16x16x4xf32>
    %cst_62 = arith.constant 0.000000e+00 : f32
    %55 = vector.broadcast %cst_62 : f32 to vector<2x16x16x4xf32>
    %56 = arith.maximumf %54, %55 : vector<2x16x16x4xf32>
    %c0_63 = arith.constant 0 : index
    %c0_64 = arith.constant 0 : index
    %c0_65 = arith.constant 0 : index
    %c0_66 = arith.constant 0 : index
    %57 = vector.load %arg4[%c0_63, %c0_64, %c0_65, %c0_66] : memref<2x16x16x4xf32, #tpu.memory_space<vmem>>, vector<2x16x16x4xf32>
    tpu.vector_store %arg4[%c0_63, %c0_64, %c0_65, %c0_66], %56 {strides = array<i32>} : memref<2x16x16x4xf32, #tpu.memory_space<vmem>>, vector<2x16x16x4xf32>,
    return
  }
  func.func @transform_0(%arg0: i32) -> (i32, i32, i32, i32) {
    %c0_i32 = arith.constant 0 : i32
    %c0_i32_0 = arith.constant 0 : i32
    %c0_i32_1 = arith.constant 0 : i32
    %c0_i32_2 = arith.constant 0 : i32
    return %arg0, %c0_i32, %c0_i32_0, %c0_i32_1 : i32, i32, i32, i32
  }
  func.func @transform_1(%arg0: i32) -> (i32, i32, i32) {
    %c0_i32 = arith.constant 0 : i32
    %c0_i32_0 = arith.constant 0 : i32
    %c0_i32_1 = arith.constant 0 : i32
    %c0_i32_2 = arith.constant 0 : i32
    return %c0_i32, %c0_i32_0, %c0_i32_1 : i32, i32, i32
  }
  func.func @transform_2(%arg0: i32) -> (i32, i32, i32) {
    %c0_i32 = arith.constant 0 : i32
    %c0_i32_0 = arith.constant 0 : i32
    %c0_i32_1 = arith.constant 0 : i32
    %c0_i32_2 = arith.constant 0 : i32
    return %c0_i32, %c0_i32_0, %c0_i32_1 : i32, i32, i32
  }
  func.func @transform_3(%arg0: i32) -> (i32, i32, i32, i32) {
    %c0_i32 = arith.constant 0 : i32
    %c0_i32_0 = arith.constant 0 : i32
    %c0_i32_1 = arith.constant 0 : i32
    %c0_i32_2 = arith.constant 0 : i32
    return %arg0, %c0_i32, %c0_i32_0, %c0_i32_1 : i32, i32, i32, i32
  }
}

</mosaic_0001>

<llo_original>
// kernel: residual_stack_forward.1
$region0: #{residual_stack_forward.1}
  #allocation0 [shape = 'u32[]', space=smem, size = 0x4, offset = 0x4, fixed_abs, tag = 'smem constant byte address 0x4 - core index']
  #allocation1 [shape = 'u32[144,128]{1,0:T(1,128)}', space=vmem, size = 0x12000, scoped, tag = 'internal scratch']
  #allocation2 [shape = 'f32[2,18,18,4]{3,2,1,0:T(8,128)}', space=vmem, size = 0x6c000, scoped, tag = 'scratch operand']
  %s0 = inlined_call_operand.vmem [shape: f32[2,16,16,4], index: 0, kind: input, shape index: {}]
  %s1 = inlined_call_operand.vmem [shape: f32[2,36,8], index: 1, kind: input, shape index: {}]
  %s2 = inlined_call_operand.vmem [shape: f32[2,8,4], index: 2, kind: input, shape index: {}]
  %s3 = inlined_call_operand.vmem [shape: f32[2,16,16,4], index: 3, kind: output, shape index: {}]
  %s4 = sld [smem:[#allocation0]]
  $region22: #{residual_stack_forward.1} parent=0
    _
  %s6 = ssub.s32 1, %s4
  %s7 = scalar_select 0, %s6, %s4
  // Predicated region
  $region2: #{residual_stack_forward.1} parent=0 // pred_check
    _
  $region3: #{residual_stack_forward.1} parent=0 // pred_check_branch
    %9 = sbr.rel (0) target = $region5
  $region4: #{residual_stack_forward.1} parent=0 // pred_region
    _
  $region5: #{residual_stack_forward.1} parent=0 // pred_fallthru
    _
  // Predicated region
  $region6: #{residual_stack_forward.1} parent=0 // pred_check
    _
  $region7: #{residual_stack_forward.1} parent=0 // pred_check_branch
    %11 = sbr.rel (0) target = $region9
  $region8: #{residual_stack_forward.1} parent=0 // pred_region
    _
  $region9: #{residual_stack_forward.1} parent=0 // pred_fallthru
    _
  // Predicated region
  $region10: #{residual_stack_forward.1} parent=0 // pred_check
    _
  $region11: #{residual_stack_forward.1} parent=0 // pred_check_branch
    %13 = sbr.rel (0) target = $region13
  $region12: #{residual_stack_forward.1} parent=0 // pred_region
    _
  $region13: #{residual_stack_forward.1} parent=0 // pred_fallthru
    _
  %vm14 = vcmask 31744
  %15 = vst.msk [vmem:[#allocation2] sm:$0xff] %vm14, 0.0
  %16 = vst.msk [vmem:[#allocation2 + $0x8] sm:$0xff] %vm14, 0.0
  %vm17 = vcmask 25600
  %18 = vst.msk [vmem:[#allocation2 + $0x10] sm:$0x3] %vm17, 0.0
  %19 = vst.msk [vmem:[#allocation2 + $0x1b0] sm:$0xff] %vm14, 0.0
  %20 = vst.msk [vmem:[#allocation2 + $0x1b8] sm:$0xff] %vm14, 0.0
  %21 = vst.msk [vmem:[#allocation2 + $0x1c0] sm:$0x3] %vm17, 0.0
  %s22 = scalar_lea.vmem [#allocation2], 408
  %23 = vst.msk [vmem:[%s22] sm:$0xff] %vm14, 0.0
  %24 = vst.msk [vmem:[%s22 + $0x8] sm:$0xff] %vm14, 0.0
  %25 = vst.msk [vmem:[%s22 + $0x10] sm:$0x3] %vm17, 0.0
  %26 = vst.msk [vmem:[%s22 + $0x1b0] sm:$0xff] %vm14, 0.0
  %27 = vst.msk [vmem:[%s22 + $0x1b8] sm:$0xff] %vm14, 0.0
  %28 = vst.msk [vmem:[%s22 + $0x1c0] sm:$0x3] %vm17, 0.0
  %vm29 = vcmask 24576
  %30 = vst.msk [vmem:[#allocation2] sm:$0x1] %vm29, 0.0
  %31 = vst.msk [vmem:[#allocation2 + $0x18] sm:$0x1] %vm29, 0.0
  %32 = vst.msk [vmem:[#allocation2 + $0x30] sm:$0x1] %vm29, 0.0
  %33 = vst.msk [vmem:[#allocation2 + $0x48] sm:$0x1] %vm29, 0.0
  %34 = vst.msk [vmem:[#allocation2 + $0x60] sm:$0x1] %vm29, 0.0
  %35 = vst.msk [vmem:[#allocation2 + $0x78] sm:$0x1] %vm29, 0.0
  %36 = vst.msk [vmem:[#allocation2 + $0x90] sm:$0x1] %vm29, 0.0
  %37 = vst.msk [vmem:[#allocation2 + $0xa8] sm:$0x1] %vm29, 0.0
  %38 = vst.msk [vmem:[#allocation2 + $0xc0] sm:$0x1] %vm29, 0.0
  %39 = vst.msk [vmem:[#allocation2 + $0xd8] sm:$0x1] %vm29, 0.0
  %40 = vst.msk [vmem:[#allocation2 + $0xf0] sm:$0x1] %vm29, 0.0
  %41 = vst.msk [vmem:[#allocation2 + $0x108] sm:$0x1] %vm29, 0.0
  %42 = vst.msk [vmem:[#allocation2 + $0x120] sm:$0x1] %vm29, 0.0
  %43 = vst.msk [vmem:[#allocation2 + $0x138] sm:$0x1] %vm29, 0.0
  %44 = vst.msk [vmem:[#allocation2 + $0x150] sm:$0x1] %vm29, 0.0
  %45 = vst.msk [vmem:[#allocation2 + $0x168] sm:$0x1] %vm29, 0.0
  %46 = vst.msk [vmem:[#allocation2 + $0x180] sm:$0x1] %vm29, 0.0
  %47 = vst.msk [vmem:[#allocation2 + $0x198] sm:$0x1] %vm29, 0.0
  %48 = vst.msk [vmem:[#allocation2 + $0x1b0] sm:$0x1] %vm29, 0.0
  %49 = vst.msk [vmem:[#allocation2 + $0x1c8] sm:$0x1] %vm29, 0.0
  %50 = vst.msk [vmem:[#allocation2 + $0x1e0] sm:$0x1] %vm29, 0.0
  %51 = vst.msk [vmem:[#allocation2 + $0x1f8] sm:$0x1] %vm29, 0.0
  %52 = vst.msk [vmem:[#allocation2 + $0x210] sm:$0x1] %vm29, 0.0
  %53 = vst.msk [vmem:[#allocation2 + $0x228] sm:$0x1] %vm29, 0.0
  %54 = vst.msk [vmem:[#allocation2 + $0x240] sm:$0x1] %vm29, 0.0
  %55 = vst.msk [vmem:[#allocation2 + $0x258] sm:$0x1] %vm29, 0.0
  %56 = vst.msk [vmem:[#allocation2 + $0x270] sm:$0x1] %vm29, 0.0
  %57 = vst.msk [vmem:[#allocation2 + $0x288] sm:$0x1] %vm29, 0.0
  %58 = vst.msk [vmem:[#allocation2 + $0x2a0] sm:$0x1] %vm29, 0.0
  %59 = vst.msk [vmem:[#allocation2 + $0x2b8] sm:$0x1] %vm29, 0.0
  %60 = vst.msk [vmem:[#allocation2 + $0x2d0] sm:$0x1] %vm29, 0.0
  %61 = vst.msk [vmem:[#allocation2 + $0x2e8] sm:$0x1] %vm29, 0.0
  %62 = vst.msk [vmem:[#allocation2 + $0x300] sm:$0x1] %vm29, 0.0
  %63 = vst.msk [vmem:[#allocation2 + $0x318] sm:$0x1] %vm29, 0.0
  %64 = vst.msk [vmem:[#allocation2 + $0x330] sm:$0x1] %vm29, 0.0
  %65 = vst.msk [vmem:[#allocation2 + $0x348] sm:$0x1] %vm29, 0.0
  %66 = vst.msk [vmem:[#allocation2 + $0x11] sm:$0x1] %vm29, 0.0
  %67 = vst.msk [vmem:[#allocation2 + $0x29] sm:$0x1] %vm29, 0.0
  %68 = vst.msk [vmem:[#allocation2 + $0x41] sm:$0x1] %vm29, 0.0
  %69 = vst.msk [vmem:[#allocation2 + $0x59] sm:$0x1] %vm29, 0.0
  %70 = vst.msk [vmem:[#allocation2 + $0x71] sm:$0x1] %vm29, 0.0
  %71 = vst.msk [vmem:[#allocation2 + $0x89] sm:$0x1] %vm29, 0.0
  %72 = vst.msk [vmem:[#allocation2 + $0xa1] sm:$0x1] %vm29, 0.0
  %73 = vst.msk [vmem:[#allocation2 + $0xb9] sm:$0x1] %vm29, 0.0
  %74 = vst.msk [vmem:[#allocation2 + $0xd1] sm:$0x1] %vm29, 0.0
  %75 = vst.msk [vmem:[#allocation2 + $0xe9] sm:$0x1] %vm29, 0.0
  %76 = vst.msk [vmem:[#allocation2 + $0x101] sm:$0x1] %vm29, 0.0
  %77 = vst.msk [vmem:[#allocation2 + $0x119] sm:$0x1] %vm29, 0.0
  %78 = vst.msk [vmem:[#allocation2 + $0x131] sm:$0x1] %vm29, 0.0
  %79 = vst.msk [vmem:[#allocation2 + $0x149] sm:$0x1] %vm29, 0.0
  %80 = vst.msk [vmem:[#allocation2 + $0x161] sm:$0x1] %vm29, 0.0
  %81 = vst.msk [vmem:[#allocation2 + $0x179] sm:$0x1] %vm29, 0.0
  %82 = vst.msk [vmem:[#allocation2 + $0x191] sm:$0x1] %vm29, 0.0
  %83 = vst.msk [vmem:[#allocation2 + $0x1a9] sm:$0x1] %vm29, 0.0
  %84 = vst.msk [vmem:[#allocation2 + $0x1c1] sm:$0x1] %vm29, 0.0
  %85 = vst.msk [vmem:[#allocation2 + $0x1d9] sm:$0x1] %vm29, 0.0
  %86 = vst.msk [vmem:[#allocation2 + $0x1f1] sm:$0x1] %vm29, 0.0
  %87 = vst.msk [vmem:[#allocation2 + $0x209] sm:$0x1] %vm29, 0.0
  %88 = vst.msk [vmem:[#allocation2 + $0x221] sm:$0x1] %vm29, 0.0
  %89 = vst.msk [vmem:[#allocation2 + $0x239] sm:$0x1] %vm29, 0.0
  %90 = vst.msk [vmem:[#allocation2 + $0x251] sm:$0x1] %vm29, 0.0
  %91 = vst.msk [vmem:[#allocation2 + $0x269] sm:$0x1] %vm29, 0.0
  %92 = vst.msk [vmem:[#allocation2 + $0x281] sm:$0x1] %vm29, 0.0
  %93 = vst.msk [vmem:[#allocation2 + $0x299] sm:$0x1] %vm29, 0.0
  %94 = vst.msk [vmem:[#allocation2 + $0x2b1] sm:$0x1] %vm29, 0.0
  %95 = vst.msk [vmem:[#allocation2 + $0x2c9] sm:$0x1] %vm29, 0.0
  %96 = vst.msk [vmem:[#allocation2 + $0x2e1] sm:$0x1] %vm29, 0.0
  %97 = vst.msk [vmem:[#allocation2 + $0x2f9] sm:$0x1] %vm29, 0.0
  %98 = vst.msk [vmem:[#allocation2 + $0x311] sm:$0x1] %vm29, 0.0
  %99 = vst.msk [vmem:[#allocation2 + $0x329] sm:$0x1] %vm29, 0.0
  %100 = vst.msk [vmem:[#allocation2 + $0x341] sm:$0x1] %vm29, 0.0
  %101 = vst.msk [vmem:[#allocation2 + $0x359] sm:$0x1] %vm29, 0.0
  %v102 = vld [vmem:[%s0] sm:$0xff]
  %v103 = vld [vmem:[%s0 + $0x8] sm:$0xff]
  %v104 = vld [vmem:[%s0 + $0x10] sm:$0xff]
  %v105 = vld [vmem:[%s0 + $0x18] sm:$0xff]
  %v106 = vld [vmem:[%s0 + $0x20] sm:$0xff]
  %v107 = vld [vmem:[%s0 + $0x28] sm:$0xff]
  %v108 = vld [vmem:[%s0 + $0x30] sm:$0xff]
  %v109 = vld [vmem:[%s0 + $0x38] sm:$0xff]
  %v110 = vld [vmem:[%s0 + $0x40] sm:$0xff]
  %v111 = vld [vmem:[%s0 + $0x48] sm:$0xff]
  %v112 = vld [vmem:[%s0 + $0x50] sm:$0xff]
  %v113 = vld [vmem:[%s0 + $0x58] sm:$0xff]
  %v114 = vld [vmem:[%s0 + $0x60] sm:$0xff]
  %v115 = vld [vmem:[%s0 + $0x68] sm:$0xff]
  %v116 = vld [vmem:[%s0 + $0x70] sm:$0xff]
  %v117 = vld [vmem:[%s0 + $0x78] sm:$0xff]
  %v118 = vld [vmem:[%s0 + $0x80] sm:$0xff]
  %v119 = vld [vmem:[%s0 + $0x88] sm:$0xff]
  %v120 = vld [vmem:[%s0 + $0x90] sm:$0xff]
  %v121 = vld [vmem:[%s0 + $0x98] sm:$0xff]
  %v122 = vld [vmem:[%s0 + $0xa0] sm:$0xff]
  %v123 = vld [vmem:[%s0 + $0xa8] sm:$0xff]
  %v124 = vld [vmem:[%s0 + $0xb0] sm:$0xff]
  %v125 = vld [vmem:[%s0 + $0xb8] sm:$0xff]
  %v126 = vld [vmem:[%s0 + $0xc0] sm:$0xff]
  %v127 = vld [vmem:[%s0 + $0xc8] sm:$0xff]
  %v128 = vld [vmem:[%s0 + $0xd0] sm:$0xff]
  %v129 = vld [vmem:[%s0 + $0xd8] sm:$0xff]
  %v130 = vld [vmem:[%s0 + $0xe0] sm:$0xff]
  %v131 = vld [vmem:[%s0 + $0xe8] sm:$0xff]
  %v132 = vld [vmem:[%s0 + $0xf0] sm:$0xff]
  %v133 = vld [vmem:[%s0 + $0xf8] sm:$0xff]
  %v134 = vld [vmem:[%s0 + $0x100] sm:$0xff]
  %v135 = vld [vmem:[%s0 + $0x108] sm:$0xff]
  %v136 = vld [vmem:[%s0 + $0x110] sm:$0xff]
  %v137 = vld [vmem:[%s0 + $0x118] sm:$0xff]
  %v138 = vld [vmem:[%s0 + $0x120] sm:$0xff]
  %v139 = vld [vmem:[%s0 + $0x128] sm:$0xff]
  %v140 = vld [vmem:[%s0 + $0x130] sm:$0xff]
  %v141 = vld [vmem:[%s0 + $0x138] sm:$0xff]
  %v142 = vld [vmem:[%s0 + $0x140] sm:$0xff]
  %v143 = vld [vmem:[%s0 + $0x148] sm:$0xff]
  %v144 = vld [vmem:[%s0 + $0x150] sm:$0xff]
  %v145 = vld [vmem:[%s0 + $0x158] sm:$0xff]
  %v146 = vld [vmem:[%s0 + $0x160] sm:$0xff]
  %v147 = vld [vmem:[%s0 + $0x168] sm:$0xff]
  %v148 = vld [vmem:[%s0 + $0x170] sm:$0xff]
  %v149 = vld [vmem:[%s0 + $0x178] sm:$0xff]
  %v150 = vld [vmem:[%s0 + $0x180] sm:$0xff]
  %v151 = vld [vmem:[%s0 + $0x188] sm:$0xff]
  %v152 = vld [vmem:[%s0 + $0x190] sm:$0xff]
  %v153 = vld [vmem:[%s0 + $0x198] sm:$0xff]
  %v154 = vld [vmem:[%s0 + $0x1a0] sm:$0xff]
  %v155 = vld [vmem:[%s0 + $0x1a8] sm:$0xff]
  %v156 = vld [vmem:[%s0 + $0x1b0] sm:$0xff]
  %v157 = vld [vmem:[%s0 + $0x1b8] sm:$0xff]
  %v158 = vld [vmem:[%s0 + $0x1c0] sm:$0xff]
  %v159 = vld [vmem:[%s0 + $0x1c8] sm:$0xff]
  %v160 = vld [vmem:[%s0 + $0x1d0] sm:$0xff]
  %v161 = vld [vmem:[%s0 + $0x1d8] sm:$0xff]
  %v162 = vld [vmem:[%s0 + $0x1e0] sm:$0xff]
  %v163 = vld [vmem:[%s0 + $0x1e8] sm:$0xff]
  %v164 = vld [vmem:[%s0 + $0x1f0] sm:$0xff]
  %v165 = vld [vmem:[%s0 + $0x1f8] sm:$0xff]
  %s166 = scalar_lea.vmem [#allocation2], 24
  %167 = vst.msk [vmem:[%s166 + $0x1] sm:$0xff] %vm14, %v102
  %168 = vst.msk [vmem:[%s166 + $0x9] sm:$0xff] %vm14, %v103
  %169 = vst.msk [vmem:[%s166 + $0x19] sm:$0xff] %vm14, %v104
  %170 = vst.msk [vmem:[%s166 + $0x21] sm:$0xff] %vm14, %v105
  %171 = vst.msk [vmem:[%s166 + $0x31] sm:$0xff] %vm14, %v106
  %172 = vst.msk [vmem:[%s166 + $0x39] sm:$0xff] %vm14, %v107
  %173 = vst.msk [vmem:[%s166 + $0x49] sm:$0xff] %vm14, %v108
  %174 = vst.msk [vmem:[%s166 + $0x51] sm:$0xff] %vm14, %v109
  %175 = vst.msk [vmem:[%s166 + $0x61] sm:$0xff] %vm14, %v110
  %176 = vst.msk [vmem:[%s166 + $0x69] sm:$0xff] %vm14, %v111
  %177 = vst.msk [vmem:[%s166 + $0x79] sm:$0xff] %vm14, %v112
  %178 = vst.msk [vmem:[%s166 + $0x81] sm:$0xff] %vm14, %v113
  %179 = vst.msk [vmem:[%s166 + $0x91] sm:$0xff] %vm14, %v114
  %180 = vst.msk [vmem:[%s166 + $0x99] sm:$0xff] %vm14, %v115
  %181 = vst.msk [vmem:[%s166 + $0xa9] sm:$0xff] %vm14, %v116
  %182 = vst.msk [vmem:[%s166 + $0xb1] sm:$0xff] %vm14, %v117
  %183 = vst.msk [vmem:[%s166 + $0xc1] sm:$0xff] %vm14, %v118
  %184 = vst.msk [vmem:[%s166 + $0xc9] sm:$0xff] %vm14, %v119
  %185 = vst.msk [vmem:[%s166 + $0xd9] sm:$0xff] %vm14, %v120
  %186 = vst.msk [vmem:[%s166 + $0xe1] sm:$0xff] %vm14, %v121
  %187 = vst.msk [vmem:[%s166 + $0xf1] sm:$0xff] %vm14, %v122
  %188 = vst.msk [vmem:[%s166 + $0xf9] sm:$0xff] %vm14, %v123
  %189 = vst.msk [vmem:[%s166 + $0x109] sm:$0xff] %vm14, %v124
  %190 = vst.msk [vmem:[%s166 + $0x111] sm:$0xff] %vm14, %v125
  %191 = vst.msk [vmem:[%s166 + $0x121] sm:$0xff] %vm14, %v126
  %192 = vst.msk [vmem:[%s166 + $0x129] sm:$0xff] %vm14, %v127
  %193 = vst.msk [vmem:[%s166 + $0x139] sm:$0xff] %vm14, %v128
  %194 = vst.msk [vmem:[%s166 + $0x141] sm:$0xff] %vm14, %v129
  %195 = vst.msk [vmem:[%s166 + $0x151] sm:$0xff] %vm14, %v130
  %196 = vst.msk [vmem:[%s166 + $0x159] sm:$0xff] %vm14, %v131
  %197 = vst.msk [vmem:[%s166 + $0x169] sm:$0xff] %vm14, %v132
  %198 = vst.msk [vmem:[%s166 + $0x171] sm:$0xff] %vm14, %v133
  %199 = vst.msk [vmem:[%s166 + $0x1b1] sm:$0xff] %vm14, %v134
  %200 = vst.msk [vmem:[%s166 + $0x1b9] sm:$0xff] %vm14, %v135
  %201 = vst.msk [vmem:[%s166 + $0x1c9] sm:$0xff] %vm14, %v136
  %202 = vst.msk [vmem:[%s166 + $0x1d1] sm:$0xff] %vm14, %v137
  %203 = vst.msk [vmem:[%s166 + $0x1e1] sm:$0xff] %vm14, %v138
  %204 = vst.msk [vmem:[%s166 + $0x1e9] sm:$0xff] %vm14, %v139
  %205 = vst.msk [vmem:[%s166 + $0x1f9] sm:$0xff] %vm14, %v140
  %206 = vst.msk [vmem:[%s166 + $0x201] sm:$0xff] %vm14, %v141
  %207 = vst.msk [vmem:[%s166 + $0x211] sm:$0xff] %vm14, %v142
  %208 = vst.msk [vmem:[%s166 + $0x219] sm:$0xff] %vm14, %v143
  %209 = vst.msk [vmem:[%s166 + $0x229] sm:$0xff] %vm14, %v144
  %210 = vst.msk [vmem:[%s166 + $0x231] sm:$0xff] %vm14, %v145
  %211 = vst.msk [vmem:[%s166 + $0x241] sm:$0xff] %vm14, %v146
  %212 = vst.msk [vmem:[%s166 + $0x249] sm:$0xff] %vm14, %v147
  %213 = vst.msk [vmem:[%s166 + $0x259] sm:$0xff] %vm14, %v148
  %214 = vst.msk [vmem:[%s166 + $0x261] sm:$0xff] %vm14, %v149
  %215 = vst.msk [vmem:[%s166 + $0x271] sm:$0xff] %vm14, %v150
  %216 = vst.msk [vmem:[%s166 + $0x279] sm:$0xff] %vm14, %v151
  %217 = vst.msk [vmem:[%s166 + $0x289] sm:$0xff] %vm14, %v152
  %218 = vst.msk [vmem:[%s166 + $0x291] sm:$0xff] %vm14, %v153
  %219 = vst.msk [vmem:[%s166 + $0x2a1] sm:$0xff] %vm14, %v154
  %220 = vst.msk [vmem:[%s166 + $0x2a9] sm:$0xff] %vm14, %v155
  %221 = vst.msk [vmem:[%s166 + $0x2b9] sm:$0xff] %vm14, %v156
  %222 = vst.msk [vmem:[%s166 + $0x2c1] sm:$0xff] %vm14, %v157
  %223 = vst.msk [vmem:[%s166 + $0x2d1] sm:$0xff] %vm14, %v158
  %224 = vst.msk [vmem:[%s166 + $0x2d9] sm:$0xff] %vm14, %v159
  %225 = vst.msk [vmem:[%s166 + $0x2e9] sm:$0xff] %vm14, %v160
  %226 = vst.msk [vmem:[%s166 + $0x2f1] sm:$0xff] %vm14, %v161
  %227 = vst.msk [vmem:[%s166 + $0x301] sm:$0xff] %vm14, %v162
  %228 = vst.msk [vmem:[%s166 + $0x309] sm:$0xff] %vm14, %v163
  %229 = vst.msk [vmem:[%s166 + $0x319] sm:$0xff] %vm14, %v164
  %230 = vst.msk [vmem:[%s166 + $0x321] sm:$0xff] %vm14, %v165
  %v231 = vld [vmem:[#allocation2] sm:$0xff]
  %v232 = vld [vmem:[#allocation2 + $0x8] sm:$0xff]
  %v233 = vld [vmem:[#allocation2 + $0x10] sm:$0x3]
  %v234 = vld [vmem:[#allocation2 + $0x18] sm:$0xff]
  %v235 = vld [vmem:[#allocation2 + $0x20] sm:$0xff]
  %v236 = vld [vmem:[#allocation2 + $0x28] sm:$0x3]
  %v237 = vld [vmem:[#allocation2 + $0x30] sm:$0xff]
  %v238 = vld [vmem:[#allocation2 + $0x38] sm:$0xff]
  %v239 = vld [vmem:[#allocation2 + $0x40] sm:$0x3]
  %v240 = vld [vmem:[#allocation2 + $0x48] sm:$0xff]
  %v241 = vld [vmem:[#allocation2 + $0x50] sm:$0xff]
  %v242 = vld [vmem:[#allocation2 + $0x58] sm:$0x3]
  %v243 = vld [vmem:[#allocation2 + $0x60] sm:$0xff]
  %v244 = vld [vmem:[#allocation2 + $0x68] sm:$0xff]
  %v245 = vld [vmem:[#allocation2 + $0x70] sm:$0x3]
  %v246 = vld [vmem:[#allocation2 + $0x78] sm:$0xff]
  %v247 = vld [vmem:[#allocation2 + $0x80] sm:$0xff]
  %v248 = vld [vmem:[#allocation2 + $0x88] sm:$0x3]
  %v249 = vld [vmem:[#allocation2 + $0x90] sm:$0xff]
  %v250 = vld [vmem:[#allocation2 + $0x98] sm:$0xff]
  %v251 = vld [vmem:[#allocation2 + $0xa0] sm:$0x3]
  %v252 = vld [vmem:[#allocation2 + $0xa8] sm:$0xff]
  %v253 = vld [vmem:[#allocation2 + $0xb0] sm:$0xff]
  %v254 = vld [vmem:[#allocation2 + $0xb8] sm:$0x3]
  %v255 = vld [vmem:[#allocation2 + $0xc0] sm:$0xff]
  %v256 = vld [vmem:[#allocation2 + $0xc8] sm:$0xff]
  %v257 = vld [vmem:[#allocation2 + $0xd0] sm:$0x3]
  %v258 = vld [vmem:[#allocation2 + $0xd8] sm:$0xff]
  %v259 = vld [vmem:[#allocation2 + $0xe0] sm:$0xff]
  %v260 = vld [vmem:[#allocation2 + $0xe8] sm:$0x3]
  %v261 = vld [vmem:[#allocation2 + $0xf0] sm:$0xff]
  %v262 = vld [vmem:[#allocation2 + $0xf8] sm:$0xff]
  %v263 = vld [vmem:[#allocation2 + $0x100] sm:$0x3]
  %v264 = vld [vmem:[#allocation2 + $0x108] sm:$0xff]
  %v265 = vld [vmem:[#allocation2 + $0x110] sm:$0xff]
  %v266 = vld [vmem:[#allocation2 + $0x118] sm:$0x3]
  %v267 = vld [vmem:[#allocation2 + $0x120] sm:$0xff]
  %v268 = vld [vmem:[#allocation2 + $0x128] sm:$0xff]
  %v269 = vld [vmem:[#allocation2 + $0x130] sm:$0x3]
  %v270 = vld [vmem:[#allocation2 + $0x138] sm:$0xff]
  %v271 = vld [vmem:[#allocation2 + $0x140] sm:$0xff]
  %v272 = vld [vmem:[#allocation2 + $0x148] sm:$0x3]
  %v273 = vld [vmem:[#allocation2 + $0x150] sm:$0xff]
  %v274 = vld [vmem:[#allocation2 + $0x158] sm:$0xff]
  %v275 = vld [vmem:[#allocation2 + $0x160] sm:$0x3]
  %v276 = vld [vmem:[#allocation2 + $0x168] sm:$0xff]
  %v277 = vld [vmem:[#allocation2 + $0x170] sm:$0xff]
  %v278 = vld [vmem:[#allocation2 + $0x178] sm:$0x3]
  %v279 = vld [vmem:[#allocation2 + $0x180] sm:$0xff]
  %v280 = vld [vmem:[#allocation2 + $0x188] sm:$0xff]
  %v281 = vld [vmem:[#allocation2 + $0x190] sm:$0x3]
  %v282 = vld [vmem:[#allocation2 + $0x198] sm:$0xff]
  %v283 = vld [vmem:[#allocation2 + $0x1a0] sm:$0xff]
  %v284 = vld [vmem:[#allocation2 + $0x1a8] sm:$0x3]
  %v285 = vld [vmem:[#allocation2 + $0x1b0] sm:$0xff]
  %v286 = vld [vmem:[#allocation2 + $0x1b8] sm:$0xff]
  %v287 = vld [vmem:[#allocation2 + $0x1c0] sm:$0x3]
  %v288 = vld [vmem:[#allocation2 + $0x1c8] sm:$0xff]
  %v289 = vld [vmem:[#allocation2 + $0x1d0] sm:$0xff]
  %v290 = vld [vmem:[#allocation2 + $0x1d8] sm:$0x3]
  %v291 = vld [vmem:[#allocation2 + $0x1e0] sm:$0xff]
  %v292 = vld [vmem:[#allocation2 + $0x1e8] sm:$0xff]
  %v293 = vld [vmem:[#allocation2 + $0x1f0] sm:$0x3]
  %v294 = vld [vmem:[#allocation2 + $0x1f8] sm:$0xff]
  %v295 = vld [vmem:[#allocation2 + $0x200] sm:$0xff]
  %v296 = vld [vmem:[#allocation2 + $0x208] sm:$0x3]
  %v297 = vld [vmem:[#allocation2 + $0x210] sm:$0xff]
  %v298 = vld [vmem:[#allocation2 + $0x218] sm:$0xff]
  %v299 = vld [vmem:[#allocation2 + $0x220] sm:$0x3]
  %v300 = vld [vmem:[#allocation2 + $0x228] sm:$0xff]
  %v301 = vld [vmem:[#allocation2 + $0x230] sm:$0xff]
  %v302 = vld [vmem:[#allocation2 + $0x238] sm:$0x3]
  %v303 = vld [vmem:[#allocation2 + $0x240] sm:$0xff]
  %v304 = vld [vmem:[#allocation2 + $0x248] sm:$0xff]
  %v305 = vld [vmem:[#allocation2 + $0x250] sm:$0x3]
  %v306 = vld [vmem:[#allocation2 + $0x258] sm:$0xff]
  %v307 = vld [vmem:[#allocation2 + $0x260] sm:$0xff]
  %v308 = vld [vmem:[#allocation2 + $0x268] sm:$0x3]
  %v309 = vld [vmem:[#allocation2 + $0x270] sm:$0xff]
  %v310 = vld [vmem:[#allocation2 + $0x278] sm:$0xff]
  %v311 = vld [vmem:[#allocation2 + $0x280] sm:$0x3]
  %v312 = vld [vmem:[#allocation2 + $0x288] sm:$0xff]
  %v313 = vld [vmem:[#allocation2 + $0x290] sm:$0xff]
  %v314 = vld [vmem:[#allocation2 + $0x298] sm:$0x3]
  %v315 = vld [vmem:[#allocation2 + $0x2a0] sm:$0xff]
  %v316 = vld [vmem:[#allocation2 + $0x2a8] sm:$0xff]
  %v317 = vld [vmem:[#allocation2 + $0x2b0] sm:$0x3]
  %v318 = vld [vmem:[#allocation2 + $0x2b8] sm:$0xff]
  %v319 = vld [vmem:[#allocation2 + $0x2c0] sm:$0xff]
  %v320 = vld [vmem:[#allocation2 + $0x2c8] sm:$0x3]
  %v321 = vld [vmem:[#allocation2 + $0x2d0] sm:$0xff]
  %v322 = vld [vmem:[#allocation2 + $0x2d8] sm:$0xff]
  %v323 = vld [vmem:[#allocation2 + $0x2e0] sm:$0x3]
  %v324 = vld [vmem:[#allocation2 + $0x2e8] sm:$0xff]
  %v325 = vld [vmem:[#allocation2 + $0x2f0] sm:$0xff]
  %v326 = vld [vmem:[#allocation2 + $0x2f8] sm:$0x3]
  %v327 = vld [vmem:[#allocation2 + $0x300] sm:$0xff]
  %v328 = vld [vmem:[#allocation2 + $0x308] sm:$0xff]
  %v329 = vld [vmem:[#allocation2 + $0x310] sm:$0x3]
  %v330 = vld [vmem:[#allocation2 + $0x318] sm:$0xff]
  %v331 = vld [vmem:[#allocation2 + $0x320] sm:$0xff]
  %v332 = vld [vmem:[#allocation2 + $0x328] sm:$0x3]
  %v333 = vld [vmem:[#allocation2 + $0x330] sm:$0xff]
  %v334 = vld [vmem:[#allocation2 + $0x338] sm:$0xff]
  %v335 = vld [vmem:[#allocation2 + $0x340] sm:$0x3]
  %v336 = vld [vmem:[#allocation2 + $0x348] sm:$0xff]
  %v337 = vld [vmem:[#allocation2 + $0x350] sm:$0xff]
  %v338 = vld [vmem:[#allocation2 + $0x358] sm:$0x3]
  %v339 = vmax.f32 %v231, 0.0
  %v340 = vmax.f32 %v232, 0.0
  %v341 = vmax.f32 %v233, 0.0
  %v342 = vmax.f32 %v234, 0.0
  %v343 = vmax.f32 %v235, 0.0
  %v344 = vmax.f32 %v236, 0.0
  %v345 = vmax.f32 %v237, 0.0
  %v346 = vmax.f32 %v238, 0.0
  %v347 = vmax.f32 %v239, 0.0
  %v348 = vmax.f32 %v240, 0.0
  %v349 = vmax.f32 %v241, 0.0
  %v350 = vmax.f32 %v242, 0.0
  %v351 = vmax.f32 %v243, 0.0
  %v352 = vmax.f32 %v244, 0.0
  %v353 = vmax.f32 %v245, 0.0
  %v354 = vmax.f32 %v246, 0.0
  %v355 = vmax.f32 %v247, 0.0
  %v356 = vmax.f32 %v248, 0.0
  %v357 = vmax.f32 %v249, 0.0
  %v358 = vmax.f32 %v250, 0.0
  %v359 = vmax.f32 %v251, 0.0
  %v360 = vmax.f32 %v252, 0.0
  %v361 = vmax.f32 %v253, 0.0
  %v362 = vmax.f32 %v254, 0.0
  %v363 = vmax.f32 %v255, 0.0
  %v364 = vmax.f32 %v256, 0.0
  %v365 = vmax.f32 %v257, 0.0
  %v366 = vmax.f32 %v258, 0.0
  %v367 = vmax.f32 %v259, 0.0
  %v368 = vmax.f32 %v260, 0.0
  %v369 = vmax.f32 %v261, 0.0
  %v370 = vmax.f32 %v262, 0.0
  %v371 = vmax.f32 %v263, 0.0
  %v372 = vmax.f32 %v264, 0.0
  %v373 = vmax.f32 %v265, 0.0
  %v374 = vmax.f32 %v266, 0.0
  %v375 = vmax.f32 %v267, 0.0
  %v376 = vmax.f32 %v268, 0.0
  %v377 = vmax.f32 %v269, 0.0
  %v378 = vmax.f32 %v270, 0.0
  %v379 = vmax.f32 %v271, 0.0
  %v380 = vmax.f32 %v272, 0.0
  %v381 = vmax.f32 %v273, 0.0
  %v382 = vmax.f32 %v274, 0.0
  %v383 = vmax.f32 %v275, 0.0
  %v384 = vmax.f32 %v276, 0.0
  %v385 = vmax.f32 %v277, 0.0
  %v386 = vmax.f32 %v278, 0.0
  %v387 = vmax.f32 %v279, 0.0
  %v388 = vmax.f32 %v280, 0.0
  %v389 = vmax.f32 %v281, 0.0
  %v390 = vmax.f32 %v282, 0.0
  %v391 = vmax.f32 %v283, 0.0
  %v392 = vmax.f32 %v284, 0.0
  %v393 = vmax.f32 %v285, 0.0
  %v394 = vmax.f32 %v286, 0.0
  %v395 = vmax.f32 %v287, 0.0
  %v396 = vmax.f32 %v288, 0.0
  %v397 = vmax.f32 %v289, 0.0
  %v398 = vmax.f32 %v290, 0.0
  %v399 = vmax.f32 %v291, 0.0
  %v400 = vmax.f32 %v292, 0.0
  %v401 = vmax.f32 %v293, 0.0
  %v402 = vmax.f32 %v294, 0.0
  %v403 = vmax.f32 %v295, 0.0
  %v404 = vmax.f32 %v296, 0.0
  %v405 = vmax.f32 %v297, 0.0
  %v406 = vmax.f32 %v298, 0.0
  %v407 = vmax.f32 %v299, 0.0
  %v408 = vmax.f32 %v300, 0.0
  %v409 = vmax.f32 %v301, 0.0
  %v410 = vmax.f32 %v302, 0.0
  %v411 = vmax.f32 %v303, 0.0
  %v412 = vmax.f32 %v304, 0.0
  %v413 = vmax.f32 %v305, 0.0
  %v414 = vmax.f32 %v306, 0.0
  %v415 = vmax.f32 %v307, 0.0
  %v416 = vmax.f32 %v308, 0.0
  %v417 = vmax.f32 %v309, 0.0
  %v418 = vmax.f32 %v310, 0.0
  %v419 = vmax.f32 %v311, 0.0
  %v420 = vmax.f32 %v312, 0.0
  %v421 = vmax.f32 %v313, 0.0
  %v422 = vmax.f32 %v314, 0.0
  %v423 = vmax.f32 %v315, 0.0
  %v424 = vmax.f32 %v316, 0.0
  %v425 = vmax.f32 %v317, 0.0
  %v426 = vmax.f32 %v318, 0.0
  %v427 = vmax.f32 %v319, 0.0
  %v428 = vmax.f32 %v320, 0.0
  %v429 = vmax.f32 %v321, 0.0
  %v430 = vmax.f32 %v322, 0.0
  %v431 = vmax.f32 %v323, 0.0
  %v432 = vmax.f32 %v324, 0.0
  %v433 = vmax.f32 %v325, 0.0
  %v434 = vmax.f32 %v326, 0.0
  %v435 = vmax.f32 %v327, 0.0
  %v436 = vmax.f32 %v328, 0.0
  %v437 = vmax.f32 %v329, 0.0
  %v438 = vmax.f32 %v330, 0.0
  %v439 = vmax.f32 %v331, 0.0
  %v440 = vmax.f32 %v332, 0.0
  %v441 = vmax.f32 %v333, 0.0
  %v442 = vmax.f32 %v334, 0.0
  %v443 = vmax.f32 %v335, 0.0
  %v444 = vmax.f32 %v336, 0.0
  %v445 = vmax.f32 %v337, 0.0
  %v446 = vmax.f32 %v338, 0.0
  %vm555 = vcmask 1046528
  %v556 = vrot.slane %v339, 1
  %v557 = vrot.slane %v340, 1
  %v558 = vsel %vm555, %v556, %v557
  %v559 = vrot.slane %v341, 1
  %v560 = vsel %vm555, %v557, %v559
  %v561 = vrot.slane %v342, 1
  %v562 = vrot.slane %v343, 1
  %v563 = vsel %vm555, %v561, %v562
  %v564 = vrot.slane %v344, 1
  %v565 = vsel %vm555, %v562, %v564
  %v566 = vrot.slane %v345, 1
  %v567 = vrot.slane %v346, 1
  %v568 = vsel %vm555, %v566, %v567
  %v569 = vrot.slane %v347, 1
  %v570 = vsel %vm555, %v567, %v569
  %v571 = vrot.slane %v348, 1
  %v572 = vrot.slane %v349, 1
  %v573 = vsel %vm555, %v571, %v572
  %v574 = vrot.slane %v350, 1
  %v575 = vsel %vm555, %v572, %v574
  %v576 = vrot.slane %v351, 1
  %v577 = vrot.slane %v352, 1
  %v578 = vsel %vm555, %v576, %v577
  %v579 = vrot.slane %v353, 1
  %v580 = vsel %vm555, %v577, %v579
  %v581 = vrot.slane %v354, 1
  %v582 = vrot.slane %v355, 1
  %v583 = vsel %vm555, %v581, %v582
  %v584 = vrot.slane %v356, 1
  %v585 = vsel %vm555, %v582, %v584
  %v586 = vrot.slane %v357, 1
  %v587 = vrot.slane %v358, 1
  %v588 = vsel %vm555, %v586, %v587
  %v589 = vrot.slane %v359, 1
  %v590 = vsel %vm555, %v587, %v589
  %v591 = vrot.slane %v360, 1
  %v592 = vrot.slane %v361, 1
  %v593 = vsel %vm555, %v591, %v592
  %v594 = vrot.slane %v362, 1
  %v595 = vsel %vm555, %v592, %v594
  %v596 = vrot.slane %v363, 1
  %v597 = vrot.slane %v364, 1
  %v598 = vsel %vm555, %v596, %v597
  %v599 = vrot.slane %v365, 1
  %v600 = vsel %vm555, %v597, %v599
  %v601 = vrot.slane %v366, 1
  %v602 = vrot.slane %v367, 1
  %v603 = vsel %vm555, %v601, %v602
  %v604 = vrot.slane %v368, 1
  %v605 = vsel %vm555, %v602, %v604
  %v606 = vrot.slane %v369, 1
  %v607 = vrot.slane %v370, 1
  %v608 = vsel %vm555, %v606, %v607
  %v609 = vrot.slane %v371, 1
  %v610 = vsel %vm555, %v607, %v609
  %v611 = vrot.slane %v372, 1
  %v612 = vrot.slane %v373, 1
  %v613 = vsel %vm555, %v611, %v612
  %v614 = vrot.slane %v374, 1
  %v615 = vsel %vm555, %v612, %v614
  %v616 = vrot.slane %v375, 1
  %v617 = vrot.slane %v376, 1
  %v618 = vsel %vm555, %v616, %v617
  %v619 = vrot.slane %v377, 1
  %v620 = vsel %vm555, %v617, %v619
  %v621 = vrot.slane %v378, 1
  %v622 = vrot.slane %v379, 1
  %v623 = vsel %vm555, %v621, %v622
  %v624 = vrot.slane %v380, 1
  %v625 = vsel %vm555, %v622, %v624
  %v626 = vrot.slane %v381, 1
  %v627 = vrot.slane %v382, 1
  %v628 = vsel %vm555, %v626, %v627
  %v629 = vrot.slane %v383, 1
  %v630 = vsel %vm555, %v627, %v629
  %v631 = vrot.slane %v384, 1
  %v632 = vrot.slane %v385, 1
  %v633 = vsel %vm555, %v631, %v632
  %v634 = vrot.slane %v386, 1
  %v635 = vsel %vm555, %v632, %v634
  %v636 = vrot.slane %v387, 1
  %v637 = vrot.slane %v388, 1
  %v638 = vsel %vm555, %v636, %v637
  %v639 = vrot.slane %v389, 1
  %v640 = vsel %vm555, %v637, %v639
  %v641 = vrot.slane %v390, 1
  %v642 = vrot.slane %v391, 1
  %v643 = vsel %vm555, %v641, %v642
  %v644 = vrot.slane %v392, 1
  %v645 = vsel %vm555, %v642, %v644
  %v646 = vrot.slane %v393, 1
  %v647 = vrot.slane %v394, 1
  %v648 = vsel %vm555, %v646, %v647
  %v649 = vrot.slane %v395, 1
  %v650 = vsel %vm555, %v647, %v649
  %v651 = vrot.slane %v396, 1
  %v652 = vrot.slane %v397, 1
  %v653 = vsel %vm555, %v651, %v652
  %v654 = vrot.slane %v398, 1
  %v655 = vsel %vm555, %v652, %v654
  %v656 = vrot.slane %v399, 1
  %v657 = vrot.slane %v400, 1
  %v658 = vsel %vm555, %v656, %v657
  %v659 = vrot.slane %v401, 1
  %v660 = vsel %vm555, %v657, %v659
  %v661 = vrot.slane %v402, 1
  %v662 = vrot.slane %v403, 1
  %v663 = vsel %vm555, %v661, %v662
  %v664 = vrot.slane %v404, 1
  %v665 = vsel %vm555, %v662, %v664
  %v666 = vrot.slane %v405, 1
  %v667 = vrot.slane %v406, 1
  %v668 = vsel %vm555, %v666, %v667
  %v669 = vrot.slane %v407, 1
  %v670 = vsel %vm555, %v667, %v669
  %v671 = vrot.slane %v408, 1
  %v672 = vrot.slane %v409, 1
  %v673 = vsel %vm555, %v671, %v672
  %v674 = vrot.slane %v410, 1
  %v675 = vsel %vm555, %v672, %v674
  %v676 = vrot.slane %v411, 1
  %v677 = vrot.slane %v412, 1
  %v678 = vsel %vm555, %v676, %v677
  %v679 = vrot.slane %v413, 1
  %v680 = vsel %vm555, %v677, %v679
  %v681 = vrot.slane %v414, 1
  %v682 = vrot.slane %v415, 1
  %v683 = vsel %vm555, %v681, %v682
  %v684 = vrot.slane %v416, 1
  %v685 = vsel %vm555, %v682, %v684
  %v686 = vrot.slane %v417, 1
  %v687 = vrot.slane %v418, 1
  %v688 = vsel %vm555, %v686, %v687
  %v689 = vrot.slane %v419, 1
  %v690 = vsel %vm555, %v687, %v689
  %v691 = vrot.slane %v420, 1
  %v692 = vrot.slane %v421, 1
  %v693 = vsel %vm555, %v691, %v692
  %v694 = vrot.slane %v422, 1
  %v695 = vsel %vm555, %v692, %v694
  %v696 = vrot.slane %v423, 1
  %v697 = vrot.slane %v424, 1
  %v698 = vsel %vm555, %v696, %v697
  %v699 = vrot.slane %v425, 1
  %v700 = vsel %vm555, %v697, %v699
  %v701 = vrot.slane %v426, 1
  %v702 = vrot.slane %v427, 1
  %v703 = vsel %vm555, %v701, %v702
  %v704 = vrot.slane %v428, 1
  %v705 = vsel %vm555, %v702, %v704
  %v706 = vrot.slane %v429, 1
  %v707 = vrot.slane %v430, 1
  %v708 = vsel %vm555, %v706, %v707
  %v709 = vrot.slane %v431, 1
  %v710 = vsel %vm555, %v707, %v709
  %v711 = vrot.slane %v432, 1
  %v712 = vrot.slane %v433, 1
  %v713 = vsel %vm555, %v711, %v712
  %v714 = vrot.slane %v434, 1
  %v715 = vsel %vm555, %v712, %v714
  %v716 = vrot.slane %v435, 1
  %v717 = vrot.slane %v436, 1
  %v718 = vsel %vm555, %v716, %v717
  %v719 = vrot.slane %v437, 1
  %v720 = vsel %vm555, %v717, %v719
  %v721 = vrot.slane %v438, 1
  %v722 = vrot.slane %v439, 1
  %v723 = vsel %vm555, %v721, %v722
  %v724 = vrot.slane %v440, 1
  %v725 = vsel %vm555, %v722, %v724
  %v726 = vrot.slane %v441, 1
  %v727 = vrot.slane %v442, 1
  %v728 = vsel %vm555, %v726, %v727
  %v729 = vrot.slane %v443, 1
  %v730 = vsel %vm555, %v727, %v729
  %v731 = vrot.slane %v444, 1
  %v732 = vrot.slane %v445, 1
  %v733 = vsel %vm555, %v731, %v732
  %v734 = vrot.slane %v446, 1
  %v735 = vsel %vm555, %v732, %v734
  %736 = vrot.lane.b32.xlu0 %v558, 4
  %v737 = vpop.permute.xlu0 %736
  %738 = vrot.lane.b32.xlu0 %v560, 4
  %v739 = vpop.permute.xlu0 %738
  %740 = vrot.lane.b32.xlu0 %v563, 4
  %v741 = vpop.permute.xlu0 %740
  %742 = vrot.lane.b32.xlu0 %v565, 4
  %v743 = vpop.permute.xlu0 %742
  %744 = vrot.lane.b32.xlu0 %v568, 4
  %v745 = vpop.permute.xlu0 %744
  %746 = vrot.lane.b32.xlu0 %v570, 4
  %v747 = vpop.permute.xlu0 %746
  %748 = vrot.lane.b32.xlu0 %v573, 4
  %v749 = vpop.permute.xlu0 %748
  %750 = vrot.lane.b32.xlu0 %v575, 4
  %v751 = vpop.permute.xlu0 %750
  %752 = vrot.lane.b32.xlu0 %v578, 4
  %v753 = vpop.permute.xlu0 %752
  %754 = vrot.lane.b32.xlu0 %v580, 4
  %v755 = vpop.permute.xlu0 %754
  %756 = vrot.lane.b32.xlu0 %v583, 4
  %v757 = vpop.permute.xlu0 %756
  %758 = vrot.lane.b32.xlu0 %v585, 4
  %v759 = vpop.permute.xlu0 %758
  %760 = vrot.lane.b32.xlu0 %v588, 4
  %v761 = vpop.permute.xlu0 %760
  %762 = vrot.lane.b32.xlu0 %v590, 4
  %v763 = vpop.permute.xlu0 %762
  %764 = vrot.lane.b32.xlu0 %v593, 4
  %v765 = vpop.permute.xlu0 %764
  %766 = vrot.lane.b32.xlu0 %v595, 4
  %v767 = vpop.permute.xlu0 %766
  %768 = vrot.lane.b32.xlu0 %v598, 4
  %v769 = vpop.permute.xlu0 %768
  %770 = vrot.lane.b32.xlu0 %v600, 4
  %v771 = vpop.permute.xlu0 %770
  %772 = vrot.lane.b32.xlu0 %v603, 4
  %v773 = vpop.permute.xlu0 %772
  %774 = vrot.lane.b32.xlu0 %v605, 4
  %v775 = vpop.permute.xlu0 %774
  %776 = vrot.lane.b32.xlu0 %v608, 4
  %v777 = vpop.permute.xlu0 %776
  %778 = vrot.lane.b32.xlu0 %v610, 4
  %v779 = vpop.permute.xlu0 %778
  %780 = vrot.lane.b32.xlu0 %v613, 4
  %v781 = vpop.permute.xlu0 %780
  %782 = vrot.lane.b32.xlu0 %v615, 4
  %v783 = vpop.permute.xlu0 %782
  %784 = vrot.lane.b32.xlu0 %v618, 4
  %v785 = vpop.permute.xlu0 %784
  %786 = vrot.lane.b32.xlu0 %v620, 4
  %v787 = vpop.permute.xlu0 %786
  %788 = vrot.lane.b32.xlu0 %v623, 4
  %v789 = vpop.permute.xlu0 %788
  %790 = vrot.lane.b32.xlu0 %v625, 4
  %v791 = vpop.permute.xlu0 %790
  %792 = vrot.lane.b32.xlu0 %v628, 4
  %v793 = vpop.permute.xlu0 %792
  %794 = vrot.lane.b32.xlu0 %v630, 4
  %v795 = vpop.permute.xlu0 %794
  %796 = vrot.lane.b32.xlu0 %v633, 4
  %v797 = vpop.permute.xlu0 %796
  %798 = vrot.lane.b32.xlu0 %v635, 4
  %v799 = vpop.permute.xlu0 %798
  %800 = vrot.lane.b32.xlu0 %v638, 4
  %v801 = vpop.permute.xlu0 %800
  %802 = vrot.lane.b32.xlu0 %v640, 4
  %v803 = vpop.permute.xlu0 %802
  %804 = vrot.lane.b32.xlu0 %v643, 4
  %v805 = vpop.permute.xlu0 %804
  %806 = vrot.lane.b32.xlu0 %v645, 4
  %v807 = vpop.permute.xlu0 %806
  %808 = vrot.lane.b32.xlu0 %v648, 4
  %v809 = vpop.permute.xlu0 %808
  %810 = vrot.lane.b32.xlu0 %v650, 4
  %v811 = vpop.permute.xlu0 %810
  %812 = vrot.lane.b32.xlu0 %v653, 4
  %v813 = vpop.permute.xlu0 %812
  %814 = vrot.lane.b32.xlu0 %v655, 4
  %v815 = vpop.permute.xlu0 %814
  %816 = vrot.lane.b32.xlu0 %v658, 4
  %v817 = vpop.permute.xlu0 %816
  %818 = vrot.lane.b32.xlu0 %v660, 4
  %v819 = vpop.permute.xlu0 %818
  %820 = vrot.lane.b32.xlu0 %v663, 4
  %v821 = vpop.permute.xlu0 %820
  %822 = vrot.lane.b32.xlu0 %v665, 4
  %v823 = vpop.permute.xlu0 %822
  %824 = vrot.lane.b32.xlu0 %v668, 4
  %v825 = vpop.permute.xlu0 %824
  %826 = vrot.lane.b32.xlu0 %v670, 4
  %v827 = vpop.permute.xlu0 %826
  %828 = vrot.lane.b32.xlu0 %v673, 4
  %v829 = vpop.permute.xlu0 %828
  %830 = vrot.lane.b32.xlu0 %v675, 4
  %v831 = vpop.permute.xlu0 %830
  %832 = vrot.lane.b32.xlu0 %v678, 4
  %v833 = vpop.permute.xlu0 %832
  %834 = vrot.lane.b32.xlu0 %v680, 4
  %v835 = vpop.permute.xlu0 %834
  %836 = vrot.lane.b32.xlu0 %v683, 4
  %v837 = vpop.permute.xlu0 %836
  %838 = vrot.lane.b32.xlu0 %v685, 4
  %v839 = vpop.permute.xlu0 %838
  %840 = vrot.lane.b32.xlu0 %v688, 4
  %v841 = vpop.permute.xlu0 %840
  %842 = vrot.lane.b32.xlu0 %v690, 4
  %v843 = vpop.permute.xlu0 %842
  %844 = vrot.lane.b32.xlu0 %v693, 4
  %v845 = vpop.permute.xlu0 %844
  %846 = vrot.lane.b32.xlu0 %v695, 4
  %v847 = vpop.permute.xlu0 %846
  %848 = vrot.lane.b32.xlu0 %v698, 4
  %v849 = vpop.permute.xlu0 %848
  %850 = vrot.lane.b32.xlu0 %v700, 4
  %v851 = vpop.permute.xlu0 %850
  %852 = vrot.lane.b32.xlu0 %v703, 4
  %v853 = vpop.permute.xlu0 %852
  %854 = vrot.lane.b32.xlu0 %v705, 4
  %v855 = vpop.permute.xlu0 %854
  %856 = vrot.lane.b32.xlu0 %v708, 4
  %v857 = vpop.permute.xlu0 %856
  %858 = vrot.lane.b32.xlu0 %v710, 4
  %v859 = vpop.permute.xlu0 %858
  %860 = vrot.lane.b32.xlu0 %v713, 4
  %v861 = vpop.permute.xlu0 %860
  %862 = vrot.lane.b32.xlu0 %v715, 4
  %v863 = vpop.permute.xlu0 %862
  %864 = vrot.lane.b32.xlu0 %v718, 4
  %v865 = vpop.permute.xlu0 %864
  %866 = vrot.lane.b32.xlu0 %v720, 4
  %v867 = vpop.permute.xlu0 %866
  %868 = vrot.lane.b32.xlu0 %v723, 4
  %v869 = vpop.permute.xlu0 %868
  %870 = vrot.lane.b32.xlu0 %v725, 4
  %v871 = vpop.permute.xlu0 %870
  %872 = vrot.lane.b32.xlu0 %v728, 4
  %v873 = vpop.permute.xlu0 %872
  %874 = vrot.lane.b32.xlu0 %v730, 4
  %v875 = vpop.permute.xlu0 %874
  %876 = vrot.lane.b32.xlu0 %v733, 4
  %v877 = vpop.permute.xlu0 %876
  %878 = vrot.lane.b32.xlu0 %v735, 4
  %v879 = vpop.permute.xlu0 %878
  %vm952 = vcmask 1045504
  %v953 = vrot.slane %v339, 2
  %v954 = vrot.slane %v340, 2
  %v955 = vsel %vm952, %v953, %v954
  %v956 = vrot.slane %v341, 2
  %v957 = vsel %vm952, %v954, %v956
  %v958 = vrot.slane %v342, 2
  %v959 = vrot.slane %v343, 2
  %v960 = vsel %vm952, %v958, %v959
  %v961 = vrot.slane %v344, 2
  %v962 = vsel %vm952, %v959, %v961
  %v963 = vrot.slane %v345, 2
  %v964 = vrot.slane %v346, 2
  %v965 = vsel %vm952, %v963, %v964
  %v966 = vrot.slane %v347, 2
  %v967 = vsel %vm952, %v964, %v966
  %v968 = vrot.slane %v348, 2
  %v969 = vrot.slane %v349, 2
  %v970 = vsel %vm952, %v968, %v969
  %v971 = vrot.slane %v350, 2
  %v972 = vsel %vm952, %v969, %v971
  %v973 = vrot.slane %v351, 2
  %v974 = vrot.slane %v352, 2
  %v975 = vsel %vm952, %v973, %v974
  %v976 = vrot.slane %v353, 2
  %v977 = vsel %vm952, %v974, %v976
  %v978 = vrot.slane %v354, 2
  %v979 = vrot.slane %v355, 2
  %v980 = vsel %vm952, %v978, %v979
  %v981 = vrot.slane %v356, 2
  %v982 = vsel %vm952, %v979, %v981
  %v983 = vrot.slane %v357, 2
  %v984 = vrot.slane %v358, 2
  %v985 = vsel %vm952, %v983, %v984
  %v986 = vrot.slane %v359, 2
  %v987 = vsel %vm952, %v984, %v986
  %v988 = vrot.slane %v360, 2
  %v989 = vrot.slane %v361, 2
  %v990 = vsel %vm952, %v988, %v989
  %v991 = vrot.slane %v362, 2
  %v992 = vsel %vm952, %v989, %v991
  %v993 = vrot.slane %v363, 2
  %v994 = vrot.slane %v364, 2
  %v995 = vsel %vm952, %v993, %v994
  %v996 = vrot.slane %v365, 2
  %v997 = vsel %vm952, %v994, %v996
  %v998 = vrot.slane %v366, 2
  %v999 = vrot.slane %v367, 2
  %v1000 = vsel %vm952, %v998, %v999
  %v1001 = vrot.slane %v368, 2
  %v1002 = vsel %vm952, %v999, %v1001
  %v1003 = vrot.slane %v369, 2
  %v1004 = vrot.slane %v370, 2
  %v1005 = vsel %vm952, %v1003, %v1004
  %v1006 = vrot.slane %v371, 2
  %v1007 = vsel %vm952, %v1004, %v1006
  %v1008 = vrot.slane %v372, 2
  %v1009 = vrot.slane %v373, 2
  %v1010 = vsel %vm952, %v1008, %v1009
  %v1011 = vrot.slane %v374, 2
  %v1012 = vsel %vm952, %v1009, %v1011
  %v1013 = vrot.slane %v375, 2
  %v1014 = vrot.slane %v376, 2
  %v1015 = vsel %vm952, %v1013, %v1014
  %v1016 = vrot.slane %v377, 2
  %v1017 = vsel %vm952, %v1014, %v1016
  %v1018 = vrot.slane %v378, 2
  %v1019 = vrot.slane %v379, 2
  %v1020 = vsel %vm952, %v1018, %v1019
  %v1021 = vrot.slane %v380, 2
  %v1022 = vsel %vm952, %v1019, %v1021
  %v1023 = vrot.slane %v381, 2
  %v1024 = vrot.slane %v382, 2
  %v1025 = vsel %vm952, %v1023, %v1024
  %v1026 = vrot.slane %v383, 2
  %v1027 = vsel %vm952, %v1024, %v1026
  %v1028 = vrot.slane %v384, 2
  %v1029 = vrot.slane %v385, 2
  %v1030 = vsel %vm952, %v1028, %v1029
  %v1031 = vrot.slane %v386, 2
  %v1032 = vsel %vm952, %v1029, %v1031
  %v1033 = vrot.slane %v387, 2
  %v1034 = vrot.slane %v388, 2
  %v1035 = vsel %vm952, %v1033, %v1034
  %v1036 = vrot.slane %v389, 2
  %v1037 = vsel %vm952, %v1034, %v1036
  %v1038 = vrot.slane %v390, 2
  %v1039 = vrot.slane %v391, 2
  %v1040 = vsel %vm952, %v1038, %v1039
  %v1041 = vrot.slane %v392, 2
  %v1042 = vsel %vm952, %v1039, %v1041
  %v1043 = vrot.slane %v393, 2
  %v1044 = vrot.slane %v394, 2
  %v1045 = vsel %vm952, %v1043, %v1044
  %v1046 = vrot.slane %v395, 2
  %v1047 = vsel %vm952, %v1044, %v1046
  %v1048 = vrot.slane %v396, 2
  %v1049 = vrot.slane %v397, 2
  %v1050 = vsel %vm952, %v1048, %v1049
  %v1051 = vrot.slane %v398, 2
  %v1052 = vsel %vm952, %v1049, %v1051
  %v1053 = vrot.slane %v399, 2
  %v1054 = vrot.slane %v400, 2
  %v1055 = vsel %vm952, %v1053, %v1054
  %v1056 = vrot.slane %v401, 2
  %v1057 = vsel %vm952, %v1054, %v1056
  %v1058 = vrot.slane %v402, 2
  %v1059 = vrot.slane %v403, 2
  %v1060 = vsel %vm952, %v1058, %v1059
  %v1061 = vrot.slane %v404, 2
  %v1062 = vsel %vm952, %v1059, %v1061
  %v1063 = vrot.slane %v405, 2
  %v1064 = vrot.slane %v406, 2
  %v1065 = vsel %vm952, %v1063, %v1064
  %v1066 = vrot.slane %v407, 2
  %v1067 = vsel %vm952, %v1064, %v1066
  %v1068 = vrot.slane %v408, 2
  %v1069 = vrot.slane %v409, 2
  %v1070 = vsel %vm952, %v1068, %v1069
  %v1071 = vrot.slane %v410, 2
  %v1072 = vsel %vm952, %v1069, %v1071
  %v1073 = vrot.slane %v411, 2
  %v1074 = vrot.slane %v412, 2
  %v1075 = vsel %vm952, %v1073, %v1074
  %v1076 = vrot.slane %v413, 2
  %v1077 = vsel %vm952, %v1074, %v1076
  %v1078 = vrot.slane %v414, 2
  %v1079 = vrot.slane %v415, 2
  %v1080 = vsel %vm952, %v1078, %v1079
  %v1081 = vrot.slane %v416, 2
  %v1082 = vsel %vm952, %v1079, %v1081
  %v1083 = vrot.slane %v417, 2
  %v1084 = vrot.slane %v418, 2
  %v1085 = vsel %vm952, %v1083, %v1084
  %v1086 = vrot.slane %v419, 2
  %v1087 = vsel %vm952, %v1084, %v1086
  %v1088 = vrot.slane %v420, 2
  %v1089 = vrot.slane %v421, 2
  %v1090 = vsel %vm952, %v1088, %v1089
  %v1091 = vrot.slane %v422, 2
  %v1092 = vsel %vm952, %v1089, %v1091
  %v1093 = vrot.slane %v423, 2
  %v1094 = vrot.slane %v424, 2
  %v1095 = vsel %vm952, %v1093, %v1094
  %v1096 = vrot.slane %v425, 2
  %v1097 = vsel %vm952, %v1094, %v1096
  %v1098 = vrot.slane %v426, 2
  %v1099 = vrot.slane %v427, 2
  %v1100 = vsel %vm952, %v1098, %v1099
  %v1101 = vrot.slane %v428, 2
  %v1102 = vsel %vm952, %v1099, %v1101
  %v1103 = vrot.slane %v429, 2
  %v1104 = vrot.slane %v430, 2
  %v1105 = vsel %vm952, %v1103, %v1104
  %v1106 = vrot.slane %v431, 2
  %v1107 = vsel %vm952, %v1104, %v1106
  %v1108 = vrot.slane %v432, 2
  %v1109 = vrot.slane %v433, 2
  %v1110 = vsel %vm952, %v1108, %v1109
  %v1111 = vrot.slane %v434, 2
  %v1112 = vsel %vm952, %v1109, %v1111
  %v1113 = vrot.slane %v435, 2
  %v1114 = vrot.slane %v436, 2
  %v1115 = vsel %vm952, %v1113, %v1114
  %v1116 = vrot.slane %v437, 2
  %v1117 = vsel %vm952, %v1114, %v1116
  %v1118 = vrot.slane %v438, 2
  %v1119 = vrot.slane %v439, 2
  %v1120 = vsel %vm952, %v1118, %v1119
  %v1121 = vrot.slane %v440, 2
  %v1122 = vsel %vm952, %v1119, %v1121
  %v1123 = vrot.slane %v441, 2
  %v1124 = vrot.slane %v442, 2
  %v1125 = vsel %vm952, %v1123, %v1124
  %v1126 = vrot.slane %v443, 2
  %v1127 = vsel %vm952, %v1124, %v1126
  %v1128 = vrot.slane %v444, 2
  %v1129 = vrot.slane %v445, 2
  %v1130 = vsel %vm952, %v1128, %v1129
  %v1131 = vrot.slane %v446, 2
  %v1132 = vsel %vm952, %v1129, %v1131
  %1133 = vrot.lane.b32.xlu0 %v955, 8
  %v1134 = vpop.permute.xlu0 %1133
  %1135 = vrot.lane.b32.xlu0 %v957, 8
  %v1136 = vpop.permute.xlu0 %1135
  %1137 = vrot.lane.b32.xlu0 %v960, 8
  %v1138 = vpop.permute.xlu0 %1137
  %1139 = vrot.lane.b32.xlu0 %v962, 8
  %v1140 = vpop.permute.xlu0 %1139
  %1141 = vrot.lane.b32.xlu0 %v965, 8
  %v1142 = vpop.permute.xlu0 %1141
  %1143 = vrot.lane.b32.xlu0 %v967, 8
  %v1144 = vpop.permute.xlu0 %1143
  %1145 = vrot.lane.b32.xlu0 %v970, 8
  %v1146 = vpop.permute.xlu0 %1145
  %1147 = vrot.lane.b32.xlu0 %v972, 8
  %v1148 = vpop.permute.xlu0 %1147
  %1149 = vrot.lane.b32.xlu0 %v975, 8
  %v1150 = vpop.permute.xlu0 %1149
  %1151 = vrot.lane.b32.xlu0 %v977, 8
  %v1152 = vpop.permute.xlu0 %1151
  %1153 = vrot.lane.b32.xlu0 %v980, 8
  %v1154 = vpop.permute.xlu0 %1153
  %1155 = vrot.lane.b32.xlu0 %v982, 8
  %v1156 = vpop.permute.xlu0 %1155
  %1157 = vrot.lane.b32.xlu0 %v985, 8
  %v1158 = vpop.permute.xlu0 %1157
  %1159 = vrot.lane.b32.xlu0 %v987, 8
  %v1160 = vpop.permute.xlu0 %1159
  %1161 = vrot.lane.b32.xlu0 %v990, 8
  %v1162 = vpop.permute.xlu0 %1161
  %1163 = vrot.lane.b32.xlu0 %v992, 8
  %v1164 = vpop.permute.xlu0 %1163
  %1165 = vrot.lane.b32.xlu0 %v995, 8
  %v1166 = vpop.permute.xlu0 %1165
  %1167 = vrot.lane.b32.xlu0 %v997, 8
  %v1168 = vpop.permute.xlu0 %1167
  %1169 = vrot.lane.b32.xlu0 %v1000, 8
  %v1170 = vpop.permute.xlu0 %1169
  %1171 = vrot.lane.b32.xlu0 %v1002, 8
  %v1172 = vpop.permute.xlu0 %1171
  %1173 = vrot.lane.b32.xlu0 %v1005, 8
  %v1174 = vpop.permute.xlu0 %1173
  %1175 = vrot.lane.b32.xlu0 %v1007, 8
  %v1176 = vpop.permute.xlu0 %1175
  %1177 = vrot.lane.b32.xlu0 %v1010, 8
  %v1178 = vpop.permute.xlu0 %1177
  %1179 = vrot.lane.b32.xlu0 %v1012, 8
  %v1180 = vpop.permute.xlu0 %1179
  %1181 = vrot.lane.b32.xlu0 %v1015, 8
  %v1182 = vpop.permute.xlu0 %1181
  %1183 = vrot.lane.b32.xlu0 %v1017, 8
  %v1184 = vpop.permute.xlu0 %1183
  %1185 = vrot.lane.b32.xlu0 %v1020, 8
  %v1186 = vpop.permute.xlu0 %1185
  %1187 = vrot.lane.b32.xlu0 %v1022, 8
  %v1188 = vpop.permute.xlu0 %1187
  %1189 = vrot.lane.b32.xlu0 %v1025, 8
  %v1190 = vpop.permute.xlu0 %1189
  %1191 = vrot.lane.b32.xlu0 %v1027, 8
  %v1192 = vpop.permute.xlu0 %1191
  %1193 = vrot.lane.b32.xlu0 %v1030, 8
  %v1194 = vpop.permute.xlu0 %1193
  %1195 = vrot.lane.b32.xlu0 %v1032, 8
  %v1196 = vpop.permute.xlu0 %1195
  %1197 = vrot.lane.b32.xlu0 %v1035, 8
  %v1198 = vpop.permute.xlu0 %1197
  %1199 = vrot.lane.b32.xlu0 %v1037, 8
  %v1200 = vpop.permute.xlu0 %1199
  %1201 = vrot.lane.b32.xlu0 %v1040, 8
  %v1202 = vpop.permute.xlu0 %1201
  %1203 = vrot.lane.b32.xlu0 %v1042, 8
  %v1204 = vpop.permute.xlu0 %1203
  %1205 = vrot.lane.b32.xlu0 %v1045, 8
  %v1206 = vpop.permute.xlu0 %1205
  %1207 = vrot.lane.b32.xlu0 %v1047, 8
  %v1208 = vpop.permute.xlu0 %1207
  %1209 = vrot.lane.b32.xlu0 %v1050, 8
  %v1210 = vpop.permute.xlu0 %1209
  %1211 = vrot.lane.b32.xlu0 %v1052, 8
  %v1212 = vpop.permute.xlu0 %1211
  %1213 = vrot.lane.b32.xlu0 %v1055, 8
  %v1214 = vpop.permute.xlu0 %1213
  %1215 = vrot.lane.b32.xlu0 %v1057, 8
  %v1216 = vpop.permute.xlu0 %1215
  %1217 = vrot.lane.b32.xlu0 %v1060, 8
  %v1218 = vpop.permute.xlu0 %1217
  %1219 = vrot.lane.b32.xlu0 %v1062, 8
  %v1220 = vpop.permute.xlu0 %1219
  %1221 = vrot.lane.b32.xlu0 %v1065, 8
  %v1222 = vpop.permute.xlu0 %1221
  %1223 = vrot.lane.b32.xlu0 %v1067, 8
  %v1224 = vpop.permute.xlu0 %1223
  %1225 = vrot.lane.b32.xlu0 %v1070, 8
  %v1226 = vpop.permute.xlu0 %1225
  %1227 = vrot.lane.b32.xlu0 %v1072, 8
  %v1228 = vpop.permute.xlu0 %1227
  %1229 = vrot.lane.b32.xlu0 %v1075, 8
  %v1230 = vpop.permute.xlu0 %1229
  %1231 = vrot.lane.b32.xlu0 %v1077, 8
  %v1232 = vpop.permute.xlu0 %1231
  %1233 = vrot.lane.b32.xlu0 %v1080, 8
  %v1234 = vpop.permute.xlu0 %1233
  %1235 = vrot.lane.b32.xlu0 %v1082, 8
  %v1236 = vpop.permute.xlu0 %1235
  %1237 = vrot.lane.b32.xlu0 %v1085, 8
  %v1238 = vpop.permute.xlu0 %1237
  %1239 = vrot.lane.b32.xlu0 %v1087, 8
  %v1240 = vpop.permute.xlu0 %1239
  %1241 = vrot.lane.b32.xlu0 %v1090, 8
  %v1242 = vpop.permute.xlu0 %1241
  %1243 = vrot.lane.b32.xlu0 %v1092, 8
  %v1244 = vpop.permute.xlu0 %1243
  %1245 = vrot.lane.b32.xlu0 %v1095, 8
  %v1246 = vpop.permute.xlu0 %1245
  %1247 = vrot.lane.b32.xlu0 %v1097, 8
  %v1248 = vpop.permute.xlu0 %1247
  %1249 = vrot.lane.b32.xlu0 %v1100, 8
  %v1250 = vpop.permute.xlu0 %1249
  %1251 = vrot.lane.b32.xlu0 %v1102, 8
  %v1252 = vpop.permute.xlu0 %1251
  %1253 = vrot.lane.b32.xlu0 %v1105, 8
  %v1254 = vpop.permute.xlu0 %1253
  %1255 = vrot.lane.b32.xlu0 %v1107, 8
  %v1256 = vpop.permute.xlu0 %1255
  %1257 = vrot.lane.b32.xlu0 %v1110, 8
  %v1258 = vpop.permute.xlu0 %1257
  %1259 = vrot.lane.b32.xlu0 %v1112, 8
  %v1260 = vpop.permute.xlu0 %1259
  %1261 = vrot.lane.b32.xlu0 %v1115, 8
  %v1262 = vpop.permute.xlu0 %1261
  %1263 = vrot.lane.b32.xlu0 %v1117, 8
  %v1264 = vpop.permute.xlu0 %1263
  %1265 = vrot.lane.b32.xlu0 %v1120, 8
  %v1266 = vpop.permute.xlu0 %1265
  %1267 = vrot.lane.b32.xlu0 %v1122, 8
  %v1268 = vpop.permute.xlu0 %1267
  %1269 = vrot.lane.b32.xlu0 %v1125, 8
  %v1270 = vpop.permute.xlu0 %1269
  %1271 = vrot.lane.b32.xlu0 %v1127, 8
  %v1272 = vpop.permute.xlu0 %1271
  %1273 = vrot.lane.b32.xlu0 %v1130, 8
  %v1274 = vpop.permute.xlu0 %1273
  %1275 = vrot.lane.b32.xlu0 %v1132, 8
  %v1276 = vpop.permute.xlu0 %1275
  %v1349 = vsel %vm14, %v339, %v737
  %v1350 = vsel %vm14, %v340, %v739
  %v1351 = vsel %vm14, %v342, %v741
  %v1352 = vsel %vm14, %v343, %v743
  %v1353 = vsel %vm14, %v345, %v745
  %v1354 = vsel %vm14, %v346, %v747
  %v1355 = vsel %vm14, %v348, %v749
  %v1356 = vsel %vm14, %v349, %v751
  %v1357 = vsel %vm14, %v351, %v753
  %v1358 = vsel %vm14, %v352, %v755
  %v1359 = vsel %vm14, %v354, %v757
  %v1360 = vsel %vm14, %v355, %v759
  %v1361 = vsel %vm14, %v357, %v761
  %v1362 = vsel %vm14, %v358, %v763
  %v1363 = vsel %vm14, %v360, %v765
  %v1364 = vsel %vm14, %v361, %v767
  %v1365 = vsel %vm14, %v363, %v769
  %v1366 = vsel %vm14, %v364, %v771
  %v1367 = vsel %vm14, %v366, %v773
  %v1368 = vsel %vm14, %v367, %v775
  %v1369 = vsel %vm14, %v369, %v777
  %v1370 = vsel %vm14, %v370, %v779
  %v1371 = vsel %vm14, %v372, %v781
  %v1372 = vsel %vm14, %v373, %v783
  %v1373 = vsel %vm14, %v375, %v785
  %v1374 = vsel %vm14, %v376, %v787
  %v1375 = vsel %vm14, %v378, %v789
  %v1376 = vsel %vm14, %v379, %v791
  %v1377 = vsel %vm14, %v381, %v793
  %v1378 = vsel %vm14, %v382, %v795
  %v1379 = vsel %vm14, %v384, %v797
  %v1380 = vsel %vm14, %v385, %v799
  %v1381 = vsel %vm14, %v387, %v801
  %v1382 = vsel %vm14, %v388, %v803
  %v1383 = vsel %vm14, %v390, %v805
  %v1384 = vsel %vm14, %v391, %v807
  %v1385 = vsel %vm14, %v393, %v809
  %v1386 = vsel %vm14, %v394, %v811
  %v1387 = vsel %vm14, %v396, %v813
  %v1388 = vsel %vm14, %v397, %v815
  %v1389 = vsel %vm14, %v399, %v817
  %v1390 = vsel %vm14, %v400, %v819
  %v1391 = vsel %vm14, %v402, %v821
  %v1392 = vsel %vm14, %v403, %v823
  %v1393 = vsel %vm14, %v405, %v825
  %v1394 = vsel %vm14, %v406, %v827
  %v1395 = vsel %vm14, %v408, %v829
  %v1396 = vsel %vm14, %v409, %v831
  %v1397 = vsel %vm14, %v411, %v833
  %v1398 = vsel %vm14, %v412, %v835
  %v1399 = vsel %vm14, %v414, %v837
  %v1400 = vsel %vm14, %v415, %v839
  %v1401 = vsel %vm14, %v417, %v841
  %v1402 = vsel %vm14, %v418, %v843
  %v1403 = vsel %vm14, %v420, %v845
  %v1404 = vsel %vm14, %v421, %v847
  %v1405 = vsel %vm14, %v423, %v849
  %v1406 = vsel %vm14, %v424, %v851
  %v1407 = vsel %vm14, %v426, %v853
  %v1408 = vsel %vm14, %v427, %v855
  %v1409 = vsel %vm14, %v429, %v857
  %v1410 = vsel %vm14, %v430, %v859
  %v1411 = vsel %vm14, %v432, %v861
  %v1412 = vsel %vm14, %v433, %v863
  %v1413 = vsel %vm14, %v435, %v865
  %v1414 = vsel %vm14, %v436, %v867
  %v1415 = vsel %vm14, %v438, %v869
  %v1416 = vsel %vm14, %v439, %v871
  %v1417 = vsel %vm14, %v441, %v873
  %v1418 = vsel %vm14, %v442, %v875
  %v1419 = vsel %vm14, %v444, %v877
  %v1420 = vsel %vm14, %v445, %v879
  %vm1421 = vcmask 64512
  %v1422 = vsel %vm1421, %v1349, %v1134
  %v1423 = vsel %vm1421, %v1350, %v1136
  %v1424 = vsel %vm1421, %v1351, %v1138
  %v1425 = vsel %vm1421, %v1352, %v1140
  %v1426 = vsel %vm1421, %v1353, %v1142
  %v1427 = vsel %vm1421, %v1354, %v1144
  %v1428 = vsel %vm1421, %v1355, %v1146
  %v1429 = vsel %vm1421, %v1356, %v1148
  %v1430 = vsel %vm1421, %v1357, %v1150
  %v1431 = vsel %vm1421, %v1358, %v1152
  %v1432 = vsel %vm1421, %v1359, %v1154
  %v1433 = vsel %vm1421, %v1360, %v1156
  %v1434 = vsel %vm1421, %v1361, %v1158
  %v1435 = vsel %vm1421, %v1362, %v1160
  %v1436 = vsel %vm1421, %v1363, %v1162
  %v1437 = vsel %vm1421, %v1364, %v1164
  %v1438 = vsel %vm1421, %v1365, %v1166
  %v1439 = vsel %vm1421, %v1366, %v1168
  %v1440 = vsel %vm1421, %v1367, %v1170
  %v1441 = vsel %vm1421, %v1368, %v1172
  %v1442 = vsel %vm1421, %v1369, %v1174
  %v1443 = vsel %vm1421, %v1370, %v1176
  %v1444 = vsel %vm1421, %v1371, %v1178
  %v1445 = vsel %vm1421, %v1372, %v1180
  %v1446 = vsel %vm1421, %v1373, %v1182
  %v1447 = vsel %vm1421, %v1374, %v1184
  %v1448 = vsel %vm1421, %v1375, %v1186
  %v1449 = vsel %vm1421, %v1376, %v1188
  %v1450 = vsel %vm1421, %v1377, %v1190
  %v1451 = vsel %vm1421, %v1378, %v1192
  %v1452 = vsel %vm1421, %v1379, %v1194
  %v1453 = vsel %vm1421, %v1380, %v1196
  %v1454 = vsel %vm1421, %v1381, %v1198
  %v1455 = vsel %vm1421, %v1382, %v1200
  %v1456 = vsel %vm1421, %v1383, %v1202
  %v1457 = vsel %vm1421, %v1384, %v1204
  %v1458 = vsel %vm1421, %v1385, %v1206
  %v1459 = vsel %vm1421, %v1386, %v1208
  %v1460 = vsel %vm1421, %v1387, %v1210
  %v1461 = vsel %vm1421, %v1388, %v1212
  %v1462 = vsel %vm1421, %v1389, %v1214
  %v1463 = vsel %vm1421, %v1390, %v1216
  %v1464 = vsel %vm1421, %v1391, %v1218
  %v1465 = vsel %vm1421, %v1392, %v1220
  %v1466 = vsel %vm1421, %v1393, %v1222
  %v1467 = vsel %vm1421, %v1394, %v1224
  %v1468 = vsel %vm1421, %v1395, %v1226
  %v1469 = vsel %vm1421, %v1396, %v1228
  %v1470 = vsel %vm1421, %v1397, %v1230
  %v1471 = vsel %vm1421, %v1398, %v1232
  %v1472 = vsel %vm1421, %v1399, %v1234
  %v1473 = vsel %vm1421, %v1400, %v1236
  %v1474 = vsel %vm1421, %v1401, %v1238
  %v1475 = vsel %vm1421, %v1402, %v1240
  %v1476 = vsel %vm1421, %v1403, %v1242
  %v1477 = vsel %vm1421, %v1404, %v1244
  %v1478 = vsel %vm1421, %v1405, %v1246
  %v1479 = vsel %vm1421, %v1406, %v1248
  %v1480 = vsel %vm1421, %v1407, %v1250
  %v1481 = vsel %vm1421, %v1408, %v1252
  %v1482 = vsel %vm1421, %v1409, %v1254
  %v1483 = vsel %vm1421, %v1410, %v1256
  %v1484 = vsel %vm1421, %v1411, %v1258
  %v1485 = vsel %vm1421, %v1412, %v1260
  %v1486 = vsel %vm1421, %v1413, %v1262
  %v1487 = vsel %vm1421, %v1414, %v1264
  %v1488 = vsel %vm1421, %v1415, %v1266
  %v1489 = vsel %vm1421, %v1416, %v1268
  %v1490 = vsel %vm1421, %v1417, %v1270
  %v1491 = vsel %vm1421, %v1418, %v1272
  %v1492 = vsel %vm1421, %v1419, %v1274
  %v1493 = vsel %vm1421, %v1420, %v1276
  %1558 = vrot.lane.b32.xlu0 %v1424, 12
  %v1559 = vpop.permute.xlu0 %1558
  %1560 = vrot.lane.b32.xlu0 %v1425, 12
  %v1561 = vpop.permute.xlu0 %1560
  %1562 = vrot.lane.b32.xlu0 %v1426, 12
  %v1563 = vpop.permute.xlu0 %1562
  %1564 = vrot.lane.b32.xlu0 %v1427, 12
  %v1565 = vpop.permute.xlu0 %1564
  %1566 = vrot.lane.b32.xlu0 %v1428, 12
  %v1567 = vpop.permute.xlu0 %1566
  %1568 = vrot.lane.b32.xlu0 %v1429, 12
  %v1569 = vpop.permute.xlu0 %1568
  %1570 = vrot.lane.b32.xlu0 %v1430, 12
  %v1571 = vpop.permute.xlu0 %1570
  %1572 = vrot.lane.b32.xlu0 %v1431, 12
  %v1573 = vpop.permute.xlu0 %1572
  %1574 = vrot.lane.b32.xlu0 %v1432, 12
  %v1575 = vpop.permute.xlu0 %1574
  %1576 = vrot.lane.b32.xlu0 %v1433, 12
  %v1577 = vpop.permute.xlu0 %1576
  %1578 = vrot.lane.b32.xlu0 %v1434, 12
  %v1579 = vpop.permute.xlu0 %1578
  %1580 = vrot.lane.b32.xlu0 %v1435, 12
  %v1581 = vpop.permute.xlu0 %1580
  %1582 = vrot.lane.b32.xlu0 %v1436, 12
  %v1583 = vpop.permute.xlu0 %1582
  %1584 = vrot.lane.b32.xlu0 %v1437, 12
  %v1585 = vpop.permute.xlu0 %1584
  %1586 = vrot.lane.b32.xlu0 %v1438, 12
  %v1587 = vpop.permute.xlu0 %1586
  %1588 = vrot.lane.b32.xlu0 %v1439, 12
  %v1589 = vpop.permute.xlu0 %1588
  %1590 = vrot.lane.b32.xlu0 %v1440, 12
  %v1591 = vpop.permute.xlu0 %1590
  %1592 = vrot.lane.b32.xlu0 %v1441, 12
  %v1593 = vpop.permute.xlu0 %1592
  %1594 = vrot.lane.b32.xlu0 %v1442, 12
  %v1595 = vpop.permute.xlu0 %1594
  %1596 = vrot.lane.b32.xlu0 %v1443, 12
  %v1597 = vpop.permute.xlu0 %1596
  %1598 = vrot.lane.b32.xlu0 %v1444, 12
  %v1599 = vpop.permute.xlu0 %1598
  %1600 = vrot.lane.b32.xlu0 %v1445, 12
  %v1601 = vpop.permute.xlu0 %1600
  %1602 = vrot.lane.b32.xlu0 %v1446, 12
  %v1603 = vpop.permute.xlu0 %1602
  %1604 = vrot.lane.b32.xlu0 %v1447, 12
  %v1605 = vpop.permute.xlu0 %1604
  %1606 = vrot.lane.b32.xlu0 %v1448, 12
  %v1607 = vpop.permute.xlu0 %1606
  %1608 = vrot.lane.b32.xlu0 %v1449, 12
  %v1609 = vpop.permute.xlu0 %1608
  %1610 = vrot.lane.b32.xlu0 %v1450, 12
  %v1611 = vpop.permute.xlu0 %1610
  %1612 = vrot.lane.b32.xlu0 %v1451, 12
  %v1613 = vpop.permute.xlu0 %1612
  %1614 = vrot.lane.b32.xlu0 %v1452, 12
  %v1615 = vpop.permute.xlu0 %1614
  %1616 = vrot.lane.b32.xlu0 %v1453, 12
  %v1617 = vpop.permute.xlu0 %1616
  %1618 = vrot.lane.b32.xlu0 %v1454, 12
  %v1619 = vpop.permute.xlu0 %1618
  %1620 = vrot.lane.b32.xlu0 %v1455, 12
  %v1621 = vpop.permute.xlu0 %1620
  %1622 = vrot.lane.b32.xlu0 %v1460, 12
  %v1623 = vpop.permute.xlu0 %1622
  %1624 = vrot.lane.b32.xlu0 %v1461, 12
  %v1625 = vpop.permute.xlu0 %1624
  %1626 = vrot.lane.b32.xlu0 %v1462, 12
  %v1627 = vpop.permute.xlu0 %1626
  %1628 = vrot.lane.b32.xlu0 %v1463, 12
  %v1629 = vpop.permute.xlu0 %1628
  %1630 = vrot.lane.b32.xlu0 %v1464, 12
  %v1631 = vpop.permute.xlu0 %1630
  %1632 = vrot.lane.b32.xlu0 %v1465, 12
  %v1633 = vpop.permute.xlu0 %1632
  %1634 = vrot.lane.b32.xlu0 %v1466, 12
  %v1635 = vpop.permute.xlu0 %1634
  %1636 = vrot.lane.b32.xlu0 %v1467, 12
  %v1637 = vpop.permute.xlu0 %1636
  %1638 = vrot.lane.b32.xlu0 %v1468, 12
  %v1639 = vpop.permute.xlu0 %1638
  %1640 = vrot.lane.b32.xlu0 %v1469, 12
  %v1641 = vpop.permute.xlu0 %1640
  %1642 = vrot.lane.b32.xlu0 %v1470, 12
  %v1643 = vpop.permute.xlu0 %1642
  %1644 = vrot.lane.b32.xlu0 %v1471, 12
  %v1645 = vpop.permute.xlu0 %1644
  %1646 = vrot.lane.b32.xlu0 %v1472, 12
  %v1647 = vpop.permute.xlu0 %1646
  %1648 = vrot.lane.b32.xlu0 %v1473, 12
  %v1649 = vpop.permute.xlu0 %1648
  %1650 = vrot.lane.b32.xlu0 %v1474, 12
  %v1651 = vpop.permute.xlu0 %1650
  %1652 = vrot.lane.b32.xlu0 %v1475, 12
  %v1653 = vpop.permute.xlu0 %1652
  %1654 = vrot.lane.b32.xlu0 %v1476, 12
  %v1655 = vpop.permute.xlu0 %1654
  %1656 = vrot.lane.b32.xlu0 %v1477, 12
  %v1657 = vpop.permute.xlu0 %1656
  %1658 = vrot.lane.b32.xlu0 %v1478, 12
  %v1659 = vpop.permute.xlu0 %1658
  %1660 = vrot.lane.b32.xlu0 %v1479, 12
  %v1661 = vpop.permute.xlu0 %1660
  %1662 = vrot.lane.b32.xlu0 %v1480, 12
  %v1663 = vpop.permute.xlu0 %1662
  %1664 = vrot.lane.b32.xlu0 %v1481, 12
  %v1665 = vpop.permute.xlu0 %1664
  %1666 = vrot.lane.b32.xlu0 %v1482, 12
  %v1667 = vpop.permute.xlu0 %1666
  %1668 = vrot.lane.b32.xlu0 %v1483, 12
  %v1669 = vpop.permute.xlu0 %1668
  %1670 = vrot.lane.b32.xlu0 %v1484, 12
  %v1671 = vpop.permute.xlu0 %1670
  %1672 = vrot.lane.b32.xlu0 %v1485, 12
  %v1673 = vpop.permute.xlu0 %1672
  %1674 = vrot.lane.b32.xlu0 %v1486, 12
  %v1675 = vpop.permute.xlu0 %1674
  %1676 = vrot.lane.b32.xlu0 %v1487, 12
  %v1677 = vpop.permute.xlu0 %1676
  %1678 = vrot.lane.b32.xlu0 %v1488, 12
  %v1679 = vpop.permute.xlu0 %1678
  %1680 = vrot.lane.b32.xlu0 %v1489, 12
  %v1681 = vpop.permute.xlu0 %1680
  %1682 = vrot.lane.b32.xlu0 %v1490, 12
  %v1683 = vpop.permute.xlu0 %1682
  %1684 = vrot.lane.b32.xlu0 %v1491, 12
  %v1685 = vpop.permute.xlu0 %1684
  %1754 = vrot.lane.b32.xlu0 %v1426, 24
  %v1755 = vpop.permute.xlu0 %1754
  %1756 = vrot.lane.b32.xlu0 %v1427, 24
  %v1757 = vpop.permute.xlu0 %1756
  %1758 = vrot.lane.b32.xlu0 %v1428, 24
  %v1759 = vpop.permute.xlu0 %1758
  %1760 = vrot.lane.b32.xlu0 %v1429, 24
  %v1761 = vpop.permute.xlu0 %1760
  %1762 = vrot.lane.b32.xlu0 %v1430, 24
  %v1763 = vpop.permute.xlu0 %1762
  %1764 = vrot.lane.b32.xlu0 %v1431, 24
  %v1765 = vpop.permute.xlu0 %1764
  %1766 = vrot.lane.b32.xlu0 %v1432, 24
  %v1767 = vpop.permute.xlu0 %1766
  %1768 = vrot.lane.b32.xlu0 %v1433, 24
  %v1769 = vpop.permute.xlu0 %1768
  %1770 = vrot.lane.b32.xlu0 %v1434, 24
  %v1771 = vpop.permute.xlu0 %1770
  %1772 = vrot.lane.b32.xlu0 %v1435, 24
  %v1773 = vpop.permute.xlu0 %1772
  %1774 = vrot.lane.b32.xlu0 %v1436, 24
  %v1775 = vpop.permute.xlu0 %1774
  %1776 = vrot.lane.b32.xlu0 %v1437, 24
  %v1777 = vpop.permute.xlu0 %1776
  %1778 = vrot.lane.b32.xlu0 %v1438, 24
  %v1779 = vpop.permute.xlu0 %1778
  %1780 = vrot.lane.b32.xlu0 %v1439, 24
  %v1781 = vpop.permute.xlu0 %1780
  %1782 = vrot.lane.b32.xlu0 %v1440, 24
  %v1783 = vpop.permute.xlu0 %1782
  %1784 = vrot.lane.b32.xlu0 %v1441, 24
  %v1785 = vpop.permute.xlu0 %1784
  %1786 = vrot.lane.b32.xlu0 %v1442, 24
  %v1787 = vpop.permute.xlu0 %1786
  %1788 = vrot.lane.b32.xlu0 %v1443, 24
  %v1789 = vpop.permute.xlu0 %1788
  %1790 = vrot.lane.b32.xlu0 %v1444, 24
  %v1791 = vpop.permute.xlu0 %1790
  %1792 = vrot.lane.b32.xlu0 %v1445, 24
  %v1793 = vpop.permute.xlu0 %1792
  %1794 = vrot.lane.b32.xlu0 %v1446, 24
  %v1795 = vpop.permute.xlu0 %1794
  %1796 = vrot.lane.b32.xlu0 %v1447, 24
  %v1797 = vpop.permute.xlu0 %1796
  %1798 = vrot.lane.b32.xlu0 %v1448, 24
  %v1799 = vpop.permute.xlu0 %1798
  %1800 = vrot.lane.b32.xlu0 %v1449, 24
  %v1801 = vpop.permute.xlu0 %1800
  %1802 = vrot.lane.b32.xlu0 %v1450, 24
  %v1803 = vpop.permute.xlu0 %1802
  %1804 = vrot.lane.b32.xlu0 %v1451, 24
  %v1805 = vpop.permute.xlu0 %1804
  %1806 = vrot.lane.b32.xlu0 %v1452, 24
  %v1807 = vpop.permute.xlu0 %1806
  %1808 = vrot.lane.b32.xlu0 %v1453, 24
  %v1809 = vpop.permute.xlu0 %1808
  %1810 = vrot.lane.b32.xlu0 %v1454, 24
  %v1811 = vpop.permute.xlu0 %1810
  %1812 = vrot.lane.b32.xlu0 %v1455, 24
  %v1813 = vpop.permute.xlu0 %1812
  %1814 = vrot.lane.b32.xlu0 %v1456, 24
  %v1815 = vpop.permute.xlu0 %1814
  %1816 = vrot.lane.b32.xlu0 %v1457, 24
  %v1817 = vpop.permute.xlu0 %1816
  %1818 = vrot.lane.b32.xlu0 %v1462, 24
  %v1819 = vpop.permute.xlu0 %1818
  %1820 = vrot.lane.b32.xlu0 %v1463, 24
  %v1821 = vpop.permute.xlu0 %1820
  %1822 = vrot.lane.b32.xlu0 %v1464, 24
  %v1823 = vpop.permute.xlu0 %1822
  %1824 = vrot.lane.b32.xlu0 %v1465, 24
  %v1825 = vpop.permute.xlu0 %1824
  %1826 = vrot.lane.b32.xlu0 %v1466, 24
  %v1827 = vpop.permute.xlu0 %1826
  %1828 = vrot.lane.b32.xlu0 %v1467, 24
  %v1829 = vpop.permute.xlu0 %1828
  %1830 = vrot.lane.b32.xlu0 %v1468, 24
  %v1831 = vpop.permute.xlu0 %1830
  %1832 = vrot.lane.b32.xlu0 %v1469, 24
  %v1833 = vpop.permute.xlu0 %1832
  %1834 = vrot.lane.b32.xlu0 %v1470, 24
  %v1835 = vpop.permute.xlu0 %1834
  %1836 = vrot.lane.b32.xlu0 %v1471, 24
  %v1837 = vpop.permute.xlu0 %1836
  %1838 = vrot.lane.b32.xlu0 %v1472, 24
  %v1839 = vpop.permute.xlu0 %1838
  %1840 = vrot.lane.b32.xlu0 %v1473, 24
  %v1841 = vpop.permute.xlu0 %1840
  %1842 = vrot.lane.b32.xlu0 %v1474, 24
  %v1843 = vpop.permute.xlu0 %1842
  %1844 = vrot.lane.b32.xlu0 %v1475, 24
  %v1845 = vpop.permute.xlu0 %1844
  %1846 = vrot.lane.b32.xlu0 %v1476, 24
  %v1847 = vpop.permute.xlu0 %1846
  %1848 = vrot.lane.b32.xlu0 %v1477, 24
  %v1849 = vpop.permute.xlu0 %1848
  %1850 = vrot.lane.b32.xlu0 %v1478, 24
  %v1851 = vpop.permute.xlu0 %1850
  %1852 = vrot.lane.b32.xlu0 %v1479, 24
  %v1853 = vpop.permute.xlu0 %1852
  %1854 = vrot.lane.b32.xlu0 %v1480, 24
  %v1855 = vpop.permute.xlu0 %1854
  %1856 = vrot.lane.b32.xlu0 %v1481, 24
  %v1857 = vpop.permute.xlu0 %1856
  %1858 = vrot.lane.b32.xlu0 %v1482, 24
  %v1859 = vpop.permute.xlu0 %1858
  %1860 = vrot.lane.b32.xlu0 %v1483, 24
  %v1861 = vpop.permute.xlu0 %1860
  %1862 = vrot.lane.b32.xlu0 %v1484, 24
  %v1863 = vpop.permute.xlu0 %1862
  %1864 = vrot.lane.b32.xlu0 %v1485, 24
  %v1865 = vpop.permute.xlu0 %1864
  %1866 = vrot.lane.b32.xlu0 %v1486, 24
  %v1867 = vpop.permute.xlu0 %1866
  %1868 = vrot.lane.b32.xlu0 %v1487, 24
  %v1869 = vpop.permute.xlu0 %1868
  %1870 = vrot.lane.b32.xlu0 %v1488, 24
  %v1871 = vpop.permute.xlu0 %1870
  %1872 = vrot.lane.b32.xlu0 %v1489, 24
  %v1873 = vpop.permute.xlu0 %1872
  %1874 = vrot.lane.b32.xlu0 %v1490, 24
  %v1875 = vpop.permute.xlu0 %1874
  %1876 = vrot.lane.b32.xlu0 %v1491, 24
  %v1877 = vpop.permute.xlu0 %1876
  %1878 = vrot.lane.b32.xlu0 %v1492, 24
  %v1879 = vpop.permute.xlu0 %1878
  %1880 = vrot.lane.b32.xlu0 %v1493, 24
  %v1881 = vpop.permute.xlu0 %1880
  %vm1946 = vcmask 97280
  %v1947 = vsel %vm1946, %v1422, %v1559
  %v1948 = vsel %vm1946, %v1423, %v1561
  %v1949 = vsel %vm1946, %v1424, %v1563
  %v1950 = vsel %vm1946, %v1425, %v1565
  %v1951 = vsel %vm1946, %v1426, %v1567
  %v1952 = vsel %vm1946, %v1427, %v1569
  %v1953 = vsel %vm1946, %v1428, %v1571
  %v1954 = vsel %vm1946, %v1429, %v1573
  %v1955 = vsel %vm1946, %v1430, %v1575
  %v1956 = vsel %vm1946, %v1431, %v1577
  %v1957 = vsel %vm1946, %v1432, %v1579
  %v1958 = vsel %vm1946, %v1433, %v1581
  %v1959 = vsel %vm1946, %v1434, %v1583
  %v1960 = vsel %vm1946, %v1435, %v1585
  %v1961 = vsel %vm1946, %v1436, %v1587
  %v1962 = vsel %vm1946, %v1437, %v1589
  %v1963 = vsel %vm1946, %v1438, %v1591
  %v1964 = vsel %vm1946, %v1439, %v1593
  %v1965 = vsel %vm1946, %v1440, %v1595
  %v1966 = vsel %vm1946, %v1441, %v1597
  %v1967 = vsel %vm1946, %v1442, %v1599
  %v1968 = vsel %vm1946, %v1443, %v1601
  %v1969 = vsel %vm1946, %v1444, %v1603
  %v1970 = vsel %vm1946, %v1445, %v1605
  %v1971 = vsel %vm1946, %v1446, %v1607
  %v1972 = vsel %vm1946, %v1447, %v1609
  %v1973 = vsel %vm1946, %v1448, %v1611
  %v1974 = vsel %vm1946, %v1449, %v1613
  %v1975 = vsel %vm1946, %v1450, %v1615
  %v1976 = vsel %vm1946, %v1451, %v1617
  %v1977 = vsel %vm1946, %v1452, %v1619
  %v1978 = vsel %vm1946, %v1453, %v1621
  %v1979 = vsel %vm1946, %v1458, %v1623
  %v1980 = vsel %vm1946, %v1459, %v1625
  %v1981 = vsel %vm1946, %v1460, %v1627
  %v1982 = vsel %vm1946, %v1461, %v1629
  %v1983 = vsel %vm1946, %v1462, %v1631
  %v1984 = vsel %vm1946, %v1463, %v1633
  %v1985 = vsel %vm1946, %v1464, %v1635
  %v1986 = vsel %vm1946, %v1465, %v1637
  %v1987 = vsel %vm1946, %v1466, %v1639
  %v1988 = vsel %vm1946, %v1467, %v1641
  %v1989 = vsel %vm1946, %v1468, %v1643
  %v1990 = vsel %vm1946, %v1469, %v1645
  %v1991 = vsel %vm1946, %v1470, %v1647
  %v1992 = vsel %vm1946, %v1471, %v1649
  %v1993 = vsel %vm1946, %v1472, %v1651
  %v1994 = vsel %vm1946, %v1473, %v1653
  %v1995 = vsel %vm1946, %v1474, %v1655
  %v1996 = vsel %vm1946, %v1475, %v1657
  %v1997 = vsel %vm1946, %v1476, %v1659
  %v1998 = vsel %vm1946, %v1477, %v1661
  %v1999 = vsel %vm1946, %v1478, %v1663
  %v2000 = vsel %vm1946, %v1479, %v1665
  %v2001 = vsel %vm1946, %v1480, %v1667
  %v2002 = vsel %vm1946, %v1481, %v1669
  %v2003 = vsel %vm1946, %v1482, %v1671
  %v2004 = vsel %vm1946, %v1483, %v1673
  %v2005 = vsel %vm1946, %v1484, %v1675
  %v2006 = vsel %vm1946, %v1485, %v1677
  %v2007 = vsel %vm1946, %v1486, %v1679
  %v2008 = vsel %vm1946, %v1487, %v1681
  %v2009 = vsel %vm1946, %v1488, %v1683
  %v2010 = vsel %vm1946, %v1489, %v1685
  %vm2011 = vcmask 195584
  %v2012 = vsel %vm2011, %v1947, %v1755
  %v2013 = vsel %vm2011, %v1948, %v1757
  %v2014 = vsel %vm2011, %v1949, %v1759
  %v2015 = vsel %vm2011, %v1950, %v1761
  %v2016 = vsel %vm2011, %v1951, %v1763
  %v2017 = vsel %vm2011, %v1952, %v1765
  %v2018 = vsel %vm2011, %v1953, %v1767
  %v2019 = vsel %vm2011, %v1954, %v1769
  %v2020 = vsel %vm2011, %v1955, %v1771
  %v2021 = vsel %vm2011, %v1956, %v1773
  %v2022 = vsel %vm2011, %v1957, %v1775
  %v2023 = vsel %vm2011, %v1958, %v1777
  %v2024 = vsel %vm2011, %v1959, %v1779
  %v2025 = vsel %vm2011, %v1960, %v1781
  %v2026 = vsel %vm2011, %v1961, %v1783
  %v2027 = vsel %vm2011, %v1962, %v1785
  %v2028 = vsel %vm2011, %v1963, %v1787
  %v2029 = vsel %vm2011, %v1964, %v1789
  %v2030 = vsel %vm2011, %v1965, %v1791
  %v2031 = vsel %vm2011, %v1966, %v1793
  %v2032 = vsel %vm2011, %v1967, %v1795
  %v2033 = vsel %vm2011, %v1968, %v1797
  %v2034 = vsel %vm2011, %v1969, %v1799
  %v2035 = vsel %vm2011, %v1970, %v1801
  %v2036 = vsel %vm2011, %v1971, %v1803
  %v2037 = vsel %vm2011, %v1972, %v1805
  %v2038 = vsel %vm2011, %v1973, %v1807
  %v2039 = vsel %vm2011, %v1974, %v1809
  %v2040 = vsel %vm2011, %v1975, %v1811
  %v2041 = vsel %vm2011, %v1976, %v1813
  %v2042 = vsel %vm2011, %v1977, %v1815
  %v2043 = vsel %vm2011, %v1978, %v1817
  %v2044 = vsel %vm2011, %v1979, %v1819
  %v2045 = vsel %vm2011, %v1980, %v1821
  %v2046 = vsel %vm2011, %v1981, %v1823
  %v2047 = vsel %vm2011, %v1982, %v1825
  %v2048 = vsel %vm2011, %v1983, %v1827
  %v2049 = vsel %vm2011, %v1984, %v1829
  %v2050 = vsel %vm2011, %v1985, %v1831
  %v2051 = vsel %vm2011, %v1986, %v1833
  %v2052 = vsel %vm2011, %v1987, %v1835
  %v2053 = vsel %vm2011, %v1988, %v1837
  %v2054 = vsel %vm2011, %v1989, %v1839
  %v2055 = vsel %vm2011, %v1990, %v1841
  %v2056 = vsel %vm2011, %v1991, %v1843
  %v2057 = vsel %vm2011, %v1992, %v1845
  %v2058 = vsel %vm2011, %v1993, %v1847
  %v2059 = vsel %vm2011, %v1994, %v1849
  %v2060 = vsel %vm2011, %v1995, %v1851
  %v2061 = vsel %vm2011, %v1996, %v1853
  %v2062 = vsel %vm2011, %v1997, %v1855
  %v2063 = vsel %vm2011, %v1998, %v1857
  %v2064 = vsel %vm2011, %v1999, %v1859
  %v2065 = vsel %vm2011, %v2000, %v1861
  %v2066 = vsel %vm2011, %v2001, %v1863
  %v2067 = vsel %vm2011, %v2002, %v1865
  %v2068 = vsel %vm2011, %v2003, %v1867
  %v2069 = vsel %vm2011, %v2004, %v1869
  %v2070 = vsel %vm2011, %v2005, %v1871
  %v2071 = vsel %vm2011, %v2006, %v1873
  %v2072 = vsel %vm2011, %v2007, %v1875
  %v2073 = vsel %vm2011, %v2008, %v1877
  %v2074 = vsel %vm2011, %v2009, %v1879
  %v2075 = vsel %vm2011, %v2010, %v1881
  %v2076 = vld [vmem:[%s1] sm:$0xff]
  %v2077 = vld [vmem:[%s1 + $0x8] sm:$0xff]
  %v2078 = vld [vmem:[%s1 + $0x10] sm:$0xff]
  %v2079 = vld [vmem:[%s1 + $0x18] sm:$0xff]
  %v2080 = vld [vmem:[%s1 + $0x20] sm:$0xf]
  %vm2081 = vcmask 293888
  %v2083 = vsel %vm2081, %v2012, 0
  %v2086 = vsel %vm2081, %v2013, 0
  %v2089 = vsel %vm2081, %v2014, 0
  %v2092 = vsel %vm2081, %v2015, 0
  %v2095 = vsel %vm2081, %v2016, 0
  %v2098 = vsel %vm2081, %v2017, 0
  %v2101 = vsel %vm2081, %v2018, 0
  %v2104 = vsel %vm2081, %v2019, 0
  %v2107 = vsel %vm2081, %v2020, 0
  %v2110 = vsel %vm2081, %v2021, 0
  %v2113 = vsel %vm2081, %v2022, 0
  %v2116 = vsel %vm2081, %v2023, 0
  %v2119 = vsel %vm2081, %v2024, 0
  %v2122 = vsel %vm2081, %v2025, 0
  %v2125 = vsel %vm2081, %v2026, 0
  %v2128 = vsel %vm2081, %v2027, 0
  %v2131 = vsel %vm2081, %v2028, 0
  %v2134 = vsel %vm2081, %v2029, 0
  %v2137 = vsel %vm2081, %v2030, 0
  %v2140 = vsel %vm2081, %v2031, 0
  %v2143 = vsel %vm2081, %v2032, 0
  %v2146 = vsel %vm2081, %v2033, 0
  %v2149 = vsel %vm2081, %v2034, 0
  %v2152 = vsel %vm2081, %v2035, 0
  %v2155 = vsel %vm2081, %v2036, 0
  %v2158 = vsel %vm2081, %v2037, 0
  %v2161 = vsel %vm2081, %v2038, 0
  %v2164 = vsel %vm2081, %v2039, 0
  %v2167 = vsel %vm2081, %v2040, 0
  %v2170 = vsel %vm2081, %v2041, 0
  %v2173 = vsel %vm2081, %v2042, 0
  %v2176 = vsel %vm2081, %v2043, 0
  %v2179 = vsel %vm2081, %v2044, 0
  %v2182 = vsel %vm2081, %v2045, 0
  %v2185 = vsel %vm2081, %v2046, 0
  %v2188 = vsel %vm2081, %v2047, 0
  %v2191 = vsel %vm2081, %v2048, 0
  %v2194 = vsel %vm2081, %v2049, 0
  %v2197 = vsel %vm2081, %v2050, 0
  %v2200 = vsel %vm2081, %v2051, 0
  %v2203 = vsel %vm2081, %v2052, 0
  %v2206 = vsel %vm2081, %v2053, 0
  %v2209 = vsel %vm2081, %v2054, 0
  %v2212 = vsel %vm2081, %v2055, 0
  %v2215 = vsel %vm2081, %v2056, 0
  %v2218 = vsel %vm2081, %v2057, 0
  %v2221 = vsel %vm2081, %v2058, 0
  %v2224 = vsel %vm2081, %v2059, 0
  %v2227 = vsel %vm2081, %v2060, 0
  %v2230 = vsel %vm2081, %v2061, 0
  %v2233 = vsel %vm2081, %v2062, 0
  %v2236 = vsel %vm2081, %v2063, 0
  %v2239 = vsel %vm2081, %v2064, 0
  %v2242 = vsel %vm2081, %v2065, 0
  %v2245 = vsel %vm2081, %v2066, 0
  %v2248 = vsel %vm2081, %v2067, 0
  %v2251 = vsel %vm2081, %v2068, 0
  %v2254 = vsel %vm2081, %v2069, 0
  %v2257 = vsel %vm2081, %v2070, 0
  %v2260 = vsel %vm2081, %v2071, 0
  %v2263 = vsel %vm2081, %v2072, 0
  %v2266 = vsel %vm2081, %v2073, 0
  %v2269 = vsel %vm2081, %v2074, 0
  %v2272 = vsel %vm2081, %v2075, 0
  %vm2274 = vcmask 1043456
  %v2276 = vsel %vm2274, %v2080, 0
  %2278 = vmatprep.subr.mxu0 0.0
  %2279 = vmatpush1.msra.mxu0 %v2076
  %2280 = vmatprep.subr.mxu0 0.0
  %2281 = vmatpush1.msra.mxu0 %v2077
  %2282 = vmatprep.subr.mxu0 0.0
  %2283 = vmatpush1.msra.mxu0 %v2078
  %2284 = vmatprep.subr.mxu0 0.0
  %2285 = vmatpush1.msra.mxu0 %v2079
  %2286 = vmatprep.subr.mxu0 0.0
  %2287 = vmatpush1.msra.mxu0 %v2276
  %2288 = vmatprep.subr.mxu0 0.0
  %2289 = vmatpush1.msra.mxu0 0.0
  %2290 = vmatprep.subr.mxu0 0.0
  %2291 = vmatpush1.msra.mxu0 0.0
  %2292 = vmatprep.subr.mxu0 0.0
  %2293 = vmatpush1.msra.mxu0 0.0
  %2294 = vmatprep.subr.mxu0 0.0
  %2295 = vmatpush1.msra.mxu0 0.0
  %2296 = vmatprep.subr.mxu0 0.0
  %2297 = vmatpush1.msra.mxu0 0.0
  %2298 = vmatprep.subr.mxu0 0.0
  %2299 = vmatpush1.msra.mxu0 0.0
  %2300 = vmatprep.subr.mxu0 0.0
  %2301 = vmatpush1.msra.mxu0 0.0
  %2302 = vmatprep.subr.mxu0 0.0
  %2303 = vmatpush1.msra.mxu0 0.0
  %2304 = vmatprep.subr.mxu0 0.0
  %2305 = vmatpush1.msra.mxu0 0.0
  %2306 = vmatprep.subr.mxu0 0.0
  %2307 = vmatpush1.msra.mxu0 0.0
  %2308 = vmatprep.subr.mxu0 0.0
  %2309 = vmatpush1.msra.mxu0 0.0
  %2310 = vmatprep.subr.mxu0 0.0
  %2311 = vmatpush1.msra.mxu0 0.0
  %2312 = vmatprep.subr.mxu0 0.0
  %2313 = vmatpush1.msra.mxu0 0.0
  %2314 = vmatprep.subr.mxu0 0.0
  %2315 = vmatpush1.msra.mxu0 0.0
  %2316 = vmatprep.subr.mxu0 0.0
  %2317 = vmatpush1.msra.mxu0 0.0
  %2318 = vmatprep.subr.mxu0 0.0
  %2319 = vmatpush1.msra.mxu0 0.0
  %2320 = vmatprep.subr.mxu0 0.0
  %2321 = vmatpush1.msra.mxu0 0.0
  %2322 = vmatprep.subr.mxu0 0.0
  %2323 = vmatpush1.msra.mxu0 0.0
  %2324 = vmatprep.subr.mxu0 0.0
  %2325 = vmatpush1.msra.mxu0 0.0
  %2326 = vmatprep.subr.mxu0 0.0
  %2327 = vmatpush1.msra.mxu0 0.0
  %2328 = vmatprep.subr.mxu0 0.0
  %2329 = vmatpush1.msra.mxu0 0.0
  %2330 = vmatprep.subr.mxu0 0.0
  %2331 = vmatpush1.msra.mxu0 0.0
  %2332 = vmatprep.subr.mxu0 0.0
  %2333 = vmatpush1.msra.mxu0 0.0
  %2334 = vmatprep.subr.mxu0 0.0
  %2335 = vmatpush1.msra.mxu0 0.0
  %2336 = vmatprep.subr.mxu0 0.0
  %2337 = vmatpush1.msra.mxu0 0.0
  %2338 = vmatprep.subr.mxu0 0.0
  %2339 = vmatpush1.msra.mxu0 0.0
  %2340 = vmatprep.subr.mxu0 0.0
  %2341 = vmatpush1.msra.mxu0 0.0
  %2342 = vmatprep.mubr.f32.mxu0 0.0
  %2343 = vmatmul.mubr.f32.gmra.mrb[0].mxu0 %v2083
  %v2344 = vpop.f32.mrb[0].mxu0
  %v2345 = vadd.f32 0.0, %v2344
  %v2346 = vpop.f32.mrb[0].mxu0
  %2347 = vmatprep.mubr.f32.mxu0 0.0
  %2348 = vmatmul.mubr.f32.gmra.mrb[0].mxu0 %v2086
  %v2349 = vpop.f32.mrb[0].mxu0
  %v2350 = vadd.f32 0.0, %v2349
  %v2351 = vpop.f32.mrb[0].mxu0
  %2352 = vmatprep.mubr.f32.mxu0 0.0
  %2353 = vmatmul.mubr.f32.gmra.mrb[0].mxu0 %v2089
  %v2354 = vpop.f32.mrb[0].mxu0
  %v2355 = vadd.f32 0.0, %v2354
  %v2356 = vpop.f32.mrb[0].mxu0
  %2357 = vmatprep.mubr.f32.mxu0 0.0
  %2358 = vmatmul.mubr.f32.gmra.mrb[0].mxu0 %v2092
  %v2359 = vpop.f32.mrb[0].mxu0
  %v2360 = vadd.f32 0.0, %v2359
  %v2361 = vpop.f32.mrb[0].mxu0
  %2362 = vmatprep.mubr.f32.mxu0 0.0
  %2363 = vmatmul.mubr.f32.gmra.mrb[0].mxu0 %v2095
  %v2364 = vpop.f32.mrb[0].mxu0
  %v2365 = vadd.f32 0.0, %v2364
  %v2366 = vpop.f32.mrb[0].mxu0
  %2367 = vmatprep.mubr.f32.mxu0 0.0
  %2368 = vmatmul.mubr.f32.gmra.mrb[0].mxu0 %v2098
  %v2369 = vpop.f32.mrb[0].mxu0
  %v2370 = vadd.f32 0.0, %v2369
  %v2371 = vpop.f32.mrb[0].mxu0
  %2372 = vmatprep.mubr.f32.mxu0 0.0
  %2373 = vmatmul.mubr.f32.gmra.mrb[0].mxu0 %v2101
  %v2374 = vpop.f32.mrb[0].mxu0
  %v2375 = vadd.f32 0.0, %v2374
  %v2376 = vpop.f32.mrb[0].mxu0
  %2377 = vmatprep.mubr.f32.mxu0 0.0
  %2378 = vmatmul.mubr.f32.gmra.mrb[0].mxu0 %v2104
  %v2379 = vpop.f32.mrb[0].mxu0
  %v2380 = vadd.f32 0.0, %v2379
  %v2381 = vpop.f32.mrb[0].mxu0
  %2382 = vmatprep.mubr.f32.mxu0 0.0
  %2383 = vmatmul.mubr.f32.gmra.mrb[0].mxu0 %v2107
  %v2384 = vpop.f32.mrb[0].mxu0
  %v2385 = vadd.f32 0.0, %v2384
  %v2386 = vpop.f32.mrb[0].mxu0
  %2387 = vmatprep.mubr.f32.mxu0 0.0
  %2388 = vmatmul.mubr.f32.gmra.mrb[0].mxu0 %v2110
  %v2389 = vpop.f32.mrb[0].mxu0
  %v2390 = vadd.f32 0.0, %v2389
  %v2391 = vpop.f32.mrb[0].mxu0
  %2392 = vmatprep.mubr.f32.mxu0 0.0
  %2393 = vmatmul.mubr.f32.gmra.mrb[0].mxu0 %v2113
  %v2394 = vpop.f32.mrb[0].mxu0
  %v2395 = vadd.f32 0.0, %v2394
  %v2396 = vpop.f32.mrb[0].mxu0
  %2397 = vmatprep.mubr.f32.mxu0 0.0
  %2398 = vmatmul.mubr.f32.gmra.mrb[0].mxu0 %v2116
  %v2399 = vpop.f32.mrb[0].mxu0
  %v2400 = vadd.f32 0.0, %v2399
  %v2401 = vpop.f32.mrb[0].mxu0
  %2402 = vmatprep.mubr.f32.mxu0 0.0
  %2403 = vmatmul.mubr.f32.gmra.mrb[0].mxu0 %v2119
  %v2404 = vpop.f32.mrb[0].mxu0
  %v2405 = vadd.f32 0.0, %v2404
  %v2406 = vpop.f32.mrb[0].mxu0
  %2407 = vmatprep.mubr.f32.mxu0 0.0
  %2408 = vmatmul.mubr.f32.gmra.mrb[0].mxu0 %v2122
  %v2409 = vpop.f32.mrb[0].mxu0
  %v2410 = vadd.f32 0.0, %v2409
  %v2411 = vpop.f32.mrb[0].mxu0
  %2412 = vmatprep.mubr.f32.mxu0 0.0
  %2413 = vmatmul.mubr.f32.gmra.mrb[0].mxu0 %v2125
  %v2414 = vpop.f32.mrb[0].mxu0
  %v2415 = vadd.f32 0.0, %v2414
  %v2416 = vpop.f32.mrb[0].mxu0
  %2417 = vmatprep.mubr.f32.mxu0 0.0
  %2418 = vmatmul.mubr.f32.gmra.mrb[0].mxu0 %v2128
  %v2419 = vpop.f32.mrb[0].mxu0
  %v2420 = vadd.f32 0.0, %v2419
  %v2421 = vpop.f32.mrb[0].mxu0
  %2422 = vmatprep.mubr.f32.mxu0 0.0
  %2423 = vmatmul.mubr.f32.gmra.mrb[0].mxu0 %v2131
  %v2424 = vpop.f32.mrb[0].mxu0
  %v2425 = vadd.f32 0.0, %v2424
  %v2426 = vpop.f32.mrb[0].mxu0
  %2427 = vmatprep.mubr.f32.mxu0 0.0
  %2428 = vmatmul.mubr.f32.gmra.mrb[0].mxu0 %v2134
  %v2429 = vpop.f32.mrb[0].mxu0
  %v2430 = vadd.f32 0.0, %v2429
  %v2431 = vpop.f32.mrb[0].mxu0
  %2432 = vmatprep.mubr.f32.mxu0 0.0
  %2433 = vmatmul.mubr.f32.gmra.mrb[0].mxu0 %v2137
  %v2434 = vpop.f32.mrb[0].mxu0
  %v2435 = vadd.f32 0.0, %v2434
  %v2436 = vpop.f32.mrb[0].mxu0
  %2437 = vmatprep.mubr.f32.mxu0 0.0
  %2438 = vmatmul.mubr.f32.gmra.mrb[0].mxu0 %v2140
  %v2439 = vpop.f32.mrb[0].mxu0
  %v2440 = vadd.f32 0.0, %v2439
  %v2441 = vpop.f32.mrb[0].mxu0
  %2442 = vmatprep.mubr.f32.mxu0 0.0
  %2443 = vmatmul.mubr.f32.gmra.mrb[0].mxu0 %v2143
  %v2444 = vpop.f32.mrb[0].mxu0
  %v2445 = vadd.f32 0.0, %v2444
  %v2446 = vpop.f32.mrb[0].mxu0
  %2447 = vmatprep.mubr.f32.mxu0 0.0
  %2448 = vmatmul.mubr.f32.gmra.mrb[0].mxu0 %v2146
  %v2449 = vpop.f32.mrb[0].mxu0
  %v2450 = vadd.f32 0.0, %v2449
  %v2451 = vpop.f32.mrb[0].mxu0
  %2452 = vmatprep.mubr.f32.mxu0 0.0
  %2453 = vmatmul.mubr.f32.gmra.mrb[0].mxu0 %v2149
  %v2454 = vpop.f32.mrb[0].mxu0
  %v2455 = vadd.f32 0.0, %v2454
  %v2456 = vpop.f32.mrb[0].mxu0
  %2457 = vmatprep.mubr.f32.mxu0 0.0
  %2458 = vmatmul.mubr.f32.gmra.mrb[0].mxu0 %v2152
  %v2459 = vpop.f32.mrb[0].mxu0
  %v2460 = vadd.f32 0.0, %v2459
  %v2461 = vpop.f32.mrb[0].mxu0
  %2462 = vmatprep.mubr.f32.mxu0 0.0
  %2463 = vmatmul.mubr.f32.gmra.mrb[0].mxu0 %v2155
  %v2464 = vpop.f32.mrb[0].mxu0
  %v2465 = vadd.f32 0.0, %v2464
  %v2466 = vpop.f32.mrb[0].mxu0
  %2467 = vmatprep.mubr.f32.mxu0 0.0
  %2468 = vmatmul.mubr.f32.gmra.mrb[0].mxu0 %v2158
  %v2469 = vpop.f32.mrb[0].mxu0
  %v2470 = vadd.f32 0.0, %v2469
  %v2471 = vpop.f32.mrb[0].mxu0
  %2472 = vmatprep.mubr.f32.mxu0 0.0
  %2473 = vmatmul.mubr.f32.gmra.mrb[0].mxu0 %v2161
  %v2474 = vpop.f32.mrb[0].mxu0
  %v2475 = vadd.f32 0.0, %v2474
  %v2476 = vpop.f32.mrb[0].mxu0
  %2477 = vmatprep.mubr.f32.mxu0 0.0
  %2478 = vmatmul.mubr.f32.gmra.mrb[0].mxu0 %v2164
  %v2479 = vpop.f32.mrb[0].mxu0
  %v2480 = vadd.f32 0.0, %v2479
  %v2481 = vpop.f32.mrb[0].mxu0
  %2482 = vmatprep.mubr.f32.mxu0 0.0
  %2483 = vmatmul.mubr.f32.gmra.mrb[0].mxu0 %v2167
  %v2484 = vpop.f32.mrb[0].mxu0
  %v2485 = vadd.f32 0.0, %v2484
  %v2486 = vpop.f32.mrb[0].mxu0
  %2487 = vmatprep.mubr.f32.mxu0 0.0
  %2488 = vmatmul.mubr.f32.gmra.mrb[0].mxu0 %v2170
  %v2489 = vpop.f32.mrb[0].mxu0
  %v2490 = vadd.f32 0.0, %v2489
  %v2491 = vpop.f32.mrb[0].mxu0
  %2492 = vmatprep.mubr.f32.mxu0 0.0
  %2493 = vmatmul.mubr.f32.gmra.mrb[0].mxu0 %v2173
  %v2494 = vpop.f32.mrb[0].mxu0
  %v2495 = vadd.f32 0.0, %v2494
  %v2496 = vpop.f32.mrb[0].mxu0
  %2497 = vmatprep.mubr.f32.mxu0 0.0
  %2498 = vmatmul.mubr.f32.gmra.mrb[0].mxu0 %v2176
  %v2499 = vpop.f32.mrb[0].mxu0
  %v2500 = vadd.f32 0.0, %v2499
  %v2501 = vpop.f32.mrb[0].mxu0
  %2502 = vmatprep.mubr.f32.mxu0 0.0
  %2503 = vmatmul.mubr.f32.gmra.mrb[0].mxu0 %v2179
  %v2504 = vpop.f32.mrb[0].mxu0
  %v2505 = vadd.f32 0.0, %v2504
  %v2506 = vpop.f32.mrb[0].mxu0
  %2507 = vmatprep.mubr.f32.mxu0 0.0
  %2508 = vmatmul.mubr.f32.gmra.mrb[0].mxu0 %v2182
  %v2509 = vpop.f32.mrb[0].mxu0
  %v2510 = vadd.f32 0.0, %v2509
  %v2511 = vpop.f32.mrb[0].mxu0
  %2512 = vmatprep.mubr.f32.mxu0 0.0
  %2513 = vmatmul.mubr.f32.gmra.mrb[0].mxu0 %v2185
  %v2514 = vpop.f32.mrb[0].mxu0
  %v2515 = vadd.f32 0.0, %v2514
  %v2516 = vpop.f32.mrb[0].mxu0
  %2517 = vmatprep.mubr.f32.mxu0 0.0
  %2518 = vmatmul.mubr.f32.gmra.mrb[0].mxu0 %v2188
  %v2519 = vpop.f32.mrb[0].mxu0
  %v2520 = vadd.f32 0.0, %v2519
  %v2521 = vpop.f32.mrb[0].mxu0
  %2522 = vmatprep.mubr.f32.mxu0 0.0
  %2523 = vmatmul.mubr.f32.gmra.mrb[0].mxu0 %v2191
  %v2524 = vpop.f32.mrb[0].mxu0
  %v2525 = vadd.f32 0.0, %v2524
  %v2526 = vpop.f32.mrb[0].mxu0
  %2527 = vmatprep.mubr.f32.mxu0 0.0
  %2528 = vmatmul.mubr.f32.gmra.mrb[0].mxu0 %v2194
  %v2529 = vpop.f32.mrb[0].mxu0
  %v2530 = vadd.f32 0.0, %v2529
  %v2531 = vpop.f32.mrb[0].mxu0
  %2532 = vmatprep.mubr.f32.mxu0 0.0
  %2533 = vmatmul.mubr.f32.gmra.mrb[0].mxu0 %v2197
  %v2534 = vpop.f32.mrb[0].mxu0
  %v2535 = vadd.f32 0.0, %v2534
  %v2536 = vpop.f32.mrb[0].mxu0
  %2537 = vmatprep.mubr.f32.mxu0 0.0
  %2538 = vmatmul.mubr.f32.gmra.mrb[0].mxu0 %v2200
  %v2539 = vpop.f32.mrb[0].mxu0
  %v2540 = vadd.f32 0.0, %v2539
  %v2541 = vpop.f32.mrb[0].mxu0
  %2542 = vmatprep.mubr.f32.mxu0 0.0
  %2543 = vmatmul.mubr.f32.gmra.mrb[0].mxu0 %v2203
  %v2544 = vpop.f32.mrb[0].mxu0
  %v2545 = vadd.f32 0.0, %v2544
  %v2546 = vpop.f32.mrb[0].mxu0
  %2547 = vmatprep.mubr.f32.mxu0 0.0
  %2548 = vmatmul.mubr.f32.gmra.mrb[0].mxu0 %v2206
  %v2549 = vpop.f32.mrb[0].mxu0
  %v2550 = vadd.f32 0.0, %v2549
  %v2551 = vpop.f32.mrb[0].mxu0
  %2552 = vmatprep.mubr.f32.mxu0 0.0
  %2553 = vmatmul.mubr.f32.gmra.mrb[0].mxu0 %v2209
  %v2554 = vpop.f32.mrb[0].mxu0
  %v2555 = vadd.f32 0.0, %v2554
  %v2556 = vpop.f32.mrb[0].mxu0
  %2557 = vmatprep.mubr.f32.mxu0 0.0
  %2558 = vmatmul.mubr.f32.gmra.mrb[0].mxu0 %v2212
  %v2559 = vpop.f32.mrb[0].mxu0
  %v2560 = vadd.f32 0.0, %v2559
  %v2561 = vpop.f32.mrb[0].mxu0
  %2562 = vmatprep.mubr.f32.mxu0 0.0
  %2563 = vmatmul.mubr.f32.gmra.mrb[0].mxu0 %v2215
  %v2564 = vpop.f32.mrb[0].mxu0
  %v2565 = vadd.f32 0.0, %v2564
  %v2566 = vpop.f32.mrb[0].mxu0
  %2567 = vmatprep.mubr.f32.mxu0 0.0
  %2568 = vmatmul.mubr.f32.gmra.mrb[0].mxu0 %v2218
  %v2569 = vpop.f32.mrb[0].mxu0
  %v2570 = vadd.f32 0.0, %v2569
  %v2571 = vpop.f32.mrb[0].mxu0
  %2572 = vmatprep.mubr.f32.mxu0 0.0
  %2573 = vmatmul.mubr.f32.gmra.mrb[0].mxu0 %v2221
  %v2574 = vpop.f32.mrb[0].mxu0
  %v2575 = vadd.f32 0.0, %v2574
  %v2576 = vpop.f32.mrb[0].mxu0
  %2577 = vmatprep.mubr.f32.mxu0 0.0
  %2578 = vmatmul.mubr.f32.gmra.mrb[0].mxu0 %v2224
  %v2579 = vpop.f32.mrb[0].mxu0
  %v2580 = vadd.f32 0.0, %v2579
  %v2581 = vpop.f32.mrb[0].mxu0
  %2582 = vmatprep.mubr.f32.mxu0 0.0
  %2583 = vmatmul.mubr.f32.gmra.mrb[0].mxu0 %v2227
  %v2584 = vpop.f32.mrb[0].mxu0
  %v2585 = vadd.f32 0.0, %v2584
  %v2586 = vpop.f32.mrb[0].mxu0
  %2587 = vmatprep.mubr.f32.mxu0 0.0
  %2588 = vmatmul.mubr.f32.gmra.mrb[0].mxu0 %v2230
  %v2589 = vpop.f32.mrb[0].mxu0
  %v2590 = vadd.f32 0.0, %v2589
  %v2591 = vpop.f32.mrb[0].mxu0
  %2592 = vmatprep.mubr.f32.mxu0 0.0
  %2593 = vmatmul.mubr.f32.gmra.mrb[0].mxu0 %v2233
  %v2594 = vpop.f32.mrb[0].mxu0
  %v2595 = vadd.f32 0.0, %v2594
  %v2596 = vpop.f32.mrb[0].mxu0
  %2597 = vmatprep.mubr.f32.mxu0 0.0
  %2598 = vmatmul.mubr.f32.gmra.mrb[0].mxu0 %v2236
  %v2599 = vpop.f32.mrb[0].mxu0
  %v2600 = vadd.f32 0.0, %v2599
  %v2601 = vpop.f32.mrb[0].mxu0
  %2602 = vmatprep.mubr.f32.mxu0 0.0
  %2603 = vmatmul.mubr.f32.gmra.mrb[0].mxu0 %v2239
  %v2604 = vpop.f32.mrb[0].mxu0
  %v2605 = vadd.f32 0.0, %v2604
  %v2606 = vpop.f32.mrb[0].mxu0
  %2607 = vmatprep.mubr.f32.mxu0 0.0
  %2608 = vmatmul.mubr.f32.gmra.mrb[0].mxu0 %v2242
  %v2609 = vpop.f32.mrb[0].mxu0
  %v2610 = vadd.f32 0.0, %v2609
  %v2611 = vpop.f32.mrb[0].mxu0
  %2612 = vmatprep.mubr.f32.mxu0 0.0
  %2613 = vmatmul.mubr.f32.gmra.mrb[0].mxu0 %v2245
  %v2614 = vpop.f32.mrb[0].mxu0
  %v2615 = vadd.f32 0.0, %v2614
  %v2616 = vpop.f32.mrb[0].mxu0
  %2617 = vmatprep.mubr.f32.mxu0 0.0
  %2618 = vmatmul.mubr.f32.gmra.mrb[0].mxu0 %v2248
  %v2619 = vpop.f32.mrb[0].mxu0
  %v2620 = vadd.f32 0.0, %v2619
  %v2621 = vpop.f32.mrb[0].mxu0
  %2622 = vmatprep.mubr.f32.mxu0 0.0
  %2623 = vmatmul.mubr.f32.gmra.mrb[0].mxu0 %v2251
  %v2624 = vpop.f32.mrb[0].mxu0
  %v2625 = vadd.f32 0.0, %v2624
  %v2626 = vpop.f32.mrb[0].mxu0
  %2627 = vmatprep.mubr.f32.mxu0 0.0
  %2628 = vmatmul.mubr.f32.gmra.mrb[0].mxu0 %v2254
  %v2629 = vpop.f32.mrb[0].mxu0
  %v2630 = vadd.f32 0.0, %v2629
  %v2631 = vpop.f32.mrb[0].mxu0
  %2632 = vmatprep.mubr.f32.mxu0 0.0
  %2633 = vmatmul.mubr.f32.gmra.mrb[0].mxu0 %v2257
  %v2634 = vpop.f32.mrb[0].mxu0
  %v2635 = vadd.f32 0.0, %v2634
  %v2636 = vpop.f32.mrb[0].mxu0
  %2637 = vmatprep.mubr.f32.mxu0 0.0
  %2638 = vmatmul.mubr.f32.gmra.mrb[0].mxu0 %v2260
  %v2639 = vpop.f32.mrb[0].mxu0
  %v2640 = vadd.f32 0.0, %v2639
  %v2641 = vpop.f32.mrb[0].mxu0
  %2642 = vmatprep.mubr.f32.mxu0 0.0
  %2643 = vmatmul.mubr.f32.gmra.mrb[0].mxu0 %v2263
  %v2644 = vpop.f32.mrb[0].mxu0
  %v2645 = vadd.f32 0.0, %v2644
  %v2646 = vpop.f32.mrb[0].mxu0
  %2647 = vmatprep.mubr.f32.mxu0 0.0
  %2648 = vmatmul.mubr.f32.gmra.mrb[0].mxu0 %v2266
  %v2649 = vpop.f32.mrb[0].mxu0
  %v2650 = vadd.f32 0.0, %v2649
  %v2651 = vpop.f32.mrb[0].mxu0
  %2652 = vmatprep.mubr.f32.mxu0 0.0
  %2653 = vmatmul.mubr.f32.gmra.mrb[0].mxu0 %v2269
  %v2654 = vpop.f32.mrb[0].mxu0
  %v2655 = vadd.f32 0.0, %v2654
  %v2656 = vpop.f32.mrb[0].mxu0
  %2657 = vmatprep.mubr.f32.mxu0 0.0
  %2658 = vmatmul.mubr.f32.gmra.mrb[0].mxu0 %v2272
  %v2659 = vpop.f32.mrb[0].mxu0
  %v2660 = vadd.f32 0.0, %v2659
  %v2661 = vpop.f32.mrb[0].mxu0
  %2662 = vdwg.mxu0
  %v2663 = vmax.f32 %v2345, 0.0
  %v2664 = vmax.f32 %v2350, 0.0
  %v2665 = vmax.f32 %v2355, 0.0
  %v2666 = vmax.f32 %v2360, 0.0
  %v2667 = vmax.f32 %v2365, 0.0
  %v2668 = vmax.f32 %v2370, 0.0
  %v2669 = vmax.f32 %v2375, 0.0
  %v2670 = vmax.f32 %v2380, 0.0
  %v2671 = vmax.f32 %v2385, 0.0
  %v2672 = vmax.f32 %v2390, 0.0
  %v2673 = vmax.f32 %v2395, 0.0
  %v2674 = vmax.f32 %v2400, 0.0
  %v2675 = vmax.f32 %v2405, 0.0
  %v2676 = vmax.f32 %v2410, 0.0
  %v2677 = vmax.f32 %v2415, 0.0
  %v2678 = vmax.f32 %v2420, 0.0
  %v2679 = vmax.f32 %v2425, 0.0
  %v2680 = vmax.f32 %v2430, 0.0
  %v2681 = vmax.f32 %v2435, 0.0
  %v2682 = vmax.f32 %v2440, 0.0
  %v2683 = vmax.f32 %v2445, 0.0
  %v2684 = vmax.f32 %v2450, 0.0
  %v2685 = vmax.f32 %v2455, 0.0
  %v2686 = vmax.f32 %v2460, 0.0
  %v2687 = vmax.f32 %v2465, 0.0
  %v2688 = vmax.f32 %v2470, 0.0
  %v2689 = vmax.f32 %v2475, 0.0
  %v2690 = vmax.f32 %v2480, 0.0
  %v2691 = vmax.f32 %v2485, 0.0
  %v2692 = vmax.f32 %v2490, 0.0
  %v2693 = vmax.f32 %v2495, 0.0
  %v2694 = vmax.f32 %v2500, 0.0
  %v2695 = vmax.f32 %v2505, 0.0
  %v2696 = vmax.f32 %v2510, 0.0
  %v2697 = vmax.f32 %v2515, 0.0
  %v2698 = vmax.f32 %v2520, 0.0
  %v2699 = vmax.f32 %v2525, 0.0
  %v2700 = vmax.f32 %v2530, 0.0
  %v2701 = vmax.f32 %v2535, 0.0
  %v2702 = vmax.f32 %v2540, 0.0
  %v2703 = vmax.f32 %v2545, 0.0
  %v2704 = vmax.f32 %v2550, 0.0
  %v2705 = vmax.f32 %v2555, 0.0
  %v2706 = vmax.f32 %v2560, 0.0
  %v2707 = vmax.f32 %v2565, 0.0
  %v2708 = vmax.f32 %v2570, 0.0
  %v2709 = vmax.f32 %v2575, 0.0
  %v2710 = vmax.f32 %v2580, 0.0
  %v2711 = vmax.f32 %v2585, 0.0
  %v2712 = vmax.f32 %v2590, 0.0
  %v2713 = vmax.f32 %v2595, 0.0
  %v2714 = vmax.f32 %v2600, 0.0
  %v2715 = vmax.f32 %v2605, 0.0
  %v2716 = vmax.f32 %v2610, 0.0
  %v2717 = vmax.f32 %v2615, 0.0
  %v2718 = vmax.f32 %v2620, 0.0
  %v2719 = vmax.f32 %v2625, 0.0
  %v2720 = vmax.f32 %v2630, 0.0
  %v2721 = vmax.f32 %v2635, 0.0
  %v2722 = vmax.f32 %v2640, 0.0
  %v2723 = vmax.f32 %v2645, 0.0
  %v2724 = vmax.f32 %v2650, 0.0
  %v2725 = vmax.f32 %v2655, 0.0
  %v2726 = vmax.f32 %v2660, 0.0
  %v2727 = vld [vmem:[%s2] sm:$0xff]
  %v2729 = vsel %vm1421, %v2663, 0
  %v2732 = vsel %vm1421, %v2664, 0
  %v2735 = vsel %vm1421, %v2665, 0
  %v2738 = vsel %vm1421, %v2666, 0
  %v2741 = vsel %vm1421, %v2667, 0
  %v2744 = vsel %vm1421, %v2668, 0
  %v2747 = vsel %vm1421, %v2669, 0
  %v2750 = vsel %vm1421, %v2670, 0
  %v2753 = vsel %vm1421, %v2671, 0
  %v2756 = vsel %vm1421, %v2672, 0
  %v2759 = vsel %vm1421, %v2673, 0
  %v2762 = vsel %vm1421, %v2674, 0
  %v2765 = vsel %vm1421, %v2675, 0
  %v2768 = vsel %vm1421, %v2676, 0
  %v2771 = vsel %vm1421, %v2677, 0
  %v2774 = vsel %vm1421, %v2678, 0
  %v2777 = vsel %vm1421, %v2679, 0
  %v2780 = vsel %vm1421, %v2680, 0
  %v2783 = vsel %vm1421, %v2681, 0
  %v2786 = vsel %vm1421, %v2682, 0
  %v2789 = vsel %vm1421, %v2683, 0
  %v2792 = vsel %vm1421, %v2684, 0
  %v2795 = vsel %vm1421, %v2685, 0
  %v2798 = vsel %vm1421, %v2686, 0
  %v2801 = vsel %vm1421, %v2687, 0
  %v2804 = vsel %vm1421, %v2688, 0
  %v2807 = vsel %vm1421, %v2689, 0
  %v2810 = vsel %vm1421, %v2690, 0
  %v2813 = vsel %vm1421, %v2691, 0
  %v2816 = vsel %vm1421, %v2692, 0
  %v2819 = vsel %vm1421, %v2693, 0
  %v2822 = vsel %vm1421, %v2694, 0
  %v2825 = vsel %vm1421, %v2695, 0
  %v2828 = vsel %vm1421, %v2696, 0
  %v2831 = vsel %vm1421, %v2697, 0
  %v2834 = vsel %vm1421, %v2698, 0
  %v2837 = vsel %vm1421, %v2699, 0
  %v2840 = vsel %vm1421, %v2700, 0
  %v2843 = vsel %vm1421, %v2701, 0
  %v2846 = vsel %vm1421, %v2702, 0
  %v2849 = vsel %vm1421, %v2703, 0
  %v2852 = vsel %vm1421, %v2704, 0
  %v2855 = vsel %vm1421, %v2705, 0
  %v2858 = vsel %vm1421, %v2706, 0
  %v2861 = vsel %vm1421, %v2707, 0
  %v2864 = vsel %vm1421, %v2708, 0
  %v2867 = vsel %vm1421, %v2709, 0
  %v2870 = vsel %vm1421, %v2710, 0
  %v2873 = vsel %vm1421, %v2711, 0
  %v2876 = vsel %vm1421, %v2712, 0
  %v2879 = vsel %vm1421, %v2713, 0
  %v2882 = vsel %vm1421, %v2714, 0
  %v2885 = vsel %vm1421, %v2715, 0
  %v2888 = vsel %vm1421, %v2716, 0
  %v2891 = vsel %vm1421, %v2717, 0
  %v2894 = vsel %vm1421, %v2718, 0
  %v2897 = vsel %vm1421, %v2719, 0
  %v2900 = vsel %vm1421, %v2720, 0
  %v2903 = vsel %vm1421, %v2721, 0
  %v2906 = vsel %vm1421, %v2722, 0
  %v2909 = vsel %vm1421, %v2723, 0
  %v2912 = vsel %vm1421, %v2724, 0
  %v2915 = vsel %vm1421, %v2725, 0
  %v2918 = vsel %vm1421, %v2726, 0
  %2920 = vmatprep.subr.mxu0 0.0
  %2921 = vmatpush1.msra.mxu0 %v2727
  %2922 = vmatprep.subr.mxu0 0.0
  %2923 = vmatpush1.msra.mxu0 0.0
  %2924 = vmatprep.subr.mxu0 0.0
  %2925 = vmatpush1.msra.mxu0 0.0
  %2926 = vmatprep.subr.mxu0 0.0
  %2927 = vmatpush1.msra.mxu0 0.0
  %2928 = vmatprep.subr.mxu0 0.0
  %2929 = vmatpush1.msra.mxu0 0.0
  %2930 = vmatprep.subr.mxu0 0.0
  %2931 = vmatpush1.msra.mxu0 0.0
  %2932 = vmatprep.subr.mxu0 0.0
  %2933 = vmatpush1.msra.mxu0 0.0
  %2934 = vmatprep.subr.mxu0 0.0
  %2935 = vmatpush1.msra.mxu0 0.0
  %2936 = vmatprep.subr.mxu0 0.0
  %2937 = vmatpush1.msra.mxu0 0.0
  %2938 = vmatprep.subr.mxu0 0.0
  %2939 = vmatpush1.msra.mxu0 0.0
  %2940 = vmatprep.subr.mxu0 0.0
  %2941 = vmatpush1.msra.mxu0 0.0
  %2942 = vmatprep.subr.mxu0 0.0
  %2943 = vmatpush1.msra.mxu0 0.0
  %2944 = vmatprep.subr.mxu0 0.0
  %2945 = vmatpush1.msra.mxu0 0.0
  %2946 = vmatprep.subr.mxu0 0.0
  %2947 = vmatpush1.msra.mxu0 0.0
  %2948 = vmatprep.subr.mxu0 0.0
  %2949 = vmatpush1.msra.mxu0 0.0
  %2950 = vmatprep.subr.mxu0 0.0
  %2951 = vmatpush1.msra.mxu0 0.0
  %2952 = vmatprep.subr.mxu0 0.0
  %2953 = vmatpush1.msra.mxu0 0.0
  %2954 = vmatprep.subr.mxu0 0.0
  %2955 = vmatpush1.msra.mxu0 0.0
  %2956 = vmatprep.subr.mxu0 0.0
  %2957 = vmatpush1.msra.mxu0 0.0
  %2958 = vmatprep.subr.mxu0 0.0
  %2959 = vmatpush1.msra.mxu0 0.0
  %2960 = vmatprep.subr.mxu0 0.0
  %2961 = vmatpush1.msra.mxu0 0.0
  %2962 = vmatprep.subr.mxu0 0.0
  %2963 = vmatpush1.msra.mxu0 0.0
  %2964 = vmatprep.subr.mxu0 0.0
  %2965 = vmatpush1.msra.mxu0 0.0
  %2966 = vmatprep.subr.mxu0 0.0
  %2967 = vmatpush1.msra.mxu0 0.0
  %2968 = vmatprep.subr.mxu0 0.0
  %2969 = vmatpush1.msra.mxu0 0.0
  %2970 = vmatprep.subr.mxu0 0.0
  %2971 = vmatpush1.msra.mxu0 0.0
  %2972 = vmatprep.subr.mxu0 0.0
  %2973 = vmatpush1.msra.mxu0 0.0
  %2974 = vmatprep.subr.mxu0 0.0
  %2975 = vmatpush1.msra.mxu0 0.0
  %2976 = vmatprep.subr.mxu0 0.0
  %2977 = vmatpush1.msra.mxu0 0.0
  %2978 = vmatprep.subr.mxu0 0.0
  %2979 = vmatpush1.msra.mxu0 0.0
  %2980 = vmatprep.subr.mxu0 0.0
  %2981 = vmatpush1.msra.mxu0 0.0
  %2982 = vmatprep.subr.mxu0 0.0
  %2983 = vmatpush1.msra.mxu0 0.0
  %2984 = vmatprep.mubr.f32.mxu0 0.0
  %2985 = vmatmul.mubr.f32.gmra.mrb[0].mxu0 %v2729
  %v2986 = vpop.f32.mrb[0].mxu0
  %v2987 = vadd.f32 0.0, %v2986
  %v2988 = vpop.f32.mrb[0].mxu0
  %2989 = vmatprep.mubr.f32.mxu0 0.0
  %2990 = vmatmul.mubr.f32.gmra.mrb[0].mxu0 %v2732
  %v2991 = vpop.f32.mrb[0].mxu0
  %v2992 = vadd.f32 0.0, %v2991
  %v2993 = vpop.f32.mrb[0].mxu0
  %2994 = vmatprep.mubr.f32.mxu0 0.0
  %2995 = vmatmul.mubr.f32.gmra.mrb[0].mxu0 %v2735
  %v2996 = vpop.f32.mrb[0].mxu0
  %v2997 = vadd.f32 0.0, %v2996
  %v2998 = vpop.f32.mrb[0].mxu0
  %2999 = vmatprep.mubr.f32.mxu0 0.0
  %3000 = vmatmul.mubr.f32.gmra.mrb[0].mxu0 %v2738
  %v3001 = vpop.f32.mrb[0].mxu0
  %v3002 = vadd.f32 0.0, %v3001
  %v3003 = vpop.f32.mrb[0].mxu0
  %3004 = vmatprep.mubr.f32.mxu0 0.0
  %3005 = vmatmul.mubr.f32.gmra.mrb[0].mxu0 %v2741
  %v3006 = vpop.f32.mrb[0].mxu0
  %v3007 = vadd.f32 0.0, %v3006
  %v3008 = vpop.f32.mrb[0].mxu0
  %3009 = vmatprep.mubr.f32.mxu0 0.0
  %3010 = vmatmul.mubr.f32.gmra.mrb[0].mxu0 %v2744
  %v3011 = vpop.f32.mrb[0].mxu0
  %v3012 = vadd.f32 0.0, %v3011
  %v3013 = vpop.f32.mrb[0].mxu0
  %3014 = vmatprep.mubr.f32.mxu0 0.0
  %3015 = vmatmul.mubr.f32.gmra.mrb[0].mxu0 %v2747
  %v3016 = vpop.f32.mrb[0].mxu0
  %v3017 = vadd.f32 0.0, %v3016
  %v3018 = vpop.f32.mrb[0].mxu0
  %3019 = vmatprep.mubr.f32.mxu0 0.0
  %3020 = vmatmul.mubr.f32.gmra.mrb[0].mxu0 %v2750
  %v3021 = vpop.f32.mrb[0].mxu0
  %v3022 = vadd.f32 0.0, %v3021
  %v3023 = vpop.f32.mrb[0].mxu0
  %3024 = vmatprep.mubr.f32.mxu0 0.0
  %3025 = vmatmul.mubr.f32.gmra.mrb[0].mxu0 %v2753
  %v3026 = vpop.f32.mrb[0].mxu0
  %v3027 = vadd.f32 0.0, %v3026
  %v3028 = vpop.f32.mrb[0].mxu0
  %3029 = vmatprep.mubr.f32.mxu0 0.0
  %3030 = vmatmul.mubr.f32.gmra.mrb[0].mxu0 %v2756
  %v3031 = vpop.f32.mrb[0].mxu0
  %v3032 = vadd.f32 0.0, %v3031
  %v3033 = vpop.f32.mrb[0].mxu0
  %3034 = vmatprep.mubr.f32.mxu0 0.0
  %3035 = vmatmul.mubr.f32.gmra.mrb[0].mxu0 %v2759
  %v3036 = vpop.f32.mrb[0].mxu0
  %v3037 = vadd.f32 0.0, %v3036
  %v3038 = vpop.f32.mrb[0].mxu0
  %3039 = vmatprep.mubr.f32.mxu0 0.0
  %3040 = vmatmul.mubr.f32.gmra.mrb[0].mxu0 %v2762
  %v3041 = vpop.f32.mrb[0].mxu0
  %v3042 = vadd.f32 0.0, %v3041
  %v3043 = vpop.f32.mrb[0].mxu0
  %3044 = vmatprep.mubr.f32.mxu0 0.0
  %3045 = vmatmul.mubr.f32.gmra.mrb[0].mxu0 %v2765
  %v3046 = vpop.f32.mrb[0].mxu0
  %v3047 = vadd.f32 0.0, %v3046
  %v3048 = vpop.f32.mrb[0].mxu0
  %3049 = vmatprep.mubr.f32.mxu0 0.0
  %3050 = vmatmul.mubr.f32.gmra.mrb[0].mxu0 %v2768
  %v3051 = vpop.f32.mrb[0].mxu0
  %v3052 = vadd.f32 0.0, %v3051
  %v3053 = vpop.f32.mrb[0].mxu0
  %3054 = vmatprep.mubr.f32.mxu0 0.0
  %3055 = vmatmul.mubr.f32.gmra.mrb[0].mxu0 %v2771
  %v3056 = vpop.f32.mrb[0].mxu0
  %v3057 = vadd.f32 0.0, %v3056
  %v3058 = vpop.f32.mrb[0].mxu0
  %3059 = vmatprep.mubr.f32.mxu0 0.0
  %3060 = vmatmul.mubr.f32.gmra.mrb[0].mxu0 %v2774
  %v3061 = vpop.f32.mrb[0].mxu0
  %v3062 = vadd.f32 0.0, %v3061
  %v3063 = vpop.f32.mrb[0].mxu0
  %3064 = vmatprep.mubr.f32.mxu0 0.0
  %3065 = vmatmul.mubr.f32.gmra.mrb[0].mxu0 %v2777
  %v3066 = vpop.f32.mrb[0].mxu0
  %v3067 = vadd.f32 0.0, %v3066
  %v3068 = vpop.f32.mrb[0].mxu0
  %3069 = vmatprep.mubr.f32.mxu0 0.0
  %3070 = vmatmul.mubr.f32.gmra.mrb[0].mxu0 %v2780
  %v3071 = vpop.f32.mrb[0].mxu0
  %v3072 = vadd.f32 0.0, %v3071
  %v3073 = vpop.f32.mrb[0].mxu0
  %3074 = vmatprep.mubr.f32.mxu0 0.0
  %3075 = vmatmul.mubr.f32.gmra.mrb[0].mxu0 %v2783
  %v3076 = vpop.f32.mrb[0].mxu0
  %v3077 = vadd.f32 0.0, %v3076
  %v3078 = vpop.f32.mrb[0].mxu0
  %3079 = vmatprep.mubr.f32.mxu0 0.0
  %3080 = vmatmul.mubr.f32.gmra.mrb[0].mxu0 %v2786
  %v3081 = vpop.f32.mrb[0].mxu0
  %v3082 = vadd.f32 0.0, %v3081
  %v3083 = vpop.f32.mrb[0].mxu0
  %3084 = vmatprep.mubr.f32.mxu0 0.0
  %3085 = vmatmul.mubr.f32.gmra.mrb[0].mxu0 %v2789
  %v3086 = vpop.f32.mrb[0].mxu0
  %v3087 = vadd.f32 0.0, %v3086
  %v3088 = vpop.f32.mrb[0].mxu0
  %3089 = vmatprep.mubr.f32.mxu0 0.0
  %3090 = vmatmul.mubr.f32.gmra.mrb[0].mxu0 %v2792
  %v3091 = vpop.f32.mrb[0].mxu0
  %v3092 = vadd.f32 0.0, %v3091
  %v3093 = vpop.f32.mrb[0].mxu0
  %3094 = vmatprep.mubr.f32.mxu0 0.0
  %3095 = vmatmul.mubr.f32.gmra.mrb[0].mxu0 %v2795
  %v3096 = vpop.f32.mrb[0].mxu0
  %v3097 = vadd.f32 0.0, %v3096
  %v3098 = vpop.f32.mrb[0].mxu0
  %3099 = vmatprep.mubr.f32.mxu0 0.0
  %3100 = vmatmul.mubr.f32.gmra.mrb[0].mxu0 %v2798
  %v3101 = vpop.f32.mrb[0].mxu0
  %v3102 = vadd.f32 0.0, %v3101
  %v3103 = vpop.f32.mrb[0].mxu0
  %3104 = vmatprep.mubr.f32.mxu0 0.0
  %3105 = vmatmul.mubr.f32.gmra.mrb[0].mxu0 %v2801
  %v3106 = vpop.f32.mrb[0].mxu0
  %v3107 = vadd.f32 0.0, %v3106
  %v3108 = vpop.f32.mrb[0].mxu0
  %3109 = vmatprep.mubr.f32.mxu0 0.0
  %3110 = vmatmul.mubr.f32.gmra.mrb[0].mxu0 %v2804
  %v3111 = vpop.f32.mrb[0].mxu0
  %v3112 = vadd.f32 0.0, %v3111
  %v3113 = vpop.f32.mrb[0].mxu0
  %3114 = vmatprep.mubr.f32.mxu0 0.0
  %3115 = vmatmul.mubr.f32.gmra.mrb[0].mxu0 %v2807
  %v3116 = vpop.f32.mrb[0].mxu0
  %v3117 = vadd.f32 0.0, %v3116
  %v3118 = vpop.f32.mrb[0].mxu0
  %3119 = vmatprep.mubr.f32.mxu0 0.0
  %3120 = vmatmul.mubr.f32.gmra.mrb[0].mxu0 %v2810
  %v3121 = vpop.f32.mrb[0].mxu0
  %v3122 = vadd.f32 0.0, %v3121
  %v3123 = vpop.f32.mrb[0].mxu0
  %3124 = vmatprep.mubr.f32.mxu0 0.0
  %3125 = vmatmul.mubr.f32.gmra.mrb[0].mxu0 %v2813
  %v3126 = vpop.f32.mrb[0].mxu0
  %v3127 = vadd.f32 0.0, %v3126
  %v3128 = vpop.f32.mrb[0].mxu0
  %3129 = vmatprep.mubr.f32.mxu0 0.0
  %3130 = vmatmul.mubr.f32.gmra.mrb[0].mxu0 %v2816
  %v3131 = vpop.f32.mrb[0].mxu0
  %v3132 = vadd.f32 0.0, %v3131
  %v3133 = vpop.f32.mrb[0].mxu0
  %3134 = vmatprep.mubr.f32.mxu0 0.0
  %3135 = vmatmul.mubr.f32.gmra.mrb[0].mxu0 %v2819
  %v3136 = vpop.f32.mrb[0].mxu0
  %v3137 = vadd.f32 0.0, %v3136
  %v3138 = vpop.f32.mrb[0].mxu0
  %3139 = vmatprep.mubr.f32.mxu0 0.0
  %3140 = vmatmul.mubr.f32.gmra.mrb[0].mxu0 %v2822
  %v3141 = vpop.f32.mrb[0].mxu0
  %v3142 = vadd.f32 0.0, %v3141
  %v3143 = vpop.f32.mrb[0].mxu0
  %3144 = vmatprep.mubr.f32.mxu0 0.0
  %3145 = vmatmul.mubr.f32.gmra.mrb[0].mxu0 %v2825
  %v3146 = vpop.f32.mrb[0].mxu0
  %v3147 = vadd.f32 0.0, %v3146
  %v3148 = vpop.f32.mrb[0].mxu0
  %3149 = vmatprep.mubr.f32.mxu0 0.0
  %3150 = vmatmul.mubr.f32.gmra.mrb[0].mxu0 %v2828
  %v3151 = vpop.f32.mrb[0].mxu0
  %v3152 = vadd.f32 0.0, %v3151
  %v3153 = vpop.f32.mrb[0].mxu0
  %3154 = vmatprep.mubr.f32.mxu0 0.0
  %3155 = vmatmul.mubr.f32.gmra.mrb[0].mxu0 %v2831
  %v3156 = vpop.f32.mrb[0].mxu0
  %v3157 = vadd.f32 0.0, %v3156
  %v3158 = vpop.f32.mrb[0].mxu0
  %3159 = vmatprep.mubr.f32.mxu0 0.0
  %3160 = vmatmul.mubr.f32.gmra.mrb[0].mxu0 %v2834
  %v3161 = vpop.f32.mrb[0].mxu0
  %v3162 = vadd.f32 0.0, %v3161
  %v3163 = vpop.f32.mrb[0].mxu0
  %3164 = vmatprep.mubr.f32.mxu0 0.0
  %3165 = vmatmul.mubr.f32.gmra.mrb[0].mxu0 %v2837
  %v3166 = vpop.f32.mrb[0].mxu0
  %v3167 = vadd.f32 0.0, %v3166
  %v3168 = vpop.f32.mrb[0].mxu0
  %3169 = vmatprep.mubr.f32.mxu0 0.0
  %3170 = vmatmul.mubr.f32.gmra.mrb[0].mxu0 %v2840
  %v3171 = vpop.f32.mrb[0].mxu0
  %v3172 = vadd.f32 0.0, %v3171
  %v3173 = vpop.f32.mrb[0].mxu0
  %3174 = vmatprep.mubr.f32.mxu0 0.0
  %3175 = vmatmul.mubr.f32.gmra.mrb[0].mxu0 %v2843
  %v3176 = vpop.f32.mrb[0].mxu0
  %v3177 = vadd.f32 0.0, %v3176
  %v3178 = vpop.f32.mrb[0].mxu0
  %3179 = vmatprep.mubr.f32.mxu0 0.0
  %3180 = vmatmul.mubr.f32.gmra.mrb[0].mxu0 %v2846
  %v3181 = vpop.f32.mrb[0].mxu0
  %v3182 = vadd.f32 0.0, %v3181
  %v3183 = vpop.f32.mrb[0].mxu0
  %3184 = vmatprep.mubr.f32.mxu0 0.0
  %3185 = vmatmul.mubr.f32.gmra.mrb[0].mxu0 %v2849
  %v3186 = vpop.f32.mrb[0].mxu0
  %v3187 = vadd.f32 0.0, %v3186
  %v3188 = vpop.f32.mrb[0].mxu0
  %3189 = vmatprep.mubr.f32.mxu0 0.0
  %3190 = vmatmul.mubr.f32.gmra.mrb[0].mxu0 %v2852
  %v3191 = vpop.f32.mrb[0].mxu0
  %v3192 = vadd.f32 0.0, %v3191
  %v3193 = vpop.f32.mrb[0].mxu0
  %3194 = vmatprep.mubr.f32.mxu0 0.0
  %3195 = vmatmul.mubr.f32.gmra.mrb[0].mxu0 %v2855
  %v3196 = vpop.f32.mrb[0].mxu0
  %v3197 = vadd.f32 0.0, %v3196
  %v3198 = vpop.f32.mrb[0].mxu0
  %3199 = vmatprep.mubr.f32.mxu0 0.0
  %3200 = vmatmul.mubr.f32.gmra.mrb[0].mxu0 %v2858
  %v3201 = vpop.f32.mrb[0].mxu0
  %v3202 = vadd.f32 0.0, %v3201
  %v3203 = vpop.f32.mrb[0].mxu0
  %3204 = vmatprep.mubr.f32.mxu0 0.0
  %3205 = vmatmul.mubr.f32.gmra.mrb[0].mxu0 %v2861
  %v3206 = vpop.f32.mrb[0].mxu0
  %v3207 = vadd.f32 0.0, %v3206
  %v3208 = vpop.f32.mrb[0].mxu0
  %3209 = vmatprep.mubr.f32.mxu0 0.0
  %3210 = vmatmul.mubr.f32.gmra.mrb[0].mxu0 %v2864
  %v3211 = vpop.f32.mrb[0].mxu0
  %v3212 = vadd.f32 0.0, %v3211
  %v3213 = vpop.f32.mrb[0].mxu0
  %3214 = vmatprep.mubr.f32.mxu0 0.0
  %3215 = vmatmul.mubr.f32.gmra.mrb[0].mxu0 %v2867
  %v3216 = vpop.f32.mrb[0].mxu0
  %v3217 = vadd.f32 0.0, %v3216
  %v3218 = vpop.f32.mrb[0].mxu0
  %3219 = vmatprep.mubr.f32.mxu0 0.0
  %3220 = vmatmul.mubr.f32.gmra.mrb[0].mxu0 %v2870
  %v3221 = vpop.f32.mrb[0].mxu0
  %v3222 = vadd.f32 0.0, %v3221
  %v3223 = vpop.f32.mrb[0].mxu0
  %3224 = vmatprep.mubr.f32.mxu0 0.0
  %3225 = vmatmul.mubr.f32.gmra.mrb[0].mxu0 %v2873
  %v3226 = vpop.f32.mrb[0].mxu0
  %v3227 = vadd.f32 0.0, %v3226
  %v3228 = vpop.f32.mrb[0].mxu0
  %3229 = vmatprep.mubr.f32.mxu0 0.0
  %3230 = vmatmul.mubr.f32.gmra.mrb[0].mxu0 %v2876
  %v3231 = vpop.f32.mrb[0].mxu0
  %v3232 = vadd.f32 0.0, %v3231
  %v3233 = vpop.f32.mrb[0].mxu0
  %3234 = vmatprep.mubr.f32.mxu0 0.0
  %3235 = vmatmul.mubr.f32.gmra.mrb[0].mxu0 %v2879
  %v3236 = vpop.f32.mrb[0].mxu0
  %v3237 = vadd.f32 0.0, %v3236
  %v3238 = vpop.f32.mrb[0].mxu0
  %3239 = vmatprep.mubr.f32.mxu0 0.0
  %3240 = vmatmul.mubr.f32.gmra.mrb[0].mxu0 %v2882
  %v3241 = vpop.f32.mrb[0].mxu0
  %v3242 = vadd.f32 0.0, %v3241
  %v3243 = vpop.f32.mrb[0].mxu0
  %3244 = vmatprep.mubr.f32.mxu0 0.0
  %3245 = vmatmul.mubr.f32.gmra.mrb[0].mxu0 %v2885
  %v3246 = vpop.f32.mrb[0].mxu0
  %v3247 = vadd.f32 0.0, %v3246
  %v3248 = vpop.f32.mrb[0].mxu0
  %3249 = vmatprep.mubr.f32.mxu0 0.0
  %3250 = vmatmul.mubr.f32.gmra.mrb[0].mxu0 %v2888
  %v3251 = vpop.f32.mrb[0].mxu0
  %v3252 = vadd.f32 0.0, %v3251
  %v3253 = vpop.f32.mrb[0].mxu0
  %3254 = vmatprep.mubr.f32.mxu0 0.0
  %3255 = vmatmul.mubr.f32.gmra.mrb[0].mxu0 %v2891
  %v3256 = vpop.f32.mrb[0].mxu0
  %v3257 = vadd.f32 0.0, %v3256
  %v3258 = vpop.f32.mrb[0].mxu0
  %3259 = vmatprep.mubr.f32.mxu0 0.0
  %3260 = vmatmul.mubr.f32.gmra.mrb[0].mxu0 %v2894
  %v3261 = vpop.f32.mrb[0].mxu0
  %v3262 = vadd.f32 0.0, %v3261
  %v3263 = vpop.f32.mrb[0].mxu0
  %3264 = vmatprep.mubr.f32.mxu0 0.0
  %3265 = vmatmul.mubr.f32.gmra.mrb[0].mxu0 %v2897
  %v3266 = vpop.f32.mrb[0].mxu0
  %v3267 = vadd.f32 0.0, %v3266
  %v3268 = vpop.f32.mrb[0].mxu0
  %3269 = vmatprep.mubr.f32.mxu0 0.0
  %3270 = vmatmul.mubr.f32.gmra.mrb[0].mxu0 %v2900
  %v3271 = vpop.f32.mrb[0].mxu0
  %v3272 = vadd.f32 0.0, %v3271
  %v3273 = vpop.f32.mrb[0].mxu0
  %3274 = vmatprep.mubr.f32.mxu0 0.0
  %3275 = vmatmul.mubr.f32.gmra.mrb[0].mxu0 %v2903
  %v3276 = vpop.f32.mrb[0].mxu0
  %v3277 = vadd.f32 0.0, %v3276
  %v3278 = vpop.f32.mrb[0].mxu0
  %3279 = vmatprep.mubr.f32.mxu0 0.0
  %3280 = vmatmul.mubr.f32.gmra.mrb[0].mxu0 %v2906
  %v3281 = vpop.f32.mrb[0].mxu0
  %v3282 = vadd.f32 0.0, %v3281
  %v3283 = vpop.f32.mrb[0].mxu0
  %3284 = vmatprep.mubr.f32.mxu0 0.0
  %3285 = vmatmul.mubr.f32.gmra.mrb[0].mxu0 %v2909
  %v3286 = vpop.f32.mrb[0].mxu0
  %v3287 = vadd.f32 0.0, %v3286
  %v3288 = vpop.f32.mrb[0].mxu0
  %3289 = vmatprep.mubr.f32.mxu0 0.0
  %3290 = vmatmul.mubr.f32.gmra.mrb[0].mxu0 %v2912
  %v3291 = vpop.f32.mrb[0].mxu0
  %v3292 = vadd.f32 0.0, %v3291
  %v3293 = vpop.f32.mrb[0].mxu0
  %3294 = vmatprep.mubr.f32.mxu0 0.0
  %3295 = vmatmul.mubr.f32.gmra.mrb[0].mxu0 %v2915
  %v3296 = vpop.f32.mrb[0].mxu0
  %v3297 = vadd.f32 0.0, %v3296
  %v3298 = vpop.f32.mrb[0].mxu0
  %3299 = vmatprep.mubr.f32.mxu0 0.0
  %3300 = vmatmul.mubr.f32.gmra.mrb[0].mxu0 %v2918
  %v3301 = vpop.f32.mrb[0].mxu0
  %v3302 = vadd.f32 0.0, %v3301
  %v3303 = vpop.f32.mrb[0].mxu0
  %3304 = vdwg.mxu0
  %v3305 = vld [vmem:[%s166 + $0x1] sm:$0xff]
  %v3306 = vld [vmem:[%s166 + $0x9] sm:$0xff]
  %v3307 = vld [vmem:[%s166 + $0x19] sm:$0xff]
  %v3308 = vld [vmem:[%s166 + $0x21] sm:$0xff]
  %v3309 = vld [vmem:[%s166 + $0x31] sm:$0xff]
  %v3310 = vld [vmem:[%s166 + $0x39] sm:$0xff]
  %v3311 = vld [vmem:[%s166 + $0x49] sm:$0xff]
  %v3312 = vld [vmem:[%s166 + $0x51] sm:$0xff]
  %v3313 = vld [vmem:[%s166 + $0x61] sm:$0xff]
  %v3314 = vld [vmem:[%s166 + $0x69] sm:$0xff]
  %v3315 = vld [vmem:[%s166 + $0x79] sm:$0xff]
  %v3316 = vld [vmem:[%s166 + $0x81] sm:$0xff]
  %v3317 = vld [vmem:[%s166 + $0x91] sm:$0xff]
  %v3318 = vld [vmem:[%s166 + $0x99] sm:$0xff]
  %v3319 = vld [vmem:[%s166 + $0xa9] sm:$0xff]
  %v3320 = vld [vmem:[%s166 + $0xb1] sm:$0xff]
  %v3321 = vld [vmem:[%s166 + $0xc1] sm:$0xff]
  %v3322 = vld [vmem:[%s166 + $0xc9] sm:$0xff]
  %v3323 = vld [vmem:[%s166 + $0xd9] sm:$0xff]
  %v3324 = vld [vmem:[%s166 + $0xe1] sm:$0xff]
  %v3325 = vld [vmem:[%s166 + $0xf1] sm:$0xff]
  %v3326 = vld [vmem:[%s166 + $0xf9] sm:$0xff]
  %v3327 = vld [vmem:[%s166 + $0x109] sm:$0xff]
  %v3328 = vld [vmem:[%s166 + $0x111] sm:$0xff]
  %v3329 = vld [vmem:[%s166 + $0x121] sm:$0xff]
  %v3330 = vld [vmem:[%s166 + $0x129] sm:$0xff]
  %v3331 = vld [vmem:[%s166 + $0x139] sm:$0xff]
  %v3332 = vld [vmem:[%s166 + $0x141] sm:$0xff]
  %v3333 = vld [vmem:[%s166 + $0x151] sm:$0xff]
  %v3334 = vld [vmem:[%s166 + $0x159] sm:$0xff]
  %v3335 = vld [vmem:[%s166 + $0x169] sm:$0xff]
  %v3336 = vld [vmem:[%s166 + $0x171] sm:$0xff]
  %v3337 = vld [vmem:[%s166 + $0x1b1] sm:$0xff]
  %v3338 = vld [vmem:[%s166 + $0x1b9] sm:$0xff]
  %v3339 = vld [vmem:[%s166 + $0x1c9] sm:$0xff]
  %v3340 = vld [vmem:[%s166 + $0x1d1] sm:$0xff]
  %v3341 = vld [vmem:[%s166 + $0x1e1] sm:$0xff]
  %v3342 = vld [vmem:[%s166 + $0x1e9] sm:$0xff]
  %v3343 = vld [vmem:[%s166 + $0x1f9] sm:$0xff]
  %v3344 = vld [vmem:[%s166 + $0x201] sm:$0xff]
  %v3345 = vld [vmem:[%s166 + $0x211] sm:$0xff]
  %v3346 = vld [vmem:[%s166 + $0x219] sm:$0xff]
  %v3347 = vld [vmem:[%s166 + $0x229] sm:$0xff]
  %v3348 = vld [vmem:[%s166 + $0x231] sm:$0xff]
  %v3349 = vld [vmem:[%s166 + $0x241] sm:$0xff]
  %v3350 = vld [vmem:[%s166 + $0x249] sm:$0xff]
  %v3351 = vld [vmem:[%s166 + $0x259] sm:$0xff]
  %v3352 = vld [vmem:[%s166 + $0x261] sm:$0xff]
  %v3353 = vld [vmem:[%s166 + $0x271] sm:$0xff]
  %v3354 = vld [vmem:[%s166 + $0x279] sm:$0xff]
  %v3355 = vld [vmem:[%s166 + $0x289] sm:$0xff]
  %v3356 = vld [vmem:[%s166 + $0x291] sm:$0xff]
  %v3357 = vld [vmem:[%s166 + $0x2a1] sm:$0xff]
  %v3358 = vld [vmem:[%s166 + $0x2a9] sm:$0xff]
  %v3359 = vld [vmem:[%s166 + $0x2b9] sm:$0xff]
  %v3360 = vld [vmem:[%s166 + $0x2c1] sm:$0xff]
  %v3361 = vld [vmem:[%s166 + $0x2d1] sm:$0xff]
  %v3362 = vld [vmem:[%s166 + $0x2d9] sm:$0xff]
  %v3363 = vld [vmem:[%s166 + $0x2e9] sm:$0xff]
  %v3364 = vld [vmem:[%s166 + $0x2f1] sm:$0xff]
  %v3365 = vld [vmem:[%s166 + $0x301] sm:$0xff]
  %v3366 = vld [vmem:[%s166 + $0x309] sm:$0xff]
  %v3367 = vld [vmem:[%s166 + $0x319] sm:$0xff]
  %v3368 = vld [vmem:[%s166 + $0x321] sm:$0xff]
  %v3369 = vadd.f32 %v3305, %v2987
  %v3370 = vadd.f32 %v3306, %v2992
  %v3371 = vadd.f32 %v3307, %v2997
  %v3372 = vadd.f32 %v3308, %v3002
  %v3373 = vadd.f32 %v3309, %v3007
  %v3374 = vadd.f32 %v3310, %v3012
  %v3375 = vadd.f32 %v3311, %v3017
  %v3376 = vadd.f32 %v3312, %v3022
  %v3377 = vadd.f32 %v3313, %v3027
  %v3378 = vadd.f32 %v3314, %v3032
  %v3379 = vadd.f32 %v3315, %v3037
  %v3380 = vadd.f32 %v3316, %v3042
  %v3381 = vadd.f32 %v3317, %v3047
  %v3382 = vadd.f32 %v3318, %v3052
  %v3383 = vadd.f32 %v3319, %v3057
  %v3384 = vadd.f32 %v3320, %v3062
  %v3385 = vadd.f32 %v3321, %v3067
  %v3386 = vadd.f32 %v3322, %v3072
  %v3387 = vadd.f32 %v3323, %v3077
  %v3388 = vadd.f32 %v3324, %v3082
  %v3389 = vadd.f32 %v3325, %v3087
  %v3390 = vadd.f32 %v3326, %v3092
  %v3391 = vadd.f32 %v3327, %v3097
  %v3392 = vadd.f32 %v3328, %v3102
  %v3393 = vadd.f32 %v3329, %v3107
  %v3394 = vadd.f32 %v3330, %v3112
  %v3395 = vadd.f32 %v3331, %v3117
  %v3396 = vadd.f32 %v3332, %v3122
  %v3397 = vadd.f32 %v3333, %v3127
  %v3398 = vadd.f32 %v3334, %v3132
  %v3399 = vadd.f32 %v3335, %v3137
  %v3400 = vadd.f32 %v3336, %v3142
  %v3401 = vadd.f32 %v3337, %v3147
  %v3402 = vadd.f32 %v3338, %v3152
  %v3403 = vadd.f32 %v3339, %v3157
  %v3404 = vadd.f32 %v3340, %v3162
  %v3405 = vadd.f32 %v3341, %v3167
  %v3406 = vadd.f32 %v3342, %v3172
  %v3407 = vadd.f32 %v3343, %v3177
  %v3408 = vadd.f32 %v3344, %v3182
  %v3409 = vadd.f32 %v3345, %v3187
  %v3410 = vadd.f32 %v3346, %v3192
  %v3411 = vadd.f32 %v3347, %v3197
  %v3412 = vadd.f32 %v3348, %v3202
  %v3413 = vadd.f32 %v3349, %v3207
  %v3414 = vadd.f32 %v3350, %v3212
  %v3415 = vadd.f32 %v3351, %v3217
  %v3416 = vadd.f32 %v3352, %v3222
  %v3417 = vadd.f32 %v3353, %v3227
  %v3418 = vadd.f32 %v3354, %v3232
  %v3419 = vadd.f32 %v3355, %v3237
  %v3420 = vadd.f32 %v3356, %v3242
  %v3421 = vadd.f32 %v3357, %v3247
  %v3422 = vadd.f32 %v3358, %v3252
  %v3423 = vadd.f32 %v3359, %v3257
  %v3424 = vadd.f32 %v3360, %v3262
  %v3425 = vadd.f32 %v3361, %v3267
  %v3426 = vadd.f32 %v3362, %v3272
  %v3427 = vadd.f32 %v3363, %v3277
  %v3428 = vadd.f32 %v3364, %v3282
  %v3429 = vadd.f32 %v3365, %v3287
  %v3430 = vadd.f32 %v3366, %v3292
  %v3431 = vadd.f32 %v3367, %v3297
  %v3432 = vadd.f32 %v3368, %v3302
  %3433 = vst.msk [vmem:[%s166 + $0x1] sm:$0xff] %vm14, %v3369
  %3434 = vst.msk [vmem:[%s166 + $0x9] sm:$0xff] %vm14, %v3370
  %3435 = vst.msk [vmem:[%s166 + $0x19] sm:$0xff] %vm14, %v3371
  %3436 = vst.msk [vmem:[%s166 + $0x21] sm:$0xff] %vm14, %v3372
  %3437 = vst.msk [vmem:[%s166 + $0x31] sm:$0xff] %vm14, %v3373
  %3438 = vst.msk [vmem:[%s166 + $0x39] sm:$0xff] %vm14, %v3374
  %3439 = vst.msk [vmem:[%s166 + $0x49] sm:$0xff] %vm14, %v3375
  %3440 = vst.msk [vmem:[%s166 + $0x51] sm:$0xff] %vm14, %v3376
  %3441 = vst.msk [vmem:[%s166 + $0x61] sm:$0xff] %vm14, %v3377
  %3442 = vst.msk [vmem:[%s166 + $0x69] sm:$0xff] %vm14, %v3378
  %3443 = vst.msk [vmem:[%s166 + $0x79] sm:$0xff] %vm14, %v3379
  %3444 = vst.msk [vmem:[%s166 + $0x81] sm:$0xff] %vm14, %v3380
  %3445 = vst.msk [vmem:[%s166 + $0x91] sm:$0xff] %vm14, %v3381
  %3446 = vst.msk [vmem:[%s166 + $0x99] sm:$0xff] %vm14, %v3382
  %3447 = vst.msk [vmem:[%s166 + $0xa9] sm:$0xff] %vm14, %v3383
  %3448 = vst.msk [vmem:[%s166 + $0xb1] sm:$0xff] %vm14, %v3384
  %3449 = vst.msk [vmem:[%s166 + $0xc1] sm:$0xff] %vm14, %v3385
  %3450 = vst.msk [vmem:[%s166 + $0xc9] sm:$0xff] %vm14, %v3386
  %3451 = vst.msk [vmem:[%s166 + $0xd9] sm:$0xff] %vm14, %v3387
  %3452 = vst.msk [vmem:[%s166 + $0xe1] sm:$0xff] %vm14, %v3388
  %3453 = vst.msk [vmem:[%s166 + $0xf1] sm:$0xff] %vm14, %v3389
  %3454 = vst.msk [vmem:[%s166 + $0xf9] sm:$0xff] %vm14, %v3390
  %3455 = vst.msk [vmem:[%s166 + $0x109] sm:$0xff] %vm14, %v3391
  %3456 = vst.msk [vmem:[%s166 + $0x111] sm:$0xff] %vm14, %v3392
  %3457 = vst.msk [vmem:[%s166 + $0x121] sm:$0xff] %vm14, %v3393
  %3458 = vst.msk [vmem:[%s166 + $0x129] sm:$0xff] %vm14, %v3394
  %3459 = vst.msk [vmem:[%s166 + $0x139] sm:$0xff] %vm14, %v3395
  %3460 = vst.msk [vmem:[%s166 + $0x141] sm:$0xff] %vm14, %v3396
  %3461 = vst.msk [vmem:[%s166 + $0x151] sm:$0xff] %vm14, %v3397
  %3462 = vst.msk [vmem:[%s166 + $0x159] sm:$0xff] %vm14, %v3398
  %3463 = vst.msk [vmem:[%s166 + $0x169] sm:$0xff] %vm14, %v3399
  %3464 = vst.msk [vmem:[%s166 + $0x171] sm:$0xff] %vm14, %v3400
  %3465 = vst.msk [vmem:[%s166 + $0x1b1] sm:$0xff] %vm14, %v3401
  %3466 = vst.msk [vmem:[%s166 + $0x1b9] sm:$0xff] %vm14, %v3402
  %3467 = vst.msk [vmem:[%s166 + $0x1c9] sm:$0xff] %vm14, %v3403
  %3468 = vst.msk [vmem:[%s166 + $0x1d1] sm:$0xff] %vm14, %v3404
  %3469 = vst.msk [vmem:[%s166 + $0x1e1] sm:$0xff] %vm14, %v3405
  %3470 = vst.msk [vmem:[%s166 + $0x1e9] sm:$0xff] %vm14, %v3406
  %3471 = vst.msk [vmem:[%s166 + $0x1f9] sm:$0xff] %vm14, %v3407
  %3472 = vst.msk [vmem:[%s166 + $0x201] sm:$0xff] %vm14, %v3408
  %3473 = vst.msk [vmem:[%s166 + $0x211] sm:$0xff] %vm14, %v3409
  %3474 = vst.msk [vmem:[%s166 + $0x219] sm:$0xff] %vm14, %v3410
  %3475 = vst.msk [vmem:[%s166 + $0x229] sm:$0xff] %vm14, %v3411
  %3476 = vst.msk [vmem:[%s166 + $0x231] sm:$0xff] %vm14, %v3412
  %3477 = vst.msk [vmem:[%s166 + $0x241] sm:$0xff] %vm14, %v3413
  %3478 = vst.msk [vmem:[%s166 + $0x249] sm:$0xff] %vm14, %v3414
  %3479 = vst.msk [vmem:[%s166 + $0x259] sm:$0xff] %vm14, %v3415
  %3480 = vst.msk [vmem:[%s166 + $0x261] sm:$0xff] %vm14, %v3416
  %3481 = vst.msk [vmem:[%s166 + $0x271] sm:$0xff] %vm14, %v3417
  %3482 = vst.msk [vmem:[%s166 + $0x279] sm:$0xff] %vm14, %v3418
  %3483 = vst.msk [vmem:[%s166 + $0x289] sm:$0xff] %vm14, %v3419
  %3484 = vst.msk [vmem:[%s166 + $0x291] sm:$0xff] %vm14, %v3420
  %3485 = vst.msk [vmem:[%s166 + $0x2a1] sm:$0xff] %vm14, %v3421
  %3486 = vst.msk [vmem:[%s166 + $0x2a9] sm:$0xff] %vm14, %v3422
  %3487 = vst.msk [vmem:[%s166 + $0x2b9] sm:$0xff] %vm14, %v3423
  %3488 = vst.msk [vmem:[%s166 + $0x2c1] sm:$0xff] %vm14, %v3424
  %3489 = vst.msk [vmem:[%s166 + $0x2d1] sm:$0xff] %vm14, %v3425
  %3490 = vst.msk [vmem:[%s166 + $0x2d9] sm:$0xff] %vm14, %v3426
  %3491 = vst.msk [vmem:[%s166 + $0x2e9] sm:$0xff] %vm14, %v3427
  %3492 = vst.msk [vmem:[%s166 + $0x2f1] sm:$0xff] %vm14, %v3428
  %3493 = vst.msk [vmem:[%s166 + $0x301] sm:$0xff] %vm14, %v3429
  %3494 = vst.msk [vmem:[%s166 + $0x309] sm:$0xff] %vm14, %v3430
  %3495 = vst.msk [vmem:[%s166 + $0x319] sm:$0xff] %vm14, %v3431
  %3496 = vst.msk [vmem:[%s166 + $0x321] sm:$0xff] %vm14, %v3432
  %v3497 = vld [vmem:[#allocation2] sm:$0xff]
  %v3498 = vld [vmem:[#allocation2 + $0x8] sm:$0xff]
  %v3499 = vld [vmem:[#allocation2 + $0x10] sm:$0x3]
  %v3500 = vld [vmem:[#allocation2 + $0x18] sm:$0xff]
  %v3501 = vld [vmem:[#allocation2 + $0x20] sm:$0xff]
  %v3502 = vld [vmem:[#allocation2 + $0x28] sm:$0x3]
  %v3503 = vld [vmem:[#allocation2 + $0x30] sm:$0xff]
  %v3504 = vld [vmem:[#allocation2 + $0x38] sm:$0xff]
  %v3505 = vld [vmem:[#allocation2 + $0x40] sm:$0x3]
  %v3506 = vld [vmem:[#allocation2 + $0x48] sm:$0xff]
  %v3507 = vld [vmem:[#allocation2 + $0x50] sm:$0xff]
  %v3508 = vld [vmem:[#allocation2 + $0x58] sm:$0x3]
  %v3509 = vld [vmem:[#allocation2 + $0x60] sm:$0xff]
  %v3510 = vld [vmem:[#allocation2 + $0x68] sm:$0xff]
  %v3511 = vld [vmem:[#allocation2 + $0x70] sm:$0x3]
  %v3512 = vld [vmem:[#allocation2 + $0x78] sm:$0xff]
  %v3513 = vld [vmem:[#allocation2 + $0x80] sm:$0xff]
  %v3514 = vld [vmem:[#allocation2 + $0x88] sm:$0x3]
  %v3515 = vld [vmem:[#allocation2 + $0x90] sm:$0xff]
  %v3516 = vld [vmem:[#allocation2 + $0x98] sm:$0xff]
  %v3517 = vld [vmem:[#allocation2 + $0xa0] sm:$0x3]
  %v3518 = vld [vmem:[#allocation2 + $0xa8] sm:$0xff]
  %v3519 = vld [vmem:[#allocation2 + $0xb0] sm:$0xff]
  %v3520 = vld [vmem:[#allocation2 + $0xb8] sm:$0x3]
  %v3521 = vld [vmem:[#allocation2 + $0xc0] sm:$0xff]
  %v3522 = vld [vmem:[#allocation2 + $0xc8] sm:$0xff]
  %v3523 = vld [vmem:[#allocation2 + $0xd0] sm:$0x3]
  %v3524 = vld [vmem:[#allocation2 + $0xd8] sm:$0xff]
  %v3525 = vld [vmem:[#allocation2 + $0xe0] sm:$0xff]
  %v3526 = vld [vmem:[#allocation2 + $0xe8] sm:$0x3]
  %v3527 = vld [vmem:[#allocation2 + $0xf0] sm:$0xff]
  %v3528 = vld [vmem:[#allocation2 + $0xf8] sm:$0xff]
  %v3529 = vld [vmem:[#allocation2 + $0x100] sm:$0x3]
  %v3530 = vld [vmem:[#allocation2 + $0x108] sm:$0xff]
  %v3531 = vld [vmem:[#allocation2 + $0x110] sm:$0xff]
  %v3532 = vld [vmem:[#allocation2 + $0x118] sm:$0x3]
  %v3533 = vld [vmem:[#allocation2 + $0x120] sm:$0xff]
  %v3534 = vld [vmem:[#allocation2 + $0x128] sm:$0xff]
  %v3535 = vld [vmem:[#allocation2 + $0x130] sm:$0x3]
  %v3536 = vld [vmem:[#allocation2 + $0x138] sm:$0xff]
  %v3537 = vld [vmem:[#allocation2 + $0x140] sm:$0xff]
  %v3538 = vld [vmem:[#allocation2 + $0x148] sm:$0x3]
  %v3539 = vld [vmem:[#allocation2 + $0x150] sm:$0xff]
  %v3540 = vld [vmem:[#allocation2 + $0x158] sm:$0xff]
  %v3541 = vld [vmem:[#allocation2 + $0x160] sm:$0x3]
  %v3542 = vld [vmem:[#allocation2 + $0x168] sm:$0xff]
  %v3543 = vld [vmem:[#allocation2 + $0x170] sm:$0xff]
  %v3544 = vld [vmem:[#allocation2 + $0x178] sm:$0x3]
  %v3545 = vld [vmem:[#allocation2 + $0x180] sm:$0xff]
  %v3546 = vld [vmem:[#allocation2 + $0x188] sm:$0xff]
  %v3547 = vld [vmem:[#allocation2 + $0x190] sm:$0x3]
  %v3548 = vld [vmem:[#allocation2 + $0x198] sm:$0xff]
  %v3549 = vld [vmem:[#allocation2 + $0x1a0] sm:$0xff]
  %v3550 = vld [vmem:[#allocation2 + $0x1a8] sm:$0x3]
  %v3551 = vld [vmem:[#allocation2 + $0x1b0] sm:$0xff]
  %v3552 = vld [vmem:[#allocation2 + $0x1b8] sm:$0xff]
  %v3553 = vld [vmem:[#allocation2 + $0x1c0] sm:$0x3]
  %v3554 = vld [vmem:[#allocation2 + $0x1c8] sm:$0xff]
  %v3555 = vld [vmem:[#allocation2 + $0x1d0] sm:$0xff]
  %v3556 = vld [vmem:[#allocation2 + $0x1d8] sm:$0x3]
  %v3557 = vld [vmem:[#allocation2 + $0x1e0] sm:$0xff]
  %v3558 = vld [vmem:[#allocation2 + $0x1e8] sm:$0xff]
  %v3559 = vld [vmem:[#allocation2 + $0x1f0] sm:$0x3]
  %v3560 = vld [vmem:[#allocation2 + $0x1f8] sm:$0xff]
  %v3561 = vld [vmem:[#allocation2 + $0x200] sm:$0xff]
  %v3562 = vld [vmem:[#allocation2 + $0x208] sm:$0x3]
  %v3563 = vld [vmem:[#allocation2 + $0x210] sm:$0xff]
  %v3564 = vld [vmem:[#allocation2 + $0x218] sm:$0xff]
  %v3565 = vld [vmem:[#allocation2 + $0x220] sm:$0x3]
  %v3566 = vld [vmem:[#allocation2 + $0x228] sm:$0xff]
  %v3567 = vld [vmem:[#allocation2 + $0x230] sm:$0xff]
  %v3568 = vld [vmem:[#allocation2 + $0x238] sm:$0x3]
  %v3569 = vld [vmem:[#allocation2 + $0x240] sm:$0xff]
  %v3570 = vld [vmem:[#allocation2 + $0x248] sm:$0xff]
  %v3571 = vld [vmem:[#allocation2 + $0x250] sm:$0x3]
  %v3572 = vld [vmem:[#allocation2 + $0x258] sm:$0xff]
  %v3573 = vld [vmem:[#allocation2 + $0x260] sm:$0xff]
  %v3574 = vld [vmem:[#allocation2 + $0x268] sm:$0x3]
  %v3575 = vld [vmem:[#allocation2 + $0x270] sm:$0xff]
  %v3576 = vld [vmem:[#allocation2 + $0x278] sm:$0xff]
  %v3577 = vld [vmem:[#allocation2 + $0x280] sm:$0x3]
  %v3578 = vld [vmem:[#allocation2 + $0x288] sm:$0xff]
  %v3579 = vld [vmem:[#allocation2 + $0x290] sm:$0xff]
  %v3580 = vld [vmem:[#allocation2 + $0x298] sm:$0x3]
  %v3581 = vld [vmem:[#allocation2 + $0x2a0] sm:$0xff]
  %v3582 = vld [vmem:[#allocation2 + $0x2a8] sm:$0xff]
  %v3583 = vld [vmem:[#allocation2 + $0x2b0] sm:$0x3]
  %v3584 = vld [vmem:[#allocation2 + $0x2b8] sm:$0xff]
  %v3585 = vld [vmem:[#allocation2 + $0x2c0] sm:$0xff]
  %v3586 = vld [vmem:[#allocation2 + $0x2c8] sm:$0x3]
  %v3587 = vld [vmem:[#allocation2 + $0x2d0] sm:$0xff]
  %v3588 = vld [vmem:[#allocation2 + $0x2d8] sm:$0xff]
  %v3589 = vld [vmem:[#allocation2 + $0x2e0] sm:$0x3]
  %v3590 = vld [vmem:[#allocation2 + $0x2e8] sm:$0xff]
  %v3591 = vld [vmem:[#allocation2 + $0x2f0] sm:$0xff]
  %v3592 = vld [vmem:[#allocation2 + $0x2f8] sm:$0x3]
  %v3593 = vld [vmem:[#allocation2 + $0x300] sm:$0xff]
  %v3594 = vld [vmem:[#allocation2 + $0x308] sm:$0xff]
  %v3595 = vld [vmem:[#allocation2 + $0x310] sm:$0x3]
  %v3596 = vld [vmem:[#allocation2 + $0x318] sm:$0xff]
  %v3597 = vld [vmem:[#allocation2 + $0x320] sm:$0xff]
  %v3598 = vld [vmem:[#allocation2 + $0x328] sm:$0x3]
  %v3599 = vld [vmem:[#allocation2 + $0x330] sm:$0xff]
  %v3600 = vld [vmem:[#allocation2 + $0x338] sm:$0xff]
  %v3601 = vld [vmem:[#allocation2 + $0x340] sm:$0x3]
  %v3602 = vld [vmem:[#allocation2 + $0x348] sm:$0xff]
  %v3603 = vld [vmem:[#allocation2 + $0x350] sm:$0xff]
  %v3604 = vld [vmem:[#allocation2 + $0x358] sm:$0x3]
  %v3605 = vmax.f32 %v3497, 0.0
  %v3606 = vmax.f32 %v3498, 0.0
  %v3607 = vmax.f32 %v3499, 0.0
  %v3608 = vmax.f32 %v3500, 0.0
  %v3609 = vmax.f32 %v3501, 0.0
  %v3610 = vmax.f32 %v3502, 0.0
  %v3611 = vmax.f32 %v3503, 0.0
  %v3612 = vmax.f32 %v3504, 0.0
  %v3613 = vmax.f32 %v3505, 0.0
  %v3614 = vmax.f32 %v3506, 0.0
  %v3615 = vmax.f32 %v3507, 0.0
  %v3616 = vmax.f32 %v3508, 0.0
  %v3617 = vmax.f32 %v3509, 0.0
  %v3618 = vmax.f32 %v3510, 0.0
  %v3619 = vmax.f32 %v3511, 0.0
  %v3620 = vmax.f32 %v3512, 0.0
  %v3621 = vmax.f32 %v3513, 0.0
  %v3622 = vmax.f32 %v3514, 0.0
  %v3623 = vmax.f32 %v3515, 0.0
  %v3624 = vmax.f32 %v3516, 0.0
  %v3625 = vmax.f32 %v3517, 0.0
  %v3626 = vmax.f32 %v3518, 0.0
  %v3627 = vmax.f32 %v3519, 0.0
  %v3628 = vmax.f32 %v3520, 0.0
  %v3629 = vmax.f32 %v3521, 0.0
  %v3630 = vmax.f32 %v3522, 0.0
  %v3631 = vmax.f32 %v3523, 0.0
  %v3632 = vmax.f32 %v3524, 0.0
  %v3633 = vmax.f32 %v3525, 0.0
  %v3634 = vmax.f32 %v3526, 0.0
  %v3635 = vmax.f32 %v3527, 0.0
  %v3636 = vmax.f32 %v3528, 0.0
  %v3637 = vmax.f32 %v3529, 0.0
  %v3638 = vmax.f32 %v3530, 0.0
  %v3639 = vmax.f32 %v3531, 0.0
  %v3640 = vmax.f32 %v3532, 0.0
  %v3641 = vmax.f32 %v3533, 0.0
  %v3642 = vmax.f32 %v3534, 0.0
  %v3643 = vmax.f32 %v3535, 0.0
  %v3644 = vmax.f32 %v3536, 0.0
  %v3645 = vmax.f32 %v3537, 0.0
  %v3646 = vmax.f32 %v3538, 0.0
  %v3647 = vmax.f32 %v3539, 0.0
  %v3648 = vmax.f32 %v3540, 0.0
  %v3649 = vmax.f32 %v3541, 0.0
  %v3650 = vmax.f32 %v3542, 0.0
  %v3651 = vmax.f32 %v3543, 0.0
  %v3652 = vmax.f32 %v3544, 0.0
  %v3653 = vmax.f32 %v3545, 0.0
  %v3654 = vmax.f32 %v3546, 0.0
  %v3655 = vmax.f32 %v3547, 0.0
  %v3656 = vmax.f32 %v3548, 0.0
  %v3657 = vmax.f32 %v3549, 0.0
  %v3658 = vmax.f32 %v3550, 0.0
  %v3659 = vmax.f32 %v3551, 0.0
  %v3660 = vmax.f32 %v3552, 0.0
  %v3661 = vmax.f32 %v3553, 0.0
  %v3662 = vmax.f32 %v3554, 0.0
  %v3663 = vmax.f32 %v3555, 0.0
  %v3664 = vmax.f32 %v3556, 0.0
  %v3665 = vmax.f32 %v3557, 0.0
  %v3666 = vmax.f32 %v3558, 0.0
  %v3667 = vmax.f32 %v3559, 0.0
  %v3668 = vmax.f32 %v3560, 0.0
  %v3669 = vmax.f32 %v3561, 0.0
  %v3670 = vmax.f32 %v3562, 0.0
  %v3671 = vmax.f32 %v3563, 0.0
  %v3672 = vmax.f32 %v3564, 0.0
  %v3673 = vmax.f32 %v3565, 0.0
  %v3674 = vmax.f32 %v3566, 0.0
  %v3675 = vmax.f32 %v3567, 0.0
  %v3676 = vmax.f32 %v3568, 0.0
  %v3677 = vmax.f32 %v3569, 0.0
  %v3678 = vmax.f32 %v3570, 0.0
  %v3679 = vmax.f32 %v3571, 0.0
  %v3680 = vmax.f32 %v3572, 0.0
  %v3681 = vmax.f32 %v3573, 0.0
  %v3682 = vmax.f32 %v3574, 0.0
  %v3683 = vmax.f32 %v3575, 0.0
  %v3684 = vmax.f32 %v3576, 0.0
  %v3685 = vmax.f32 %v3577, 0.0
  %v3686 = vmax.f32 %v3578, 0.0
  %v3687 = vmax.f32 %v3579, 0.0
  %v3688 = vmax.f32 %v3580, 0.0
  %v3689 = vmax.f32 %v3581, 0.0
  %v3690 = vmax.f32 %v3582, 0.0
  %v3691 = vmax.f32 %v3583, 0.0
  %v3692 = vmax.f32 %v3584, 0.0
  %v3693 = vmax.f32 %v3585, 0.0
  %v3694 = vmax.f32 %v3586, 0.0
  %v3695 = vmax.f32 %v3587, 0.0
  %v3696 = vmax.f32 %v3588, 0.0
  %v3697 = vmax.f32 %v3589, 0.0
  %v3698 = vmax.f32 %v3590, 0.0
  %v3699 = vmax.f32 %v3591, 0.0
  %v3700 = vmax.f32 %v3592, 0.0
  %v3701 = vmax.f32 %v3593, 0.0
  %v3702 = vmax.f32 %v3594, 0.0
  %v3703 = vmax.f32 %v3595, 0.0
  %v3704 = vmax.f32 %v3596, 0.0
  %v3705 = vmax.f32 %v3597, 0.0
  %v3706 = vmax.f32 %v3598, 0.0
  %v3707 = vmax.f32 %v3599, 0.0
  %v3708 = vmax.f32 %v3600, 0.0
  %v3709 = vmax.f32 %v3601, 0.0
  %v3710 = vmax.f32 %v3602, 0.0
  %v3711 = vmax.f32 %v3603, 0.0
  %v3712 = vmax.f32 %v3604, 0.0
  %v3821 = vrot.slane %v3605, 1
  %v3822 = vrot.slane %v3606, 1
  %v3823 = vsel %vm555, %v3821, %v3822
  %v3824 = vrot.slane %v3607, 1
  %v3825 = vsel %vm555, %v3822, %v3824
  %v3826 = vrot.slane %v3608, 1
  %v3827 = vrot.slane %v3609, 1
  %v3828 = vsel %vm555, %v3826, %v3827
  %v3829 = vrot.slane %v3610, 1
  %v3830 = vsel %vm555, %v3827, %v3829
  %v3831 = vrot.slane %v3611, 1
  %v3832 = vrot.slane %v3612, 1
  %v3833 = vsel %vm555, %v3831, %v3832
  %v3834 = vrot.slane %v3613, 1
  %v3835 = vsel %vm555, %v3832, %v3834
  %v3836 = vrot.slane %v3614, 1
  %v3837 = vrot.slane %v3615, 1
  %v3838 = vsel %vm555, %v3836, %v3837
  %v3839 = vrot.slane %v3616, 1
  %v3840 = vsel %vm555, %v3837, %v3839
  %v3841 = vrot.slane %v3617, 1
  %v3842 = vrot.slane %v3618, 1
  %v3843 = vsel %vm555, %v3841, %v3842
  %v3844 = vrot.slane %v3619, 1
  %v3845 = vsel %vm555, %v3842, %v3844
  %v3846 = vrot.slane %v3620, 1
  %v3847 = vrot.slane %v3621, 1
  %v3848 = vsel %vm555, %v3846, %v3847
  %v3849 = vrot.slane %v3622, 1
  %v3850 = vsel %vm555, %v3847, %v3849
  %v3851 = vrot.slane %v3623, 1
  %v3852 = vrot.slane %v3624, 1
  %v3853 = vsel %vm555, %v3851, %v3852
  %v3854 = vrot.slane %v3625, 1
  %v3855 = vsel %vm555, %v3852, %v3854
  %v3856 = vrot.slane %v3626, 1
  %v3857 = vrot.slane %v3627, 1
  %v3858 = vsel %vm555, %v3856, %v3857
  %v3859 = vrot.slane %v3628, 1
  %v3860 = vsel %vm555, %v3857, %v3859
  %v3861 = vrot.slane %v3629, 1
  %v3862 = vrot.slane %v3630, 1
  %v3863 = vsel %vm555, %v3861, %v3862
  %v3864 = vrot.slane %v3631, 1
  %v3865 = vsel %vm555, %v3862, %v3864
  %v3866 = vrot.slane %v3632, 1
  %v3867 = vrot.slane %v3633, 1
  %v3868 = vsel %vm555, %v3866, %v3867
  %v3869 = vrot.slane %v3634, 1
  %v3870 = vsel %vm555, %v3867, %v3869
  %v3871 = vrot.slane %v3635, 1
  %v3872 = vrot.slane %v3636, 1
  %v3873 = vsel %vm555, %v3871, %v3872
  %v3874 = vrot.slane %v3637, 1
  %v3875 = vsel %vm555, %v3872, %v3874
  %v3876 = vrot.slane %v3638, 1
  %v3877 = vrot.slane %v3639, 1
  %v3878 = vsel %vm555, %v3876, %v3877
  %v3879 = vrot.slane %v3640, 1
  %v3880 = vsel %vm555, %v3877, %v3879
  %v3881 = vrot.slane %v3641, 1
  %v3882 = vrot.slane %v3642, 1
  %v3883 = vsel %vm555, %v3881, %v3882
  %v3884 = vrot.slane %v3643, 1
  %v3885 = vsel %vm555, %v3882, %v3884
  %v3886 = vrot.slane %v3644, 1
  %v3887 = vrot.slane %v3645, 1
  %v3888 = vsel %vm555, %v3886, %v3887
  %v3889 = vrot.slane %v3646, 1
  %v3890 = vsel %vm555, %v3887, %v3889
  %v3891 = vrot.slane %v3647, 1
  %v3892 = vrot.slane %v3648, 1
  %v3893 = vsel %vm555, %v3891, %v3892
  %v3894 = vrot.slane %v3649, 1
  %v3895 = vsel %vm555, %v3892, %v3894
  %v3896 = vrot.slane %v3650, 1
  %v3897 = vrot.slane %v3651, 1
  %v3898 = vsel %vm555, %v3896, %v3897
  %v3899 = vrot.slane %v3652, 1
  %v3900 = vsel %vm555, %v3897, %v3899
  %v3901 = vrot.slane %v3653, 1
  %v3902 = vrot.slane %v3654, 1
  %v3903 = vsel %vm555, %v3901, %v3902
  %v3904 = vrot.slane %v3655, 1
  %v3905 = vsel %vm555, %v3902, %v3904
  %v3906 = vrot.slane %v3656, 1
  %v3907 = vrot.slane %v3657, 1
  %v3908 = vsel %vm555, %v3906, %v3907
  %v3909 = vrot.slane %v3658, 1
  %v3910 = vsel %vm555, %v3907, %v3909
  %v3911 = vrot.slane %v3659, 1
  %v3912 = vrot.slane %v3660, 1
  %v3913 = vsel %vm555, %v3911, %v3912
  %v3914 = vrot.slane %v3661, 1
  %v3915 = vsel %vm555, %v3912, %v3914
  %v3916 = vrot.slane %v3662, 1
  %v3917 = vrot.slane %v3663, 1
  %v3918 = vsel %vm555, %v3916, %v3917
  %v3919 = vrot.slane %v3664, 1
  %v3920 = vsel %vm555, %v3917, %v3919
  %v3921 = vrot.slane %v3665, 1
  %v3922 = vrot.slane %v3666, 1
  %v3923 = vsel %vm555, %v3921, %v3922
  %v3924 = vrot.slane %v3667, 1
  %v3925 = vsel %vm555, %v3922, %v3924
  %v3926 = vrot.slane %v3668, 1
  %v3927 = vrot.slane %v3669, 1
  %v3928 = vsel %vm555, %v3926, %v3927
  %v3929 = vrot.slane %v3670, 1
  %v3930 = vsel %vm555, %v3927, %v3929
  %v3931 = vrot.slane %v3671, 1
  %v3932 = vrot.slane %v3672, 1
  %v3933 = vsel %vm555, %v3931, %v3932
  %v3934 = vrot.slane %v3673, 1
  %v3935 = vsel %vm555, %v3932, %v3934
  %v3936 = vrot.slane %v3674, 1
  %v3937 = vrot.slane %v3675, 1
  %v3938 = vsel %vm555, %v3936, %v3937
  %v3939 = vrot.slane %v3676, 1
  %v3940 = vsel %vm555, %v3937, %v3939
  %v3941 = vrot.slane %v3677, 1
  %v3942 = vrot.slane %v3678, 1
  %v3943 = vsel %vm555, %v3941, %v3942
  %v3944 = vrot.slane %v3679, 1
  %v3945 = vsel %vm555, %v3942, %v3944
  %v3946 = vrot.slane %v3680, 1
  %v3947 = vrot.slane %v3681, 1
  %v3948 = vsel %vm555, %v3946, %v3947
  %v3949 = vrot.slane %v3682, 1
  %v3950 = vsel %vm555, %v3947, %v3949
  %v3951 = vrot.slane %v3683, 1
  %v3952 = vrot.slane %v3684, 1
  %v3953 = vsel %vm555, %v3951, %v3952
  %v3954 = vrot.slane %v3685, 1
  %v3955 = vsel %vm555, %v3952, %v3954
  %v3956 = vrot.slane %v3686, 1
  %v3957 = vrot.slane %v3687, 1
  %v3958 = vsel %vm555, %v3956, %v3957
  %v3959 = vrot.slane %v3688, 1
  %v3960 = vsel %vm555, %v3957, %v3959
  %v3961 = vrot.slane %v3689, 1
  %v3962 = vrot.slane %v3690, 1
  %v3963 = vsel %vm555, %v3961, %v3962
  %v3964 = vrot.slane %v3691, 1
  %v3965 = vsel %vm555, %v3962, %v3964
  %v3966 = vrot.slane %v3692, 1
  %v3967 = vrot.slane %v3693, 1
  %v3968 = vsel %vm555, %v3966, %v3967
  %v3969 = vrot.slane %v3694, 1
  %v3970 = vsel %vm555, %v3967, %v3969
  %v3971 = vrot.slane %v3695, 1
  %v3972 = vrot.slane %v3696, 1
  %v3973 = vsel %vm555, %v3971, %v3972
  %v3974 = vrot.slane %v3697, 1
  %v3975 = vsel %vm555, %v3972, %v3974
  %v3976 = vrot.slane %v3698, 1
  %v3977 = vrot.slane %v3699, 1
  %v3978 = vsel %vm555, %v3976, %v3977
  %v3979 = vrot.slane %v3700, 1
  %v3980 = vsel %vm555, %v3977, %v3979
  %v3981 = vrot.slane %v3701, 1
  %v3982 = vrot.slane %v3702, 1
  %v3983 = vsel %vm555, %v3981, %v3982
  %v3984 = vrot.slane %v3703, 1
  %v3985 = vsel %vm555, %v3982, %v3984
  %v3986 = vrot.slane %v3704, 1
  %v3987 = vrot.slane %v3705, 1
  %v3988 = vsel %vm555, %v3986, %v3987
  %v3989 = vrot.slane %v3706, 1
  %v3990 = vsel %vm555, %v3987, %v3989
  %v3991 = vrot.slane %v3707, 1
  %v3992 = vrot.slane %v3708, 1
  %v3993 = vsel %vm555, %v3991, %v3992
  %v3994 = vrot.slane %v3709, 1
  %v3995 = vsel %vm555, %v3992, %v3994
  %v3996 = vrot.slane %v3710, 1
  %v3997 = vrot.slane %v3711, 1
  %v3998 = vsel %vm555, %v3996, %v3997
  %v3999 = vrot.slane %v3712, 1
  %v4000 = vsel %vm555, %v3997, %v3999
  %4001 = vrot.lane.b32.xlu0 %v3823, 4
  %v4002 = vpop.permute.xlu0 %4001
  %4003 = vrot.lane.b32.xlu0 %v3825, 4
  %v4004 = vpop.permute.xlu0 %4003
  %4005 = vrot.lane.b32.xlu0 %v3828, 4
  %v4006 = vpop.permute.xlu0 %4005
  %4007 = vrot.lane.b32.xlu0 %v3830, 4
  %v4008 = vpop.permute.xlu0 %4007
  %4009 = vrot.lane.b32.xlu0 %v3833, 4
  %v4010 = vpop.permute.xlu0 %4009
  %4011 = vrot.lane.b32.xlu0 %v3835, 4
  %v4012 = vpop.permute.xlu0 %4011
  %4013 = vrot.lane.b32.xlu0 %v3838, 4
  %v4014 = vpop.permute.xlu0 %4013
  %4015 = vrot.lane.b32.xlu0 %v3840, 4
  %v4016 = vpop.permute.xlu0 %4015
  %4017 = vrot.lane.b32.xlu0 %v3843, 4
  %v4018 = vpop.permute.xlu0 %4017
  %4019 = vrot.lane.b32.xlu0 %v3845, 4
  %v4020 = vpop.permute.xlu0 %4019
  %4021 = vrot.lane.b32.xlu0 %v3848, 4
  %v4022 = vpop.permute.xlu0 %4021
  %4023 = vrot.lane.b32.xlu0 %v3850, 4
  %v4024 = vpop.permute.xlu0 %4023
  %4025 = vrot.lane.b32.xlu0 %v3853, 4
  %v4026 = vpop.permute.xlu0 %4025
  %4027 = vrot.lane.b32.xlu0 %v3855, 4
  %v4028 = vpop.permute.xlu0 %4027
  %4029 = vrot.lane.b32.xlu0 %v3858, 4
  %v4030 = vpop.permute.xlu0 %4029
  %4031 = vrot.lane.b32.xlu0 %v3860, 4
  %v4032 = vpop.permute.xlu0 %4031
  %4033 = vrot.lane.b32.xlu0 %v3863, 4
  %v4034 = vpop.permute.xlu0 %4033
  %4035 = vrot.lane.b32.xlu0 %v3865, 4
  %v4036 = vpop.permute.xlu0 %4035
  %4037 = vrot.lane.b32.xlu0 %v3868, 4
  %v4038 = vpop.permute.xlu0 %4037
  %4039 = vrot.lane.b32.xlu0 %v3870, 4
  %v4040 = vpop.permute.xlu0 %4039
  %4041 = vrot.lane.b32.xlu0 %v3873, 4
  %v4042 = vpop.permute.xlu0 %4041
  %4043 = vrot.lane.b32.xlu0 %v3875, 4
  %v4044 = vpop.permute.xlu0 %4043
  %4045 = vrot.lane.b32.xlu0 %v3878, 4
  %v4046 = vpop.permute.xlu0 %4045
  %4047 = vrot.lane.b32.xlu0 %v3880, 4
  %v4048 = vpop.permute.xlu0 %4047
  %4049 = vrot.lane.b32.xlu0 %v3883, 4
  %v4050 = vpop.permute.xlu0 %4049
  %4051 = vrot.lane.b32.xlu0 %v3885, 4
  %v4052 = vpop.permute.xlu0 %4051
  %4053 = vrot.lane.b32.xlu0 %v3888, 4
  %v4054 = vpop.permute.xlu0 %4053
  %4055 = vrot.lane.b32.xlu0 %v3890, 4
  %v4056 = vpop.permute.xlu0 %4055
  %4057 = vrot.lane.b32.xlu0 %v3893, 4
  %v4058 = vpop.permute.xlu0 %4057
  %4059 = vrot.lane.b32.xlu0 %v3895, 4
  %v4060 = vpop.permute.xlu0 %4059
  %4061 = vrot.lane.b32.xlu0 %v3898, 4
  %v4062 = vpop.permute.xlu0 %4061
  %4063 = vrot.lane.b32.xlu0 %v3900, 4
  %v4064 = vpop.permute.xlu0 %4063
  %4065 = vrot.lane.b32.xlu0 %v3903, 4
  %v4066 = vpop.permute.xlu0 %4065
  %4067 = vrot.lane.b32.xlu0 %v3905, 4
  %v4068 = vpop.permute.xlu0 %4067
  %4069 = vrot.lane.b32.xlu0 %v3908, 4
  %v4070 = vpop.permute.xlu0 %4069
  %4071 = vrot.lane.b32.xlu0 %v3910, 4
  %v4072 = vpop.permute.xlu0 %4071
  %4073 = vrot.lane.b32.xlu0 %v3913, 4
  %v4074 = vpop.permute.xlu0 %4073
  %4075 = vrot.lane.b32.xlu0 %v3915, 4
  %v4076 = vpop.permute.xlu0 %4075
  %4077 = vrot.lane.b32.xlu0 %v3918, 4
  %v4078 = vpop.permute.xlu0 %4077
  %4079 = vrot.lane.b32.xlu0 %v3920, 4
  %v4080 = vpop.permute.xlu0 %4079
  %4081 = vrot.lane.b32.xlu0 %v3923, 4
  %v4082 = vpop.permute.xlu0 %4081
  %4083 = vrot.lane.b32.xlu0 %v3925, 4
  %v4084 = vpop.permute.xlu0 %4083
  %4085 = vrot.lane.b32.xlu0 %v3928, 4
  %v4086 = vpop.permute.xlu0 %4085
  %4087 = vrot.lane.b32.xlu0 %v3930, 4
  %v4088 = vpop.permute.xlu0 %4087
  %4089 = vrot.lane.b32.xlu0 %v3933, 4
  %v4090 = vpop.permute.xlu0 %4089
  %4091 = vrot.lane.b32.xlu0 %v3935, 4
  %v4092 = vpop.permute.xlu0 %4091
  %4093 = vrot.lane.b32.xlu0 %v3938, 4
  %v4094 = vpop.permute.xlu0 %4093
  %4095 = vrot.lane.b32.xlu0 %v3940, 4
  %v4096 = vpop.permute.xlu0 %4095
  %4097 = vrot.lane.b32.xlu0 %v3943, 4
  %v4098 = vpop.permute.xlu0 %4097
  %4099 = vrot.lane.b32.xlu0 %v3945, 4
  %v4100 = vpop.permute.xlu0 %4099
  %4101 = vrot.lane.b32.xlu0 %v3948, 4
  %v4102 = vpop.permute.xlu0 %4101
  %4103 = vrot.lane.b32.xlu0 %v3950, 4
  %v4104 = vpop.permute.xlu0 %4103
  %4105 = vrot.lane.b32.xlu0 %v3953, 4
  %v4106 = vpop.permute.xlu0 %4105
  %4107 = vrot.lane.b32.xlu0 %v3955, 4
  %v4108 = vpop.permute.xlu0 %4107
  %4109 = vrot.lane.b32.xlu0 %v3958, 4
  %v4110 = vpop.permute.xlu0 %4109
  %4111 = vrot.lane.b32.xlu0 %v3960, 4
  %v4112 = vpop.permute.xlu0 %4111
  %4113 = vrot.lane.b32.xlu0 %v3963, 4
  %v4114 = vpop.permute.xlu0 %4113
  %4115 = vrot.lane.b32.xlu0 %v3965, 4
  %v4116 = vpop.permute.xlu0 %4115
  %4117 = vrot.lane.b32.xlu0 %v3968, 4
  %v4118 = vpop.permute.xlu0 %4117
  %4119 = vrot.lane.b32.xlu0 %v3970, 4
  %v4120 = vpop.permute.xlu0 %4119
  %4121 = vrot.lane.b32.xlu0 %v3973, 4
  %v4122 = vpop.permute.xlu0 %4121
  %4123 = vrot.lane.b32.xlu0 %v3975, 4
  %v4124 = vpop.permute.xlu0 %4123
  %4125 = vrot.lane.b32.xlu0 %v3978, 4
  %v4126 = vpop.permute.xlu0 %4125
  %4127 = vrot.lane.b32.xlu0 %v3980, 4
  %v4128 = vpop.permute.xlu0 %4127
  %4129 = vrot.lane.b32.xlu0 %v3983, 4
  %v4130 = vpop.permute.xlu0 %4129
  %4131 = vrot.lane.b32.xlu0 %v3985, 4
  %v4132 = vpop.permute.xlu0 %4131
  %4133 = vrot.lane.b32.xlu0 %v3988, 4
  %v4134 = vpop.permute.xlu0 %4133
  %4135 = vrot.lane.b32.xlu0 %v3990, 4
  %v4136 = vpop.permute.xlu0 %4135
  %4137 = vrot.lane.b32.xlu0 %v3993, 4
  %v4138 = vpop.permute.xlu0 %4137
  %4139 = vrot.lane.b32.xlu0 %v3995, 4
  %v4140 = vpop.permute.xlu0 %4139
  %4141 = vrot.lane.b32.xlu0 %v3998, 4
  %v4142 = vpop.permute.xlu0 %4141
  %4143 = vrot.lane.b32.xlu0 %v4000, 4
  %v4144 = vpop.permute.xlu0 %4143
  %v4217 = vrot.slane %v3605, 2
  %v4218 = vrot.slane %v3606, 2
  %v4219 = vsel %vm952, %v4217, %v4218
  %v4220 = vrot.slane %v3607, 2
  %v4221 = vsel %vm952, %v4218, %v4220
  %v4222 = vrot.slane %v3608, 2
  %v4223 = vrot.slane %v3609, 2
  %v4224 = vsel %vm952, %v4222, %v4223
  %v4225 = vrot.slane %v3610, 2
  %v4226 = vsel %vm952, %v4223, %v4225
  %v4227 = vrot.slane %v3611, 2
  %v4228 = vrot.slane %v3612, 2
  %v4229 = vsel %vm952, %v4227, %v4228
  %v4230 = vrot.slane %v3613, 2
  %v4231 = vsel %vm952, %v4228, %v4230
  %v4232 = vrot.slane %v3614, 2
  %v4233 = vrot.slane %v3615, 2
  %v4234 = vsel %vm952, %v4232, %v4233
  %v4235 = vrot.slane %v3616, 2
  %v4236 = vsel %vm952, %v4233, %v4235
  %v4237 = vrot.slane %v3617, 2
  %v4238 = vrot.slane %v3618, 2
  %v4239 = vsel %vm952, %v4237, %v4238
  %v4240 = vrot.slane %v3619, 2
  %v4241 = vsel %vm952, %v4238, %v4240
  %v4242 = vrot.slane %v3620, 2
  %v4243 = vrot.slane %v3621, 2
  %v4244 = vsel %vm952, %v4242, %v4243
  %v4245 = vrot.slane %v3622, 2
  %v4246 = vsel %vm952, %v4243, %v4245
  %v4247 = vrot.slane %v3623, 2
  %v4248 = vrot.slane %v3624, 2
  %v4249 = vsel %vm952, %v4247, %v4248
  %v4250 = vrot.slane %v3625, 2
  %v4251 = vsel %vm952, %v4248, %v4250
  %v4252 = vrot.slane %v3626, 2
  %v4253 = vrot.slane %v3627, 2
  %v4254 = vsel %vm952, %v4252, %v4253
  %v4255 = vrot.slane %v3628, 2
  %v4256 = vsel %vm952, %v4253, %v4255
  %v4257 = vrot.slane %v3629, 2
  %v4258 = vrot.slane %v3630, 2
  %v4259 = vsel %vm952, %v4257, %v4258
  %v4260 = vrot.slane %v3631, 2
  %v4261 = vsel %vm952, %v4258, %v4260
  %v4262 = vrot.slane %v3632, 2
  %v4263 = vrot.slane %v3633, 2
  %v4264 = vsel %vm952, %v4262, %v4263
  %v4265 = vrot.slane %v3634, 2
  %v4266 = vsel %vm952, %v4263, %v4265
  %v4267 = vrot.slane %v3635, 2
  %v4268 = vrot.slane %v3636, 2
  %v4269 = vsel %vm952, %v4267, %v4268
  %v4270 = vrot.slane %v3637, 2
  %v4271 = vsel %vm952, %v4268, %v4270
  %v4272 = vrot.slane %v3638, 2
  %v4273 = vrot.slane %v3639, 2
  %v4274 = vsel %vm952, %v4272, %v4273
  %v4275 = vrot.slane %v3640, 2
  %v4276 = vsel %vm952, %v4273, %v4275
  %v4277 = vrot.slane %v3641, 2
  %v4278 = vrot.slane %v3642, 2
  %v4279 = vsel %vm952, %v4277, %v4278
  %v4280 = vrot.slane %v3643, 2
  %v4281 = vsel %vm952, %v4278, %v4280
  %v4282 = vrot.slane %v3644, 2
  %v4283 = vrot.slane %v3645, 2
  %v4284 = vsel %vm952, %v4282, %v4283
  %v4285 = vrot.slane %v3646, 2
  %v4286 = vsel %vm952, %v4283, %v4285
  %v4287 = vrot.slane %v3647, 2
  %v4288 = vrot.slane %v3648, 2
  %v4289 = vsel %vm952, %v4287, %v4288
  %v4290 = vrot.slane %v3649, 2
  %v4291 = vsel %vm952, %v4288, %v4290
  %v4292 = vrot.slane %v3650, 2
  %v4293 = vrot.slane %v3651, 2
  %v4294 = vsel %vm952, %v4292, %v4293
  %v4295 = vrot.slane %v3652, 2
  %v4296 = vsel %vm952, %v4293, %v4295
  %v4297 = vrot.slane %v3653, 2
  %v4298 = vrot.slane %v3654, 2
  %v4299 = vsel %vm952, %v4297, %v4298
  %v4300 = vrot.slane %v3655, 2
  %v4301 = vsel %vm952, %v4298, %v4300
  %v4302 = vrot.slane %v3656, 2
  %v4303 = vrot.slane %v3657, 2
  %v4304 = vsel %vm952, %v4302, %v4303
  %v4305 = vrot.slane %v3658, 2
  %v4306 = vsel %vm952, %v4303, %v4305
  %v4307 = vrot.slane %v3659, 2
  %v4308 = vrot.slane %v3660, 2
  %v4309 = vsel %vm952, %v4307, %v4308
  %v4310 = vrot.slane %v3661, 2
  %v4311 = vsel %vm952, %v4308, %v4310
  %v4312 = vrot.slane %v3662, 2
  %v4313 = vrot.slane %v3663, 2
  %v4314 = vsel %vm952, %v4312, %v4313
  %v4315 = vrot.slane %v3664, 2
  %v4316 = vsel %vm952, %v4313, %v4315
  %v4317 = vrot.slane %v3665, 2
  %v4318 = vrot.slane %v3666, 2
  %v4319 = vsel %vm952, %v4317, %v4318
  %v4320 = vrot.slane %v3667, 2
  %v4321 = vsel %vm952, %v4318, %v4320
  %v4322 = vrot.slane %v3668, 2
  %v4323 = vrot.slane %v3669, 2
  %v4324 = vsel %vm952, %v4322, %v4323
  %v4325 = vrot.slane %v3670, 2
  %v4326 = vsel %vm952, %v4323, %v4325
  %v4327 = vrot.slane %v3671, 2
  %v4328 = vrot.slane %v3672, 2
  %v4329 = vsel %vm952, %v4327, %v4328
  %v4330 = vrot.slane %v3673, 2
  %v4331 = vsel %vm952, %v4328, %v4330
  %v4332 = vrot.slane %v3674, 2
  %v4333 = vrot.slane %v3675, 2
  %v4334 = vsel %vm952, %v4332, %v4333
  %v4335 = vrot.slane %v3676, 2
  %v4336 = vsel %vm952, %v4333, %v4335
  %v4337 = vrot.slane %v3677, 2
  %v4338 = vrot.slane %v3678, 2
  %v4339 = vsel %vm952, %v4337, %v4338
  %v4340 = vrot.slane %v3679, 2
  %v4341 = vsel %vm952, %v4338, %v4340
  %v4342 = vrot.slane %v3680, 2
  %v4343 = vrot.slane %v3681, 2
  %v4344 = vsel %vm952, %v4342, %v4343
  %v4345 = vrot.slane %v3682, 2
  %v4346 = vsel %vm952, %v4343, %v4345
  %v4347 = vrot.slane %v3683, 2
  %v4348 = vrot.slane %v3684, 2
  %v4349 = vsel %vm952, %v4347, %v4348
  %v4350 = vrot.slane %v3685, 2
  %v4351 = vsel %vm952, %v4348, %v4350
  %v4352 = vrot.slane %v3686, 2
  %v4353 = vrot.slane %v3687, 2
  %v4354 = vsel %vm952, %v4352, %v4353
  %v4355 = vrot.slane %v3688, 2
  %v4356 = vsel %vm952, %v4353, %v4355
  %v4357 = vrot.slane %v3689, 2
  %v4358 = vrot.slane %v3690, 2
  %v4359 = vsel %vm952, %v4357, %v4358
  %v4360 = vrot.slane %v3691, 2
  %v4361 = vsel %vm952, %v4358, %v4360
  %v4362 = vrot.slane %v3692, 2
  %v4363 = vrot.slane %v3693, 2
  %v4364 = vsel %vm952, %v4362, %v4363
  %v4365 = vrot.slane %v3694, 2
  %v4366 = vsel %vm952, %v4363, %v4365
  %v4367 = vrot.slane %v3695, 2
  %v4368 = vrot.slane %v3696, 2
  %v4369 = vsel %vm952, %v4367, %v4368
  %v4370 = vrot.slane %v3697, 2
  %v4371 = vsel %vm952, %v4368, %v4370
  %v4372 = vrot.slane %v3698, 2
  %v4373 = vrot.slane %v3699, 2
  %v4374 = vsel %vm952, %v4372, %v4373
  %v4375 = vrot.slane %v3700, 2
  %v4376 = vsel %vm952, %v4373, %v4375
  %v4377 = vrot.slane %v3701, 2
  %v4378 = vrot.slane %v3702, 2
  %v4379 = vsel %vm952, %v4377, %v4378
  %v4380 = vrot.slane %v3703, 2
  %v4381 = vsel %vm952, %v4378, %v4380
  %v4382 = vrot.slane %v3704, 2
  %v4383 = vrot.slane %v3705, 2
  %v4384 = vsel %vm952, %v4382, %v4383
  %v4385 = vrot.slane %v3706, 2
  %v4386 = vsel %vm952, %v4383, %v4385
  %v4387 = vrot.slane %v3707, 2
  %v4388 = vrot.slane %v3708, 2
  %v4389 = vsel %vm952, %v4387, %v4388
  %v4390 = vrot.slane %v3709, 2
  %v4391 = vsel %vm952, %v4388, %v4390
  %v4392 = vrot.slane %v3710, 2
  %v4393 = vrot.slane %v3711, 2
  %v4394 = vsel %vm952, %v4392, %v4393
  %v4395 = vrot.slane %v3712, 2
  %v4396 = vsel %vm952, %v4393, %v4395
  %4397 = vrot.lane.b32.xlu0 %v4219, 8
  %v4398 = vpop.permute.xlu0 %4397
  %4399 = vrot.lane.b32.xlu0 %v4221, 8
  %v4400 = vpop.permute.xlu0 %4399
  %4401 = vrot.lane.b32.xlu0 %v4224, 8
  %v4402 = vpop.permute.xlu0 %4401
  %4403 = vrot.lane.b32.xlu0 %v4226, 8
  %v4404 = vpop.permute.xlu0 %4403
  %4405 = vrot.lane.b32.xlu0 %v4229, 8
  %v4406 = vpop.permute.xlu0 %4405
  %4407 = vrot.lane.b32.xlu0 %v4231, 8
  %v4408 = vpop.permute.xlu0 %4407
  %4409 = vrot.lane.b32.xlu0 %v4234, 8
  %v4410 = vpop.permute.xlu0 %4409
  %4411 = vrot.lane.b32.xlu0 %v4236, 8
  %v4412 = vpop.permute.xlu0 %4411
  %4413 = vrot.lane.b32.xlu0 %v4239, 8
  %v4414 = vpop.permute.xlu0 %4413
  %4415 = vrot.lane.b32.xlu0 %v4241, 8
  %v4416 = vpop.permute.xlu0 %4415
  %4417 = vrot.lane.b32.xlu0 %v4244, 8
  %v4418 = vpop.permute.xlu0 %4417
  %4419 = vrot.lane.b32.xlu0 %v4246, 8
  %v4420 = vpop.permute.xlu0 %4419
  %4421 = vrot.lane.b32.xlu0 %v4249, 8
  %v4422 = vpop.permute.xlu0 %4421
  %4423 = vrot.lane.b32.xlu0 %v4251, 8
  %v4424 = vpop.permute.xlu0 %4423
  %4425 = vrot.lane.b32.xlu0 %v4254, 8
  %v4426 = vpop.permute.xlu0 %4425
  %4427 = vrot.lane.b32.xlu0 %v4256, 8
  %v4428 = vpop.permute.xlu0 %4427
  %4429 = vrot.lane.b32.xlu0 %v4259, 8
  %v4430 = vpop.permute.xlu0 %4429
  %4431 = vrot.lane.b32.xlu0 %v4261, 8
  %v4432 = vpop.permute.xlu0 %4431
  %4433 = vrot.lane.b32.xlu0 %v4264, 8
  %v4434 = vpop.permute.xlu0 %4433
  %4435 = vrot.lane.b32.xlu0 %v4266, 8
  %v4436 = vpop.permute.xlu0 %4435
  %4437 = vrot.lane.b32.xlu0 %v4269, 8
  %v4438 = vpop.permute.xlu0 %4437
  %4439 = vrot.lane.b32.xlu0 %v4271, 8
  %v4440 = vpop.permute.xlu0 %4439
  %4441 = vrot.lane.b32.xlu0 %v4274, 8
  %v4442 = vpop.permute.xlu0 %4441
  %4443 = vrot.lane.b32.xlu0 %v4276, 8
  %v4444 = vpop.permute.xlu0 %4443
  %4445 = vrot.lane.b32.xlu0 %v4279, 8
  %v4446 = vpop.permute.xlu0 %4445
  %4447 = vrot.lane.b32.xlu0 %v4281, 8
  %v4448 = vpop.permute.xlu0 %4447
  %4449 = vrot.lane.b32.xlu0 %v4284, 8
  %v4450 = vpop.permute.xlu0 %4449
  %4451 = vrot.lane.b32.xlu0 %v4286, 8
  %v4452 = vpop.permute.xlu0 %4451
  %4453 = vrot.lane.b32.xlu0 %v4289, 8
  %v4454 = vpop.permute.xlu0 %4453
  %4455 = vrot.lane.b32.xlu0 %v4291, 8
  %v4456 = vpop.permute.xlu0 %4455
  %4457 = vrot.lane.b32.xlu0 %v4294, 8
  %v4458 = vpop.permute.xlu0 %4457
  %4459 = vrot.lane.b32.xlu0 %v4296, 8
  %v4460 = vpop.permute.xlu0 %4459
  %4461 = vrot.lane.b32.xlu0 %v4299, 8
  %v4462 = vpop.permute.xlu0 %4461
  %4463 = vrot.lane.b32.xlu0 %v4301, 8
  %v4464 = vpop.permute.xlu0 %4463
  %4465 = vrot.lane.b32.xlu0 %v4304, 8
  %v4466 = vpop.permute.xlu0 %4465
  %4467 = vrot.lane.b32.xlu0 %v4306, 8
  %v4468 = vpop.permute.xlu0 %4467
  %4469 = vrot.lane.b32.xlu0 %v4309, 8
  %v4470 = vpop.permute.xlu0 %4469
  %4471 = vrot.lane.b32.xlu0 %v4311, 8
  %v4472 = vpop.permute.xlu0 %4471
  %4473 = vrot.lane.b32.xlu0 %v4314, 8
  %v4474 = vpop.permute.xlu0 %4473
  %4475 = vrot.lane.b32.xlu0 %v4316, 8
  %v4476 = vpop.permute.xlu0 %4475
  %4477 = vrot.lane.b32.xlu0 %v4319, 8
  %v4478 = vpop.permute.xlu0 %4477
  %4479 = vrot.lane.b32.xlu0 %v4321, 8
  %v4480 = vpop.permute.xlu0 %4479
  %4481 = vrot.lane.b32.xlu0 %v4324, 8
  %v4482 = vpop.permute.xlu0 %4481
  %4483 = vrot.lane.b32.xlu0 %v4326, 8
  %v4484 = vpop.permute.xlu0 %4483
  %4485 = vrot.lane.b32.xlu0 %v4329, 8
  %v4486 = vpop.permute.xlu0 %4485
  %4487 = vrot.lane.b32.xlu0 %v4331, 8
  %v4488 = vpop.permute.xlu0 %4487
  %4489 = vrot.lane.b32.xlu0 %v4334, 8
  %v4490 = vpop.permute.xlu0 %4489
  %4491 = vrot.lane.b32.xlu0 %v4336, 8
  %v4492 = vpop.permute.xlu0 %4491
  %4493 = vrot.lane.b32.xlu0 %v4339, 8
  %v4494 = vpop.permute.xlu0 %4493
  %4495 = vrot.lane.b32.xlu0 %v4341, 8
  %v4496 = vpop.permute.xlu0 %4495
  %4497 = vrot.lane.b32.xlu0 %v4344, 8
  %v4498 = vpop.permute.xlu0 %4497
  %4499 = vrot.lane.b32.xlu0 %v4346, 8
  %v4500 = vpop.permute.xlu0 %4499
  %4501 = vrot.lane.b32.xlu0 %v4349, 8
  %v4502 = vpop.permute.xlu0 %4501
  %4503 = vrot.lane.b32.xlu0 %v4351, 8
  %v4504 = vpop.permute.xlu0 %4503
  %4505 = vrot.lane.b32.xlu0 %v4354, 8
  %v4506 = vpop.permute.xlu0 %4505
  %4507 = vrot.lane.b32.xlu0 %v4356, 8
  %v4508 = vpop.permute.xlu0 %4507
  %4509 = vrot.lane.b32.xlu0 %v4359, 8
  %v4510 = vpop.permute.xlu0 %4509
  %4511 = vrot.lane.b32.xlu0 %v4361, 8
  %v4512 = vpop.permute.xlu0 %4511
  %4513 = vrot.lane.b32.xlu0 %v4364, 8
  %v4514 = vpop.permute.xlu0 %4513
  %4515 = vrot.lane.b32.xlu0 %v4366, 8
  %v4516 = vpop.permute.xlu0 %4515
  %4517 = vrot.lane.b32.xlu0 %v4369, 8
  %v4518 = vpop.permute.xlu0 %4517
  %4519 = vrot.lane.b32.xlu0 %v4371, 8
  %v4520 = vpop.permute.xlu0 %4519
  %4521 = vrot.lane.b32.xlu0 %v4374, 8
  %v4522 = vpop.permute.xlu0 %4521
  %4523 = vrot.lane.b32.xlu0 %v4376, 8
  %v4524 = vpop.permute.xlu0 %4523
  %4525 = vrot.lane.b32.xlu0 %v4379, 8
  %v4526 = vpop.permute.xlu0 %4525
  %4527 = vrot.lane.b32.xlu0 %v4381, 8
  %v4528 = vpop.permute.xlu0 %4527
  %4529 = vrot.lane.b32.xlu0 %v4384, 8
  %v4530 = vpop.permute.xlu0 %4529
  %4531 = vrot.lane.b32.xlu0 %v4386, 8
  %v4532 = vpop.permute.xlu0 %4531
  %4533 = vrot.lane.b32.xlu0 %v4389, 8
  %v4534 = vpop.permute.xlu0 %4533
  %4535 = vrot.lane.b32.xlu0 %v4391, 8
  %v4536 = vpop.permute.xlu0 %4535
  %4537 = vrot.lane.b32.xlu0 %v4394, 8
  %v4538 = vpop.permute.xlu0 %4537
  %4539 = vrot.lane.b32.xlu0 %v4396, 8
  %v4540 = vpop.permute.xlu0 %4539
  %v4613 = vsel %vm14, %v3605, %v4002
  %v4614 = vsel %vm14, %v3606, %v4004
  %v4615 = vsel %vm14, %v3608, %v4006
  %v4616 = vsel %vm14, %v3609, %v4008
  %v4617 = vsel %vm14, %v3611, %v4010
  %v4618 = vsel %vm14, %v3612, %v4012
  %v4619 = vsel %vm14, %v3614, %v4014
  %v4620 = vsel %vm14, %v3615, %v4016
  %v4621 = vsel %vm14, %v3617, %v4018
  %v4622 = vsel %vm14, %v3618, %v4020
  %v4623 = vsel %vm14, %v3620, %v4022
  %v4624 = vsel %vm14, %v3621, %v4024
  %v4625 = vsel %vm14, %v3623, %v4026
  %v4626 = vsel %vm14, %v3624, %v4028
  %v4627 = vsel %vm14, %v3626, %v4030
  %v4628 = vsel %vm14, %v3627, %v4032
  %v4629 = vsel %vm14, %v3629, %v4034
  %v4630 = vsel %vm14, %v3630, %v4036
  %v4631 = vsel %vm14, %v3632, %v4038
  %v4632 = vsel %vm14, %v3633, %v4040
  %v4633 = vsel %vm14, %v3635, %v4042
  %v4634 = vsel %vm14, %v3636, %v4044
  %v4635 = vsel %vm14, %v3638, %v4046
  %v4636 = vsel %vm14, %v3639, %v4048
  %v4637 = vsel %vm14, %v3641, %v4050
  %v4638 = vsel %vm14, %v3642, %v4052
  %v4639 = vsel %vm14, %v3644, %v4054
  %v4640 = vsel %vm14, %v3645, %v4056
  %v4641 = vsel %vm14, %v3647, %v4058
  %v4642 = vsel %vm14, %v3648, %v4060
  %v4643 = vsel %vm14, %v3650, %v4062
  %v4644 = vsel %vm14, %v3651, %v4064
  %v4645 = vsel %vm14, %v3653, %v4066
  %v4646 = vsel %vm14, %v3654, %v4068
  %v4647 = vsel %vm14, %v3656, %v4070
  %v4648 = vsel %vm14, %v3657, %v4072
  %v4649 = vsel %vm14, %v3659, %v4074
  %v4650 = vsel %vm14, %v3660, %v4076
  %v4651 = vsel %vm14, %v3662, %v4078
  %v4652 = vsel %vm14, %v3663, %v4080
  %v4653 = vsel %vm14, %v3665, %v4082
  %v4654 = vsel %vm14, %v3666, %v4084
  %v4655 = vsel %vm14, %v3668, %v4086
  %v4656 = vsel %vm14, %v3669, %v4088
  %v4657 = vsel %vm14, %v3671, %v4090
  %v4658 = vsel %vm14, %v3672, %v4092
  %v4659 = vsel %vm14, %v3674, %v4094
  %v4660 = vsel %vm14, %v3675, %v4096
  %v4661 = vsel %vm14, %v3677, %v4098
  %v4662 = vsel %vm14, %v3678, %v4100
  %v4663 = vsel %vm14, %v3680, %v4102
  %v4664 = vsel %vm14, %v3681, %v4104
  %v4665 = vsel %vm14, %v3683, %v4106
  %v4666 = vsel %vm14, %v3684, %v4108
  %v4667 = vsel %vm14, %v3686, %v4110
  %v4668 = vsel %vm14, %v3687, %v4112
  %v4669 = vsel %vm14, %v3689, %v4114
  %v4670 = vsel %vm14, %v3690, %v4116
  %v4671 = vsel %vm14, %v3692, %v4118
  %v4672 = vsel %vm14, %v3693, %v4120
  %v4673 = vsel %vm14, %v3695, %v4122
  %v4674 = vsel %vm14, %v3696, %v4124
  %v4675 = vsel %vm14, %v3698, %v4126
  %v4676 = vsel %vm14, %v3699, %v4128
  %v4677 = vsel %vm14, %v3701, %v4130
  %v4678 = vsel %vm14, %v3702, %v4132
  %v4679 = vsel %vm14, %v3704, %v4134
  %v4680 = vsel %vm14, %v3705, %v4136
  %v4681 = vsel %vm14, %v3707, %v4138
  %v4682 = vsel %vm14, %v3708, %v4140
  %v4683 = vsel %vm14, %v3710, %v4142
  %v4684 = vsel %vm14, %v3711, %v4144
  %v4685 = vsel %vm1421, %v4613, %v4398
  %v4686 = vsel %vm1421, %v4614, %v4400
  %v4687 = vsel %vm1421, %v4615, %v4402
  %v4688 = vsel %vm1421, %v4616, %v4404
  %v4689 = vsel %vm1421, %v4617, %v4406
  %v4690 = vsel %vm1421, %v4618, %v4408
  %v4691 = vsel %vm1421, %v4619, %v4410
  %v4692 = vsel %vm1421, %v4620, %v4412
  %v4693 = vsel %vm1421, %v4621, %v4414
  %v4694 = vsel %vm1421, %v4622, %v4416
  %v4695 = vsel %vm1421, %v4623, %v4418
  %v4696 = vsel %vm1421, %v4624, %v4420
  %v4697 = vsel %vm1421, %v4625, %v4422
  %v4698 = vsel %vm1421, %v4626, %v4424
  %v4699 = vsel %vm1421, %v4627, %v4426
  %v4700 = vsel %vm1421, %v4628, %v4428
  %v4701 = vsel %vm1421, %v4629, %v4430
  %v4702 = vsel %vm1421, %v4630, %v4432
  %v4703 = vsel %vm1421, %v4631, %v4434
  %v4704 = vsel %vm1421, %v4632, %v4436
  %v4705 = vsel %vm1421, %v4633, %v4438
  %v4706 = vsel %vm1421, %v4634, %v4440
  %v4707 = vsel %vm1421, %v4635, %v4442
  %v4708 = vsel %vm1421, %v4636, %v4444
  %v4709 = vsel %vm1421, %v4637, %v4446
  %v4710 = vsel %vm1421, %v4638, %v4448
  %v4711 = vsel %vm1421, %v4639, %v4450
  %v4712 = vsel %vm1421, %v4640, %v4452
  %v4713 = vsel %vm1421, %v4641, %v4454
  %v4714 = vsel %vm1421, %v4642, %v4456
  %v4715 = vsel %vm1421, %v4643, %v4458
  %v4716 = vsel %vm1421, %v4644, %v4460
  %v4717 = vsel %vm1421, %v4645, %v4462
  %v4718 = vsel %vm1421, %v4646, %v4464
  %v4719 = vsel %vm1421, %v4647, %v4466
  %v4720 = vsel %vm1421, %v4648, %v4468
  %v4721 = vsel %vm1421, %v4649, %v4470
  %v4722 = vsel %vm1421, %v4650, %v4472
  %v4723 = vsel %vm1421, %v4651, %v4474
  %v4724 = vsel %vm1421, %v4652, %v4476
  %v4725 = vsel %vm1421, %v4653, %v4478
  %v4726 = vsel %vm1421, %v4654, %v4480
  %v4727 = vsel %vm1421, %v4655, %v4482
  %v4728 = vsel %vm1421, %v4656, %v4484
  %v4729 = vsel %vm1421, %v4657, %v4486
  %v4730 = vsel %vm1421, %v4658, %v4488
  %v4731 = vsel %vm1421, %v4659, %v4490
  %v4732 = vsel %vm1421, %v4660, %v4492
  %v4733 = vsel %vm1421, %v4661, %v4494
  %v4734 = vsel %vm1421, %v4662, %v4496
  %v4735 = vsel %vm1421, %v4663, %v4498
  %v4736 = vsel %vm1421, %v4664, %v4500
  %v4737 = vsel %vm1421, %v4665, %v4502
  %v4738 = vsel %vm1421, %v4666, %v4504
  %v4739 = vsel %vm1421, %v4667, %v4506
  %v4740 = vsel %vm1421, %v4668, %v4508
  %v4741 = vsel %vm1421, %v4669, %v4510
  %v4742 = vsel %vm1421, %v4670, %v4512
  %v4743 = vsel %vm1421, %v4671, %v4514
  %v4744 = vsel %vm1421, %v4672, %v4516
  %v4745 = vsel %vm1421, %v4673, %v4518
  %v4746 = vsel %vm1421, %v4674, %v4520
  %v4747 = vsel %vm1421, %v4675, %v4522
  %v4748 = vsel %vm1421, %v4676, %v4524
  %v4749 = vsel %vm1421, %v4677, %v4526
  %v4750 = vsel %vm1421, %v4678, %v4528
  %v4751 = vsel %vm1421, %v4679, %v4530
  %v4752 = vsel %vm1421, %v4680, %v4532
  %v4753 = vsel %vm1421, %v4681, %v4534
  %v4754 = vsel %vm1421, %v4682, %v4536
  %v4755 = vsel %vm1421, %v4683, %v4538
  %v4756 = vsel %vm1421, %v4684, %v4540
  %4821 = vrot.lane.b32.xlu0 %v4687, 12
  %v4822 = vpop.permute.xlu0 %4821
  %4823 = vrot.lane.b32.xlu0 %v4688, 12
  %v4824 = vpop.permute.xlu0 %4823
  %4825 = vrot.lane.b32.xlu0 %v4689, 12
  %v4826 = vpop.permute.xlu0 %4825
  %4827 = vrot.lane.b32.xlu0 %v4690, 12
  %v4828 = vpop.permute.xlu0 %4827
  %4829 = vrot.lane.b32.xlu0 %v4691, 12
  %v4830 = vpop.permute.xlu0 %4829
  %4831 = vrot.lane.b32.xlu0 %v4692, 12
  %v4832 = vpop.permute.xlu0 %4831
  %4833 = vrot.lane.b32.xlu0 %v4693, 12
  %v4834 = vpop.permute.xlu0 %4833
  %4835 = vrot.lane.b32.xlu0 %v4694, 12
  %v4836 = vpop.permute.xlu0 %4835
  %4837 = vrot.lane.b32.xlu0 %v4695, 12
  %v4838 = vpop.permute.xlu0 %4837
  %4839 = vrot.lane.b32.xlu0 %v4696, 12
  %v4840 = vpop.permute.xlu0 %4839
  %4841 = vrot.lane.b32.xlu0 %v4697, 12
  %v4842 = vpop.permute.xlu0 %4841
  %4843 = vrot.lane.b32.xlu0 %v4698, 12
  %v4844 = vpop.permute.xlu0 %4843
  %4845 = vrot.lane.b32.xlu0 %v4699, 12
  %v4846 = vpop.permute.xlu0 %4845
  %4847 = vrot.lane.b32.xlu0 %v4700, 12
  %v4848 = vpop.permute.xlu0 %4847
  %4849 = vrot.lane.b32.xlu0 %v4701, 12
  %v4850 = vpop.permute.xlu0 %4849
  %4851 = vrot.lane.b32.xlu0 %v4702, 12
  %v4852 = vpop.permute.xlu0 %4851
  %4853 = vrot.lane.b32.xlu0 %v4703, 12
  %v4854 = vpop.permute.xlu0 %4853
  %4855 = vrot.lane.b32.xlu0 %v4704, 12
  %v4856 = vpop.permute.xlu0 %4855
  %4857 = vrot.lane.b32.xlu0 %v4705, 12
  %v4858 = vpop.permute.xlu0 %4857
  %4859 = vrot.lane.b32.xlu0 %v4706, 12
  %v4860 = vpop.permute.xlu0 %4859
  %4861 = vrot.lane.b32.xlu0 %v4707, 12
  %v4862 = vpop.permute.xlu0 %4861
  %4863 = vrot.lane.b32.xlu0 %v4708, 12
  %v4864 = vpop.permute.xlu0 %4863
  %4865 = vrot.lane.b32.xlu0 %v4709, 12
  %v4866 = vpop.permute.xlu0 %4865
  %4867 = vrot.lane.b32.xlu0 %v4710, 12
  %v4868 = vpop.permute.xlu0 %4867
  %4869 = vrot.lane.b32.xlu0 %v4711, 12
  %v4870 = vpop.permute.xlu0 %4869
  %4871 = vrot.lane.b32.xlu0 %v4712, 12
  %v4872 = vpop.permute.xlu0 %4871
  %4873 = vrot.lane.b32.xlu0 %v4713, 12
  %v4874 = vpop.permute.xlu0 %4873
  %4875 = vrot.lane.b32.xlu0 %v4714, 12
  %v4876 = vpop.permute.xlu0 %4875
  %4877 = vrot.lane.b32.xlu0 %v4715, 12
  %v4878 = vpop.permute.xlu0 %4877
  %4879 = vrot.lane.b32.xlu0 %v4716, 12
  %v4880 = vpop.permute.xlu0 %4879
  %4881 = vrot.lane.b32.xlu0 %v4717, 12
  %v4882 = vpop.permute.xlu0 %4881
  %4883 = vrot.lane.b32.xlu0 %v4718, 12
  %v4884 = vpop.permute.xlu0 %4883
  %4885 = vrot.lane.b32.xlu0 %v4723, 12
  %v4886 = vpop.permute.xlu0 %4885
  %4887 = vrot.lane.b32.xlu0 %v4724, 12
  %v4888 = vpop.permute.xlu0 %4887
  %4889 = vrot.lane.b32.xlu0 %v4725, 12
  %v4890 = vpop.permute.xlu0 %4889
  %4891 = vrot.lane.b32.xlu0 %v4726, 12
  %v4892 = vpop.permute.xlu0 %4891
  %4893 = vrot.lane.b32.xlu0 %v4727, 12
  %v4894 = vpop.permute.xlu0 %4893
  %4895 = vrot.lane.b32.xlu0 %v4728, 12
  %v4896 = vpop.permute.xlu0 %4895
  %4897 = vrot.lane.b32.xlu0 %v4729, 12
  %v4898 = vpop.permute.xlu0 %4897
  %4899 = vrot.lane.b32.xlu0 %v4730, 12
  %v4900 = vpop.permute.xlu0 %4899
  %4901 = vrot.lane.b32.xlu0 %v4731, 12
  %v4902 = vpop.permute.xlu0 %4901
  %4903 = vrot.lane.b32.xlu0 %v4732, 12
  %v4904 = vpop.permute.xlu0 %4903
  %4905 = vrot.lane.b32.xlu0 %v4733, 12
  %v4906 = vpop.permute.xlu0 %4905
  %4907 = vrot.lane.b32.xlu0 %v4734, 12
  %v4908 = vpop.permute.xlu0 %4907
  %4909 = vrot.lane.b32.xlu0 %v4735, 12
  %v4910 = vpop.permute.xlu0 %4909
  %4911 = vrot.lane.b32.xlu0 %v4736, 12
  %v4912 = vpop.permute.xlu0 %4911
  %4913 = vrot.lane.b32.xlu0 %v4737, 12
  %v4914 = vpop.permute.xlu0 %4913
  %4915 = vrot.lane.b32.xlu0 %v4738, 12
  %v4916 = vpop.permute.xlu0 %4915
  %4917 = vrot.lane.b32.xlu0 %v4739, 12
  %v4918 = vpop.permute.xlu0 %4917
  %4919 = vrot.lane.b32.xlu0 %v4740, 12
  %v4920 = vpop.permute.xlu0 %4919
  %4921 = vrot.lane.b32.xlu0 %v4741, 12
  %v4922 = vpop.permute.xlu0 %4921
  %4923 = vrot.lane.b32.xlu0 %v4742, 12
  %v4924 = vpop.permute.xlu0 %4923
  %4925 = vrot.lane.b32.xlu0 %v4743, 12
  %v4926 = vpop.permute.xlu0 %4925
  %4927 = vrot.lane.b32.xlu0 %v4744, 12
  %v4928 = vpop.permute.xlu0 %4927
  %4929 = vrot.lane.b32.xlu0 %v4745, 12
  %v4930 = vpop.permute.xlu0 %4929
  %4931 = vrot.lane.b32.xlu0 %v4746, 12
  %v4932 = vpop.permute.xlu0 %4931
  %4933 = vrot.lane.b32.xlu0 %v4747, 12
  %v4934 = vpop.permute.xlu0 %4933
  %4935 = vrot.lane.b32.xlu0 %v4748, 12
  %v4936 = vpop.permute.xlu0 %4935
  %4937 = vrot.lane.b32.xlu0 %v4749, 12
  %v4938 = vpop.permute.xlu0 %4937
  %4939 = vrot.lane.b32.xlu0 %v4750, 12
  %v4940 = vpop.permute.xlu0 %4939
  %4941 = vrot.lane.b32.xlu0 %v4751, 12
  %v4942 = vpop.permute.xlu0 %4941
  %4943 = vrot.lane.b32.xlu0 %v4752, 12
  %v4944 = vpop.permute.xlu0 %4943
  %4945 = vrot.lane.b32.xlu0 %v4753, 12
  %v4946 = vpop.permute.xlu0 %4945
  %4947 = vrot.lane.b32.xlu0 %v4754, 12
  %v4948 = vpop.permute.xlu0 %4947
  %5017 = vrot.lane.b32.xlu0 %v4689, 24
  %v5018 = vpop.permute.xlu0 %5017
  %5019 = vrot.lane.b32.xlu0 %v4690, 24
  %v5020 = vpop.permute.xlu0 %5019
  %5021 = vrot.lane.b32.xlu0 %v4691, 24
  %v5022 = vpop.permute.xlu0 %5021
  %5023 = vrot.lane.b32.xlu0 %v4692, 24
  %v5024 = vpop.permute.xlu0 %5023
  %5025 = vrot.lane.b32.xlu0 %v4693, 24
  %v5026 = vpop.permute.xlu0 %5025
  %5027 = vrot.lane.b32.xlu0 %v4694, 24
  %v5028 = vpop.permute.xlu0 %5027
  %5029 = vrot.lane.b32.xlu0 %v4695, 24
  %v5030 = vpop.permute.xlu0 %5029
  %5031 = vrot.lane.b32.xlu0 %v4696, 24
  %v5032 = vpop.permute.xlu0 %5031
  %5033 = vrot.lane.b32.xlu0 %v4697, 24
  %v5034 = vpop.permute.xlu0 %5033
  %5035 = vrot.lane.b32.xlu0 %v4698, 24
  %v5036 = vpop.permute.xlu0 %5035
  %5037 = vrot.lane.b32.xlu0 %v4699, 24
  %v5038 = vpop.permute.xlu0 %5037
  %5039 = vrot.lane.b32.xlu0 %v4700, 24
  %v5040 = vpop.permute.xlu0 %5039
  %5041 = vrot.lane.b32.xlu0 %v4701, 24
  %v5042 = vpop.permute.xlu0 %5041
  %5043 = vrot.lane.b32.xlu0 %v4702, 24
  %v5044 = vpop.permute.xlu0 %5043
  %5045 = vrot.lane.b32.xlu0 %v4703, 24
  %v5046 = vpop.permute.xlu0 %5045
  %5047 = vrot.lane.b32.xlu0 %v4704, 24
  %v5048 = vpop.permute.xlu0 %5047
  %5049 = vrot.lane.b32.xlu0 %v4705, 24
  %v5050 = vpop.permute.xlu0 %5049
  %5051 = vrot.lane.b32.xlu0 %v4706, 24
  %v5052 = vpop.permute.xlu0 %5051
  %5053 = vrot.lane.b32.xlu0 %v4707, 24
  %v5054 = vpop.permute.xlu0 %5053
  %5055 = vrot.lane.b32.xlu0 %v4708, 24
  %v5056 = vpop.permute.xlu0 %5055
  %5057 = vrot.lane.b32.xlu0 %v4709, 24
  %v5058 = vpop.permute.xlu0 %5057
  %5059 = vrot.lane.b32.xlu0 %v4710, 24
  %v5060 = vpop.permute.xlu0 %5059
  %5061 = vrot.lane.b32.xlu0 %v4711, 24
  %v5062 = vpop.permute.xlu0 %5061
  %5063 = vrot.lane.b32.xlu0 %v4712, 24
  %v5064 = vpop.permute.xlu0 %5063
  %5065 = vrot.lane.b32.xlu0 %v4713, 24
  %v5066 = vpop.permute.xlu0 %5065
  %5067 = vrot.lane.b32.xlu0 %v4714, 24
  %v5068 = vpop.permute.xlu0 %5067
  %5069 = vrot.lane.b32.xlu0 %v4715, 24
  %v5070 = vpop.permute.xlu0 %5069
  %5071 = vrot.lane.b32.xlu0 %v4716, 24
  %v5072 = vpop.permute.xlu0 %5071
  %5073 = vrot.lane.b32.xlu0 %v4717, 24
  %v5074 = vpop.permute.xlu0 %5073
  %5075 = vrot.lane.b32.xlu0 %v4718, 24
  %v5076 = vpop.permute.xlu0 %5075
  %5077 = vrot.lane.b32.xlu0 %v4719, 24
  %v5078 = vpop.permute.xlu0 %5077
  %5079 = vrot.lane.b32.xlu0 %v4720, 24
  %v5080 = vpop.permute.xlu0 %5079
  %5081 = vrot.lane.b32.xlu0 %v4725, 24
  %v5082 = vpop.permute.xlu0 %5081
  %5083 = vrot.lane.b32.xlu0 %v4726, 24
  %v5084 = vpop.permute.xlu0 %5083
  %5085 = vrot.lane.b32.xlu0 %v4727, 24
  %v5086 = vpop.permute.xlu0 %5085
  %5087 = vrot.lane.b32.xlu0 %v4728, 24
  %v5088 = vpop.permute.xlu0 %5087
  %5089 = vrot.lane.b32.xlu0 %v4729, 24
  %v5090 = vpop.permute.xlu0 %5089
  %5091 = vrot.lane.b32.xlu0 %v4730, 24
  %v5092 = vpop.permute.xlu0 %5091
  %5093 = vrot.lane.b32.xlu0 %v4731, 24
  %v5094 = vpop.permute.xlu0 %5093
  %5095 = vrot.lane.b32.xlu0 %v4732, 24
  %v5096 = vpop.permute.xlu0 %5095
  %5097 = vrot.lane.b32.xlu0 %v4733, 24
  %v5098 = vpop.permute.xlu0 %5097
  %5099 = vrot.lane.b32.xlu0 %v4734, 24
  %v5100 = vpop.permute.xlu0 %5099
  %5101 = vrot.lane.b32.xlu0 %v4735, 24
  %v5102 = vpop.permute.xlu0 %5101
  %5103 = vrot.lane.b32.xlu0 %v4736, 24
  %v5104 = vpop.permute.xlu0 %5103
  %5105 = vrot.lane.b32.xlu0 %v4737, 24
  %v5106 = vpop.permute.xlu0 %5105
  %5107 = vrot.lane.b32.xlu0 %v4738, 24
  %v5108 = vpop.permute.xlu0 %5107
  %5109 = vrot.lane.b32.xlu0 %v4739, 24
  %v5110 = vpop.permute.xlu0 %5109
  %5111 = vrot.lane.b32.xlu0 %v4740, 24
  %v5112 = vpop.permute.xlu0 %5111
  %5113 = vrot.lane.b32.xlu0 %v4741, 24
  %v5114 = vpop.permute.xlu0 %5113
  %5115 = vrot.lane.b32.xlu0 %v4742, 24
  %v5116 = vpop.permute.xlu0 %5115
  %5117 = vrot.lane.b32.xlu0 %v4743, 24
  %v5118 = vpop.permute.xlu0 %5117
  %5119 = vrot.lane.b32.xlu0 %v4744, 24
  %v5120 = vpop.permute.xlu0 %5119
  %5121 = vrot.lane.b32.xlu0 %v4745, 24
  %v5122 = vpop.permute.xlu0 %5121
  %5123 = vrot.lane.b32.xlu0 %v4746, 24
  %v5124 = vpop.permute.xlu0 %5123
  %5125 = vrot.lane.b32.xlu0 %v4747, 24
  %v5126 = vpop.permute.xlu0 %5125
  %5127 = vrot.lane.b32.xlu0 %v4748, 24
  %v5128 = vpop.permute.xlu0 %5127
  %5129 = vrot.lane.b32.xlu0 %v4749, 24
  %v5130 = vpop.permute.xlu0 %5129
  %5131 = vrot.lane.b32.xlu0 %v4750, 24
  %v5132 = vpop.permute.xlu0 %5131
  %5133 = vrot.lane.b32.xlu0 %v4751, 24
  %v5134 = vpop.permute.xlu0 %5133
  %5135 = vrot.lane.b32.xlu0 %v4752, 24
  %v5136 = vpop.permute.xlu0 %5135
  %5137 = vrot.lane.b32.xlu0 %v4753, 24
  %v5138 = vpop.permute.xlu0 %5137
  %5139 = vrot.lane.b32.xlu0 %v4754, 24
  %v5140 = vpop.permute.xlu0 %5139
  %5141 = vrot.lane.b32.xlu0 %v4755, 24
  %v5142 = vpop.permute.xlu0 %5141
  %5143 = vrot.lane.b32.xlu0 %v4756, 24
  %v5144 = vpop.permute.xlu0 %5143
  %v5209 = vsel %vm1946, %v4685, %v4822
  %v5210 = vsel %vm1946, %v4686, %v4824
  %v5211 = vsel %vm1946, %v4687, %v4826
  %v5212 = vsel %vm1946, %v4688, %v4828
  %v5213 = vsel %vm1946, %v4689, %v4830
  %v5214 = vsel %vm1946, %v4690, %v4832
  %v5215 = vsel %vm1946, %v4691, %v4834
  %v5216 = vsel %vm1946, %v4692, %v4836
  %v5217 = vsel %vm1946, %v4693, %v4838
  %v5218 = vsel %vm1946, %v4694, %v4840
  %v5219 = vsel %vm1946, %v4695, %v4842
  %v5220 = vsel %vm1946, %v4696, %v4844
  %v5221 = vsel %vm1946, %v4697, %v4846
  %v5222 = vsel %vm1946, %v4698, %v4848
  %v5223 = vsel %vm1946, %v4699, %v4850
  %v5224 = vsel %vm1946, %v4700, %v4852
  %v5225 = vsel %vm1946, %v4701, %v4854
  %v5226 = vsel %vm1946, %v4702, %v4856
  %v5227 = vsel %vm1946, %v4703, %v4858
  %v5228 = vsel %vm1946, %v4704, %v4860
  %v5229 = vsel %vm1946, %v4705, %v4862
  %v5230 = vsel %vm1946, %v4706, %v4864
  %v5231 = vsel %vm1946, %v4707, %v4866
  %v5232 = vsel %vm1946, %v4708, %v4868
  %v5233 = vsel %vm1946, %v4709, %v4870
  %v5234 = vsel %vm1946, %v4710, %v4872
  %v5235 = vsel %vm1946, %v4711, %v4874
  %v5236 = vsel %vm1946, %v4712, %v4876
  %v5237 = vsel %vm1946, %v4713, %v4878
  %v5238 = vsel %vm1946, %v4714, %v4880
  %v5239 = vsel %vm1946, %v4715, %v4882
  %v5240 = vsel %vm1946, %v4716, %v4884
  %v5241 = vsel %vm1946, %v4721, %v4886
  %v5242 = vsel %vm1946, %v4722, %v4888
  %v5243 = vsel %vm1946, %v4723, %v4890
  %v5244 = vsel %vm1946, %v4724, %v4892
  %v5245 = vsel %vm1946, %v4725, %v4894
  %v5246 = vsel %vm1946, %v4726, %v4896
  %v5247 = vsel %vm1946, %v4727, %v4898
  %v5248 = vsel %vm1946, %v4728, %v4900
  %v5249 = vsel %vm1946, %v4729, %v4902
  %v5250 = vsel %vm1946, %v4730, %v4904
  %v5251 = vsel %vm1946, %v4731, %v4906
  %v5252 = vsel %vm1946, %v4732, %v4908
  %v5253 = vsel %vm1946, %v4733, %v4910
  %v5254 = vsel %vm1946, %v4734, %v4912
  %v5255 = vsel %vm1946, %v4735, %v4914
  %v5256 = vsel %vm1946, %v4736, %v4916
  %v5257 = vsel %vm1946, %v4737, %v4918
  %v5258 = vsel %vm1946, %v4738, %v4920
  %v5259 = vsel %vm1946, %v4739, %v4922
  %v5260 = vsel %vm1946, %v4740, %v4924
  %v5261 = vsel %vm1946, %v4741, %v4926
  %v5262 = vsel %vm1946, %v4742, %v4928
  %v5263 = vsel %vm1946, %v4743, %v4930
  %v5264 = vsel %vm1946, %v4744, %v4932
  %v5265 = vsel %vm1946, %v4745, %v4934
  %v5266 = vsel %vm1946, %v4746, %v4936
  %v5267 = vsel %vm1946, %v4747, %v4938
  %v5268 = vsel %vm1946, %v4748, %v4940
  %v5269 = vsel %vm1946, %v4749, %v4942
  %v5270 = vsel %vm1946, %v4750, %v4944
  %v5271 = vsel %vm1946, %v4751, %v4946
  %v5272 = vsel %vm1946, %v4752, %v4948
  %v5273 = vsel %vm2011, %v5209, %v5018
  %v5274 = vsel %vm2011, %v5210, %v5020
  %v5275 = vsel %vm2011, %v5211, %v5022
  %v5276 = vsel %vm2011, %v5212, %v5024
  %v5277 = vsel %vm2011, %v5213, %v5026
  %v5278 = vsel %vm2011, %v5214, %v5028
  %v5279 = vsel %vm2011, %v5215, %v5030
  %v5280 = vsel %vm2011, %v5216, %v5032
  %v5281 = vsel %vm2011, %v5217, %v5034
  %v5282 = vsel %vm2011, %v5218, %v5036
  %v5283 = vsel %vm2011, %v5219, %v5038
  %v5284 = vsel %vm2011, %v5220, %v5040
  %v5285 = vsel %vm2011, %v5221, %v5042
  %v5286 = vsel %vm2011, %v5222, %v5044
  %v5287 = vsel %vm2011, %v5223, %v5046
  %v5288 = vsel %vm2011, %v5224, %v5048
  %v5289 = vsel %vm2011, %v5225, %v5050
  %v5290 = vsel %vm2011, %v5226, %v5052
  %v5291 = vsel %vm2011, %v5227, %v5054
  %v5292 = vsel %vm2011, %v5228, %v5056
  %v5293 = vsel %vm2011, %v5229, %v5058
  %v5294 = vsel %vm2011, %v5230, %v5060
  %v5295 = vsel %vm2011, %v5231, %v5062
  %v5296 = vsel %vm2011, %v5232, %v5064
  %v5297 = vsel %vm2011, %v5233, %v5066
  %v5298 = vsel %vm2011, %v5234, %v5068
  %v5299 = vsel %vm2011, %v5235, %v5070
  %v5300 = vsel %vm2011, %v5236, %v5072
  %v5301 = vsel %vm2011, %v5237, %v5074
  %v5302 = vsel %vm2011, %v5238, %v5076
  %v5303 = vsel %vm2011, %v5239, %v5078
  %v5304 = vsel %vm2011, %v5240, %v5080
  %v5305 = vsel %vm2011, %v5241, %v5082
  %v5306 = vsel %vm2011, %v5242, %v5084
  %v5307 = vsel %vm2011, %v5243, %v5086
  %v5308 = vsel %vm2011, %v5244, %v5088
  %v5309 = vsel %vm2011, %v5245, %v5090
  %v5310 = vsel %vm2011, %v5246, %v5092
  %v5311 = vsel %vm2011, %v5247, %v5094
  %v5312 = vsel %vm2011, %v5248, %v5096
  %v5313 = vsel %vm2011, %v5249, %v5098
  %v5314 = vsel %vm2011, %v5250, %v5100
  %v5315 = vsel %vm2011, %v5251, %v5102
  %v5316 = vsel %vm2011, %v5252, %v5104
  %v5317 = vsel %vm2011, %v5253, %v5106
  %v5318 = vsel %vm2011, %v5254, %v5108
  %v5319 = vsel %vm2011, %v5255, %v5110
  %v5320 = vsel %vm2011, %v5256, %v5112
  %v5321 = vsel %vm2011, %v5257, %v5114
  %v5322 = vsel %vm2011, %v5258, %v5116
  %v5323 = vsel %vm2011, %v5259, %v5118
  %v5324 = vsel %vm2011, %v5260, %v5120
  %v5325 = vsel %vm2011, %v5261, %v5122
  %v5326 = vsel %vm2011, %v5262, %v5124
  %v5327 = vsel %vm2011, %v5263, %v5126
  %v5328 = vsel %vm2011, %v5264, %v5128
  %v5329 = vsel %vm2011, %v5265, %v5130
  %v5330 = vsel %vm2011, %v5266, %v5132
  %v5331 = vsel %vm2011, %v5267, %v5134
  %v5332 = vsel %vm2011, %v5268, %v5136
  %v5333 = vsel %vm2011, %v5269, %v5138
  %v5334 = vsel %vm2011, %v5270, %v5140
  %v5335 = vsel %vm2011, %v5271, %v5142
  %v5336 = vsel %vm2011, %v5272, %v5144
  %s5337 = scalar_lea.vmem %s1, 40
  %v5338 = vld [vmem:[%s5337] sm:$0xff]
  %v5339 = vld [vmem:[%s5337 + $0x8] sm:$0xff]
  %v5340 = vld [vmem:[%s5337 + $0x10] sm:$0xff]
  %v5341 = vld [vmem:[%s5337 + $0x18] sm:$0xff]
  %v5342 = vld [vmem:[%s5337 + $0x20] sm:$0xf]
  %v5344 = vsel %vm2081, %v5273, 0
  %v5347 = vsel %vm2081, %v5274, 0
  %v5350 = vsel %vm2081, %v5275, 0
  %v5353 = vsel %vm2081, %v5276, 0
  %v5356 = vsel %vm2081, %v5277, 0
  %v5359 = vsel %vm2081, %v5278, 0
  %v5362 = vsel %vm2081, %v5279, 0
  %v5365 = vsel %vm2081, %v5280, 0
  %v5368 = vsel %vm2081, %v5281, 0
  %v5371 = vsel %vm2081, %v5282, 0
  %v5374 = vsel %vm2081, %v5283, 0
  %v5377 = vsel %vm2081, %v5284, 0
  %v5380 = vsel %vm2081, %v5285, 0
  %v5383 = vsel %vm2081, %v5286, 0
  %v5386 = vsel %vm2081, %v5287, 0
  %v5389 = vsel %vm2081, %v5288, 0
  %v5392 = vsel %vm2081, %v5289, 0
  %v5395 = vsel %vm2081, %v5290, 0
  %v5398 = vsel %vm2081, %v5291, 0
  %v5401 = vsel %vm2081, %v5292, 0
  %v5404 = vsel %vm2081, %v5293, 0
  %v5407 = vsel %vm2081, %v5294, 0
  %v5410 = vsel %vm2081, %v5295, 0
  %v5413 = vsel %vm2081, %v5296, 0
  %v5416 = vsel %vm2081, %v5297, 0
  %v5419 = vsel %vm2081, %v5298, 0
  %v5422 = vsel %vm2081, %v5299, 0
  %v5425 = vsel %vm2081, %v5300, 0
  %v5428 = vsel %vm2081, %v5301, 0
  %v5431 = vsel %vm2081, %v5302, 0
  %v5434 = vsel %vm2081, %v5303, 0
  %v5437 = vsel %vm2081, %v5304, 0
  %v5440 = vsel %vm2081, %v5305, 0
  %v5443 = vsel %vm2081, %v5306, 0
  %v5446 = vsel %vm2081, %v5307, 0
  %v5449 = vsel %vm2081, %v5308, 0
  %v5452 = vsel %vm2081, %v5309, 0
  %v5455 = vsel %vm2081, %v5310, 0
  %v5458 = vsel %vm2081, %v5311, 0
  %v5461 = vsel %vm2081, %v5312, 0
  %v5464 = vsel %vm2081, %v5313, 0
  %v5467 = vsel %vm2081, %v5314, 0
  %v5470 = vsel %vm2081, %v5315, 0
  %v5473 = vsel %vm2081, %v5316, 0
  %v5476 = vsel %vm2081, %v5317, 0
  %v5479 = vsel %vm2081, %v5318, 0
  %v5482 = vsel %vm2081, %v5319, 0
  %v5485 = vsel %vm2081, %v5320, 0
  %v5488 = vsel %vm2081, %v5321, 0
  %v5491 = vsel %vm2081, %v5322, 0
  %v5494 = vsel %vm2081, %v5323, 0
  %v5497 = vsel %vm2081, %v5324, 0
  %v5500 = vsel %vm2081, %v5325, 0
  %v5503 = vsel %vm2081, %v5326, 0
  %v5506 = vsel %vm2081, %v5327, 0
  %v5509 = vsel %vm2081, %v5328, 0
  %v5512 = vsel %vm2081, %v5329, 0
  %v5515 = vsel %vm2081, %v5330, 0
  %v5518 = vsel %vm2081, %v5331, 0
  %v5521 = vsel %vm2081, %v5332, 0
  %v5524 = vsel %vm2081, %v5333, 0
  %v5527 = vsel %vm2081, %v5334, 0
  %v5530 = vsel %vm2081, %v5335, 0
  %v5533 = vsel %vm2081, %v5336, 0
  %v5536 = vsel %vm2274, %v5342, 0
  %5538 = vmatprep.subr.mxu0 0.0
  %5539 = vmatpush1.msra.mxu0 %v5338
  %5540 = vmatprep.subr.mxu0 0.0
  %5541 = vmatpush1.msra.mxu0 %v5339
  %5542 = vmatprep.subr.mxu0 0.0
  %5543 = vmatpush1.msra.mxu0 %v5340
  %5544 = vmatprep.subr.mxu0 0.0
  %5545 = vmatpush1.msra.mxu0 %v5341
  %5546 = vmatprep.subr.mxu0 0.0
  %5547 = vmatpush1.msra.mxu0 %v5536
  %5548 = vmatprep.subr.mxu0 0.0
  %5549 = vmatpush1.msra.mxu0 0.0
  %5550 = vmatprep.subr.mxu0 0.0
  %5551 = vmatpush1.msra.mxu0 0.0
  %5552 = vmatprep.subr.mxu0 0.0
  %5553 = vmatpush1.msra.mxu0 0.0
  %5554 = vmatprep.subr.mxu0 0.0
  %5555 = vmatpush1.msra.mxu0 0.0
  %5556 = vmatprep.subr.mxu0 0.0
  %5557 = vmatpush1.msra.mxu0 0.0
  %5558 = vmatprep.subr.mxu0 0.0
  %5559 = vmatpush1.msra.mxu0 0.0
  %5560 = vmatprep.subr.mxu0 0.0
  %5561 = vmatpush1.msra.mxu0 0.0
  %5562 = vmatprep.subr.mxu0 0.0
  %5563 = vmatpush1.msra.mxu0 0.0
  %5564 = vmatprep.subr.mxu0 0.0
  %5565 = vmatpush1.msra.mxu0 0.0
  %5566 = vmatprep.subr.mxu0 0.0
  %5567 = vmatpush1.msra.mxu0 0.0
  %5568 = vmatprep.subr.mxu0 0.0
  %5569 = vmatpush1.msra.mxu0 0.0
  %5570 = vmatprep.subr.mxu0 0.0
  %5571 = vmatpush1.msra.mxu0 0.0
  %5572 = vmatprep.subr.mxu0 0.0
  %5573 = vmatpush1.msra.mxu0 0.0
  %5574 = vmatprep.subr.mxu0 0.0
  %5575 = vmatpush1.msra.mxu0 0.0
  %5576 = vmatprep.subr.mxu0 0.0
  %5577 = vmatpush1.msra.mxu0 0.0
  %5578 = vmatprep.subr.mxu0 0.0
  %5579 = vmatpush1.msra.mxu0 0.0
  %5580 = vmatprep.subr.mxu0 0.0
  %5581 = vmatpush1.msra.mxu0 0.0
  %5582 = vmatprep.subr.mxu0 0.0
  %5583 = vmatpush1.msra.mxu0 0.0
  %5584 = vmatprep.subr.mxu0 0.0
  %5585 = vmatpush1.msra.mxu0 0.0
  %5586 = vmatprep.subr.mxu0 0.0
  %5587 = vmatpush1.msra.mxu0 0.0
  %5588 = vmatprep.subr.mxu0 0.0
  %5589 = vmatpush1.msra.mxu0 0.0
  %5590 = vmatprep.subr.mxu0 0.0
  %5591 = vmatpush1.msra.mxu0 0.0
  %5592 = vmatprep.subr.mxu0 0.0
  %5593 = vmatpush1.msra.mxu0 0.0
  %5594 = vmatprep.subr.mxu0 0.0
  %5595 = vmatpush1.msra.mxu0 0.0
  %5596 = vmatprep.subr.mxu0 0.0
  %5597 = vmatpush1.msra.mxu0 0.0
  %5598 = vmatprep.subr.mxu0 0.0
  %5599 = vmatpush1.msra.mxu0 0.0
  %5600 = vmatprep.subr.mxu0 0.0
  %5601 = vmatpush1.msra.mxu0 0.0
  %5602 = vmatprep.mubr.f32.mxu0 0.0
  %5603 = vmatmul.mubr.f32.gmra.mrb[0].mxu0 %v5344
  %v5604 = vpop.f32.mrb[0].mxu0
  %v5605 = vadd.f32 0.0, %v5604
  %v5606 = vpop.f32.mrb[0].mxu0
  %5607 = vmatprep.mubr.f32.mxu0 0.0
  %5608 = vmatmul.mubr.f32.gmra.mrb[0].mxu0 %v5347
  %v5609 = vpop.f32.mrb[0].mxu0
  %v5610 = vadd.f32 0.0, %v5609
  %v5611 = vpop.f32.mrb[0].mxu0
  %5612 = vmatprep.mubr.f32.mxu0 0.0
  %5613 = vmatmul.mubr.f32.gmra.mrb[0].mxu0 %v5350
  %v5614 = vpop.f32.mrb[0].mxu0
  %v5615 = vadd.f32 0.0, %v5614
  %v5616 = vpop.f32.mrb[0].mxu0
  %5617 = vmatprep.mubr.f32.mxu0 0.0
  %5618 = vmatmul.mubr.f32.gmra.mrb[0].mxu0 %v5353
  %v5619 = vpop.f32.mrb[0].mxu0
  %v5620 = vadd.f32 0.0, %v5619
  %v5621 = vpop.f32.mrb[0].mxu0
  %5622 = vmatprep.mubr.f32.mxu0 0.0
  %5623 = vmatmul.mubr.f32.gmra.mrb[0].mxu0 %v5356
  %v5624 = vpop.f32.mrb[0].mxu0
  %v5625 = vadd.f32 0.0, %v5624
  %v5626 = vpop.f32.mrb[0].mxu0
  %5627 = vmatprep.mubr.f32.mxu0 0.0
  %5628 = vmatmul.mubr.f32.gmra.mrb[0].mxu0 %v5359
  %v5629 = vpop.f32.mrb[0].mxu0
  %v5630 = vadd.f32 0.0, %v5629
  %v5631 = vpop.f32.mrb[0].mxu0
  %5632 = vmatprep.mubr.f32.mxu0 0.0
  %5633 = vmatmul.mubr.f32.gmra.mrb[0].mxu0 %v5362
  %v5634 = vpop.f32.mrb[0].mxu0
  %v5635 = vadd.f32 0.0, %v5634
  %v5636 = vpop.f32.mrb[0].mxu0
  %5637 = vmatprep.mubr.f32.mxu0 0.0
  %5638 = vmatmul.mubr.f32.gmra.mrb[0].mxu0 %v5365
  %v5639 = vpop.f32.mrb[0].mxu0
  %v5640 = vadd.f32 0.0, %v5639
  %v5641 = vpop.f32.mrb[0].mxu0
  %5642 = vmatprep.mubr.f32.mxu0 0.0
  %5643 = vmatmul.mubr.f32.gmra.mrb[0].mxu0 %v5368
  %v5644 = vpop.f32.mrb[0].mxu0
  %v5645 = vadd.f32 0.0, %v5644
  %v5646 = vpop.f32.mrb[0].mxu0
  %5647 = vmatprep.mubr.f32.mxu0 0.0
  %5648 = vmatmul.mubr.f32.gmra.mrb[0].mxu0 %v5371
  %v5649 = vpop.f32.mrb[0].mxu0
  %v5650 = vadd.f32 0.0, %v5649
  %v5651 = vpop.f32.mrb[0].mxu0
  %5652 = vmatprep.mubr.f32.mxu0 0.0
  %5653 = vmatmul.mubr.f32.gmra.mrb[0].mxu0 %v5374
  %v5654 = vpop.f32.mrb[0].mxu0
  %v5655 = vadd.f32 0.0, %v5654
  %v5656 = vpop.f32.mrb[0].mxu0
  %5657 = vmatprep.mubr.f32.mxu0 0.0
  %5658 = vmatmul.mubr.f32.gmra.mrb[0].mxu0 %v5377
  %v5659 = vpop.f32.mrb[0].mxu0
  %v5660 = vadd.f32 0.0, %v5659
  %v5661 = vpop.f32.mrb[0].mxu0
  %5662 = vmatprep.mubr.f32.mxu0 0.0
  %5663 = vmatmul.mubr.f32.gmra.mrb[0].mxu0 %v5380
  %v5664 = vpop.f32.mrb[0].mxu0
  %v5665 = vadd.f32 0.0, %v5664
  %v5666 = vpop.f32.mrb[0].mxu0
  %5667 = vmatprep.mubr.f32.mxu0 0.0
  %5668 = vmatmul.mubr.f32.gmra.mrb[0].mxu0 %v5383
  %v5669 = vpop.f32.mrb[0].mxu0
  %v5670 = vadd.f32 0.0, %v5669
  %v5671 = vpop.f32.mrb[0].mxu0
  %5672 = vmatprep.mubr.f32.mxu0 0.0
  %5673 = vmatmul.mubr.f32.gmra.mrb[0].mxu0 %v5386
  %v5674 = vpop.f32.mrb[0].mxu0
  %v5675 = vadd.f32 0.0, %v5674
  %v5676 = vpop.f32.mrb[0].mxu0
  %5677 = vmatprep.mubr.f32.mxu0 0.0
  %5678 = vmatmul.mubr.f32.gmra.mrb[0].mxu0 %v5389
  %v5679 = vpop.f32.mrb[0].mxu0
  %v5680 = vadd.f32 0.0, %v5679
  %v5681 = vpop.f32.mrb[0].mxu0
  %5682 = vmatprep.mubr.f32.mxu0 0.0
  %5683 = vmatmul.mubr.f32.gmra.mrb[0].mxu0 %v5392
  %v5684 = vpop.f32.mrb[0].mxu0
  %v5685 = vadd.f32 0.0, %v5684
  %v5686 = vpop.f32.mrb[0].mxu0
  %5687 = vmatprep.mubr.f32.mxu0 0.0
  %5688 = vmatmul.mubr.f32.gmra.mrb[0].mxu0 %v5395
  %v5689 = vpop.f32.mrb[0].mxu0
  %v5690 = vadd.f32 0.0, %v5689
  %v5691 = vpop.f32.mrb[0].mxu0
  %5692 = vmatprep.mubr.f32.mxu0 0.0
  %5693 = vmatmul.mubr.f32.gmra.mrb[0].mxu0 %v5398
  %v5694 = vpop.f32.mrb[0].mxu0
  %v5695 = vadd.f32 0.0, %v5694
  %v5696 = vpop.f32.mrb[0].mxu0
  %5697 = vmatprep.mubr.f32.mxu0 0.0
  %5698 = vmatmul.mubr.f32.gmra.mrb[0].mxu0 %v5401
  %v5699 = vpop.f32.mrb[0].mxu0
  %v5700 = vadd.f32 0.0, %v5699
  %v5701 = vpop.f32.mrb[0].mxu0
  %5702 = vmatprep.mubr.f32.mxu0 0.0
  %5703 = vmatmul.mubr.f32.gmra.mrb[0].mxu0 %v5404
  %v5704 = vpop.f32.mrb[0].mxu0
  %v5705 = vadd.f32 0.0, %v5704
  %v5706 = vpop.f32.mrb[0].mxu0
  %5707 = vmatprep.mubr.f32.mxu0 0.0
  %5708 = vmatmul.mubr.f32.gmra.mrb[0].mxu0 %v5407
  %v5709 = vpop.f32.mrb[0].mxu0
  %v5710 = vadd.f32 0.0, %v5709
  %v5711 = vpop.f32.mrb[0].mxu0
  %5712 = vmatprep.mubr.f32.mxu0 0.0
  %5713 = vmatmul.mubr.f32.gmra.mrb[0].mxu0 %v5410
  %v5714 = vpop.f32.mrb[0].mxu0
  %v5715 = vadd.f32 0.0, %v5714
  %v5716 = vpop.f32.mrb[0].mxu0
  %5717 = vmatprep.mubr.f32.mxu0 0.0
  %5718 = vmatmul.mubr.f32.gmra.mrb[0].mxu0 %v5413
  %v5719 = vpop.f32.mrb[0].mxu0
  %v5720 = vadd.f32 0.0, %v5719
  %v5721 = vpop.f32.mrb[0].mxu0
  %5722 = vmatprep.mubr.f32.mxu0 0.0
  %5723 = vmatmul.mubr.f32.gmra.mrb[0].mxu0 %v5416
  %v5724 = vpop.f32.mrb[0].mxu0
  %v5725 = vadd.f32 0.0, %v5724
  %v5726 = vpop.f32.mrb[0].mxu0
  %5727 = vmatprep.mubr.f32.mxu0 0.0
  %5728 = vmatmul.mubr.f32.gmra.mrb[0].mxu0 %v5419
  %v5729 = vpop.f32.mrb[0].mxu0
  %v5730 = vadd.f32 0.0, %v5729
  %v5731 = vpop.f32.mrb[0].mxu0
  %5732 = vmatprep.mubr.f32.mxu0 0.0
  %5733 = vmatmul.mubr.f32.gmra.mrb[0].mxu0 %v5422
  %v5734 = vpop.f32.mrb[0].mxu0
  %v5735 = vadd.f32 0.0, %v5734
  %v5736 = vpop.f32.mrb[0].mxu0
  %5737 = vmatprep.mubr.f32.mxu0 0.0
  %5738 = vmatmul.mubr.f32.gmra.mrb[0].mxu0 %v5425
  %v5739 = vpop.f32.mrb[0].mxu0
  %v5740 = vadd.f32 0.0, %v5739
  %v5741 = vpop.f32.mrb[0].mxu0
  %5742 = vmatprep.mubr.f32.mxu0 0.0
  %5743 = vmatmul.mubr.f32.gmra.mrb[0].mxu0 %v5428
  %v5744 = vpop.f32.mrb[0].mxu0
  %v5745 = vadd.f32 0.0, %v5744
  %v5746 = vpop.f32.mrb[0].mxu0
  %5747 = vmatprep.mubr.f32.mxu0 0.0
  %5748 = vmatmul.mubr.f32.gmra.mrb[0].mxu0 %v5431
  %v5749 = vpop.f32.mrb[0].mxu0
  %v5750 = vadd.f32 0.0, %v5749
  %v5751 = vpop.f32.mrb[0].mxu0
  %5752 = vmatprep.mubr.f32.mxu0 0.0
  %5753 = vmatmul.mubr.f32.gmra.mrb[0].mxu0 %v5434
  %v5754 = vpop.f32.mrb[0].mxu0
  %v5755 = vadd.f32 0.0, %v5754
  %v5756 = vpop.f32.mrb[0].mxu0
  %5757 = vmatprep.mubr.f32.mxu0 0.0
  %5758 = vmatmul.mubr.f32.gmra.mrb[0].mxu0 %v5437
  %v5759 = vpop.f32.mrb[0].mxu0
  %v5760 = vadd.f32 0.0, %v5759
  %v5761 = vpop.f32.mrb[0].mxu0
  %5762 = vmatprep.mubr.f32.mxu0 0.0
  %5763 = vmatmul.mubr.f32.gmra.mrb[0].mxu0 %v5440
  %v5764 = vpop.f32.mrb[0].mxu0
  %v5765 = vadd.f32 0.0, %v5764
  %v5766 = vpop.f32.mrb[0].mxu0
  %5767 = vmatprep.mubr.f32.mxu0 0.0
  %5768 = vmatmul.mubr.f32.gmra.mrb[0].mxu0 %v5443
  %v5769 = vpop.f32.mrb[0].mxu0
  %v5770 = vadd.f32 0.0, %v5769
  %v5771 = vpop.f32.mrb[0].mxu0
  %5772 = vmatprep.mubr.f32.mxu0 0.0
  %5773 = vmatmul.mubr.f32.gmra.mrb[0].mxu0 %v5446
  %v5774 = vpop.f32.mrb[0].mxu0
  %v5775 = vadd.f32 0.0, %v5774
  %v5776 = vpop.f32.mrb[0].mxu0
  %5777 = vmatprep.mubr.f32.mxu0 0.0
  %5778 = vmatmul.mubr.f32.gmra.mrb[0].mxu0 %v5449
  %v5779 = vpop.f32.mrb[0].mxu0
  %v5780 = vadd.f32 0.0, %v5779
  %v5781 = vpop.f32.mrb[0].mxu0
  %5782 = vmatprep.mubr.f32.mxu0 0.0
  %5783 = vmatmul.mubr.f32.gmra.mrb[0].mxu0 %v5452
  %v5784 = vpop.f32.mrb[0].mxu0
  %v5785 = vadd.f32 0.0, %v5784
  %v5786 = vpop.f32.mrb[0].mxu0
  %5787 = vmatprep.mubr.f32.mxu0 0.0
  %5788 = vmatmul.mubr.f32.gmra.mrb[0].mxu0 %v5455
  %v5789 = vpop.f32.mrb[0].mxu0
  %v5790 = vadd.f32 0.0, %v5789
  %v5791 = vpop.f32.mrb[0].mxu0
  %5792 = vmatprep.mubr.f32.mxu0 0.0
  %5793 = vmatmul.mubr.f32.gmra.mrb[0].mxu0 %v5458
  %v5794 = vpop.f32.mrb[0].mxu0
  %v5795 = vadd.f32 0.0, %v5794
  %v5796 = vpop.f32.mrb[0].mxu0
  %5797 = vmatprep.mubr.f32.mxu0 0.0
  %5798 = vmatmul.mubr.f32.gmra.mrb[0].mxu0 %v5461
  %v5799 = vpop.f32.mrb[0].mxu0
  %v5800 = vadd.f32 0.0, %v5799
  %v5801 = vpop.f32.mrb[0].mxu0
  %5802 = vmatprep.mubr.f32.mxu0 0.0
  %5803 = vmatmul.mubr.f32.gmra.mrb[0].mxu0 %v5464
  %v5804 = vpop.f32.mrb[0].mxu0
  %v5805 = vadd.f32 0.0, %v5804
  %v5806 = vpop.f32.mrb[0].mxu0
  %5807 = vmatprep.mubr.f32.mxu0 0.0
  %5808 = vmatmul.mubr.f32.gmra.mrb[0].mxu0 %v5467
  %v5809 = vpop.f32.mrb[0].mxu0
  %v5810 = vadd.f32 0.0, %v5809
  %v5811 = vpop.f32.mrb[0].mxu0
  %5812 = vmatprep.mubr.f32.mxu0 0.0
  %5813 = vmatmul.mubr.f32.gmra.mrb[0].mxu0 %v5470
  %v5814 = vpop.f32.mrb[0].mxu0
  %v5815 = vadd.f32 0.0, %v5814
  %v5816 = vpop.f32.mrb[0].mxu0
  %5817 = vmatprep.mubr.f32.mxu0 0.0
  %5818 = vmatmul.mubr.f32.gmra.mrb[0].mxu0 %v5473
  %v5819 = vpop.f32.mrb[0].mxu0
  %v5820 = vadd.f32 0.0, %v5819
  %v5821 = vpop.f32.mrb[0].mxu0
  %5822 = vmatprep.mubr.f32.mxu0 0.0
  %5823 = vmatmul.mubr.f32.gmra.mrb[0].mxu0 %v5476
  %v5824 = vpop.f32.mrb[0].mxu0
  %v5825 = vadd.f32 0.0, %v5824
  %v5826 = vpop.f32.mrb[0].mxu0
  %5827 = vmatprep.mubr.f32.mxu0 0.0
  %5828 = vmatmul.mubr.f32.gmra.mrb[0].mxu0 %v5479
  %v5829 = vpop.f32.mrb[0].mxu0
  %v5830 = vadd.f32 0.0, %v5829
  %v5831 = vpop.f32.mrb[0].mxu0
  %5832 = vmatprep.mubr.f32.mxu0 0.0
  %5833 = vmatmul.mubr.f32.gmra.mrb[0].mxu0 %v5482
  %v5834 = vpop.f32.mrb[0].mxu0
  %v5835 = vadd.f32 0.0, %v5834
  %v5836 = vpop.f32.mrb[0].mxu0
  %5837 = vmatprep.mubr.f32.mxu0 0.0
  %5838 = vmatmul.mubr.f32.gmra.mrb[0].mxu0 %v5485
  %v5839 = vpop.f32.mrb[0].mxu0
  %v5840 = vadd.f32 0.0, %v5839
  %v5841 = vpop.f32.mrb[0].mxu0
  %5842 = vmatprep.mubr.f32.mxu0 0.0
  %5843 = vmatmul.mubr.f32.gmra.mrb[0].mxu0 %v5488
  %v5844 = vpop.f32.mrb[0].mxu0
  %v5845 = vadd.f32 0.0, %v5844
  %v5846 = vpop.f32.mrb[0].mxu0
  %5847 = vmatprep.mubr.f32.mxu0 0.0
  %5848 = vmatmul.mubr.f32.gmra.mrb[0].mxu0 %v5491
  %v5849 = vpop.f32.mrb[0].mxu0
  %v5850 = vadd.f32 0.0, %v5849
  %v5851 = vpop.f32.mrb[0].mxu0
  %5852 = vmatprep.mubr.f32.mxu0 0.0
  %5853 = vmatmul.mubr.f32.gmra.mrb[0].mxu0 %v5494
  %v5854 = vpop.f32.mrb[0].mxu0
  %v5855 = vadd.f32 0.0, %v5854
  %v5856 = vpop.f32.mrb[0].mxu0
  %5857 = vmatprep.mubr.f32.mxu0 0.0
  %5858 = vmatmul.mubr.f32.gmra.mrb[0].mxu0 %v5497
  %v5859 = vpop.f32.mrb[0].mxu0
  %v5860 = vadd.f32 0.0, %v5859
  %v5861 = vpop.f32.mrb[0].mxu0
  %5862 = vmatprep.mubr.f32.mxu0 0.0
  %5863 = vmatmul.mubr.f32.gmra.mrb[0].mxu0 %v5500
  %v5864 = vpop.f32.mrb[0].mxu0
  %v5865 = vadd.f32 0.0, %v5864
  %v5866 = vpop.f32.mrb[0].mxu0
  %5867 = vmatprep.mubr.f32.mxu0 0.0
  %5868 = vmatmul.mubr.f32.gmra.mrb[0].mxu0 %v5503
  %v5869 = vpop.f32.mrb[0].mxu0
  %v5870 = vadd.f32 0.0, %v5869
  %v5871 = vpop.f32.mrb[0].mxu0
  %5872 = vmatprep.mubr.f32.mxu0 0.0
  %5873 = vmatmul.mubr.f32.gmra.mrb[0].mxu0 %v5506
  %v5874 = vpop.f32.mrb[0].mxu0
  %v5875 = vadd.f32 0.0, %v5874
  %v5876 = vpop.f32.mrb[0].mxu0
  %5877 = vmatprep.mubr.f32.mxu0 0.0
  %5878 = vmatmul.mubr.f32.gmra.mrb[0].mxu0 %v5509
  %v5879 = vpop.f32.mrb[0].mxu0
  %v5880 = vadd.f32 0.0, %v5879
  %v5881 = vpop.f32.mrb[0].mxu0
  %5882 = vmatprep.mubr.f32.mxu0 0.0
  %5883 = vmatmul.mubr.f32.gmra.mrb[0].mxu0 %v5512
  %v5884 = vpop.f32.mrb[0].mxu0
  %v5885 = vadd.f32 0.0, %v5884
  %v5886 = vpop.f32.mrb[0].mxu0
  %5887 = vmatprep.mubr.f32.mxu0 0.0
  %5888 = vmatmul.mubr.f32.gmra.mrb[0].mxu0 %v5515
  %v5889 = vpop.f32.mrb[0].mxu0
  %v5890 = vadd.f32 0.0, %v5889
  %v5891 = vpop.f32.mrb[0].mxu0
  %5892 = vmatprep.mubr.f32.mxu0 0.0
  %5893 = vmatmul.mubr.f32.gmra.mrb[0].mxu0 %v5518
  %v5894 = vpop.f32.mrb[0].mxu0
  %v5895 = vadd.f32 0.0, %v5894
  %v5896 = vpop.f32.mrb[0].mxu0
  %5897 = vmatprep.mubr.f32.mxu0 0.0
  %5898 = vmatmul.mubr.f32.gmra.mrb[0].mxu0 %v5521
  %v5899 = vpop.f32.mrb[0].mxu0
  %v5900 = vadd.f32 0.0, %v5899
  %v5901 = vpop.f32.mrb[0].mxu0
  %5902 = vmatprep.mubr.f32.mxu0 0.0
  %5903 = vmatmul.mubr.f32.gmra.mrb[0].mxu0 %v5524
  %v5904 = vpop.f32.mrb[0].mxu0
  %v5905 = vadd.f32 0.0, %v5904
  %v5906 = vpop.f32.mrb[0].mxu0
  %5907 = vmatprep.mubr.f32.mxu0 0.0
  %5908 = vmatmul.mubr.f32.gmra.mrb[0].mxu0 %v5527
  %v5909 = vpop.f32.mrb[0].mxu0
  %v5910 = vadd.f32 0.0, %v5909
  %v5911 = vpop.f32.mrb[0].mxu0
  %5912 = vmatprep.mubr.f32.mxu0 0.0
  %5913 = vmatmul.mubr.f32.gmra.mrb[0].mxu0 %v5530
  %v5914 = vpop.f32.mrb[0].mxu0
  %v5915 = vadd.f32 0.0, %v5914
  %v5916 = vpop.f32.mrb[0].mxu0
  %5917 = vmatprep.mubr.f32.mxu0 0.0
  %5918 = vmatmul.mubr.f32.gmra.mrb[0].mxu0 %v5533
  %v5919 = vpop.f32.mrb[0].mxu0
  %v5920 = vadd.f32 0.0, %v5919
  %v5921 = vpop.f32.mrb[0].mxu0
  %5922 = vdwg.mxu0
  %v5923 = vmax.f32 %v5605, 0.0
  %v5924 = vmax.f32 %v5610, 0.0
  %v5925 = vmax.f32 %v5615, 0.0
  %v5926 = vmax.f32 %v5620, 0.0
  %v5927 = vmax.f32 %v5625, 0.0
  %v5928 = vmax.f32 %v5630, 0.0
  %v5929 = vmax.f32 %v5635, 0.0
  %v5930 = vmax.f32 %v5640, 0.0
  %v5931 = vmax.f32 %v5645, 0.0
  %v5932 = vmax.f32 %v5650, 0.0
  %v5933 = vmax.f32 %v5655, 0.0
  %v5934 = vmax.f32 %v5660, 0.0
  %v5935 = vmax.f32 %v5665, 0.0
  %v5936 = vmax.f32 %v5670, 0.0
  %v5937 = vmax.f32 %v5675, 0.0
  %v5938 = vmax.f32 %v5680, 0.0
  %v5939 = vmax.f32 %v5685, 0.0
  %v5940 = vmax.f32 %v5690, 0.0
  %v5941 = vmax.f32 %v5695, 0.0
  %v5942 = vmax.f32 %v5700, 0.0
  %v5943 = vmax.f32 %v5705, 0.0
  %v5944 = vmax.f32 %v5710, 0.0
  %v5945 = vmax.f32 %v5715, 0.0
  %v5946 = vmax.f32 %v5720, 0.0
  %v5947 = vmax.f32 %v5725, 0.0
  %v5948 = vmax.f32 %v5730, 0.0
  %v5949 = vmax.f32 %v5735, 0.0
  %v5950 = vmax.f32 %v5740, 0.0
  %v5951 = vmax.f32 %v5745, 0.0
  %v5952 = vmax.f32 %v5750, 0.0
  %v5953 = vmax.f32 %v5755, 0.0
  %v5954 = vmax.f32 %v5760, 0.0
  %v5955 = vmax.f32 %v5765, 0.0
  %v5956 = vmax.f32 %v5770, 0.0
  %v5957 = vmax.f32 %v5775, 0.0
  %v5958 = vmax.f32 %v5780, 0.0
  %v5959 = vmax.f32 %v5785, 0.0
  %v5960 = vmax.f32 %v5790, 0.0
  %v5961 = vmax.f32 %v5795, 0.0
  %v5962 = vmax.f32 %v5800, 0.0
  %v5963 = vmax.f32 %v5805, 0.0
  %v5964 = vmax.f32 %v5810, 0.0
  %v5965 = vmax.f32 %v5815, 0.0
  %v5966 = vmax.f32 %v5820, 0.0
  %v5967 = vmax.f32 %v5825, 0.0
  %v5968 = vmax.f32 %v5830, 0.0
  %v5969 = vmax.f32 %v5835, 0.0
  %v5970 = vmax.f32 %v5840, 0.0
  %v5971 = vmax.f32 %v5845, 0.0
  %v5972 = vmax.f32 %v5850, 0.0
  %v5973 = vmax.f32 %v5855, 0.0
  %v5974 = vmax.f32 %v5860, 0.0
  %v5975 = vmax.f32 %v5865, 0.0
  %v5976 = vmax.f32 %v5870, 0.0
  %v5977 = vmax.f32 %v5875, 0.0
  %v5978 = vmax.f32 %v5880, 0.0
  %v5979 = vmax.f32 %v5885, 0.0
  %v5980 = vmax.f32 %v5890, 0.0
  %v5981 = vmax.f32 %v5895, 0.0
  %v5982 = vmax.f32 %v5900, 0.0
  %v5983 = vmax.f32 %v5905, 0.0
  %v5984 = vmax.f32 %v5910, 0.0
  %v5985 = vmax.f32 %v5915, 0.0
  %v5986 = vmax.f32 %v5920, 0.0
  %s5987 = scalar_lea.vmem %s2, 8
  %v5988 = vld [vmem:[%s5987] sm:$0xff]
  %v5990 = vsel %vm1421, %v5923, 0
  %v5993 = vsel %vm1421, %v5924, 0
  %v5996 = vsel %vm1421, %v5925, 0
  %v5999 = vsel %vm1421, %v5926, 0
  %v6002 = vsel %vm1421, %v5927, 0
  %v6005 = vsel %vm1421, %v5928, 0
  %v6008 = vsel %vm1421, %v5929, 0
  %v6011 = vsel %vm1421, %v5930, 0
  %v6014 = vsel %vm1421, %v5931, 0
  %v6017 = vsel %vm1421, %v5932, 0
  %v6020 = vsel %vm1421, %v5933, 0
  %v6023 = vsel %vm1421, %v5934, 0
  %v6026 = vsel %vm1421, %v5935, 0
  %v6029 = vsel %vm1421, %v5936, 0
  %v6032 = vsel %vm1421, %v5937, 0
  %v6035 = vsel %vm1421, %v5938, 0
  %v6038 = vsel %vm1421, %v5939, 0
  %v6041 = vsel %vm1421, %v5940, 0
  %v6044 = vsel %vm1421, %v5941, 0
  %v6047 = vsel %vm1421, %v5942, 0
  %v6050 = vsel %vm1421, %v5943, 0
  %v6053 = vsel %vm1421, %v5944, 0
  %v6056 = vsel %vm1421, %v5945, 0
  %v6059 = vsel %vm1421, %v5946, 0
  %v6062 = vsel %vm1421, %v5947, 0
  %v6065 = vsel %vm1421, %v5948, 0
  %v6068 = vsel %vm1421, %v5949, 0
  %v6071 = vsel %vm1421, %v5950, 0
  %v6074 = vsel %vm1421, %v5951, 0
  %v6077 = vsel %vm1421, %v5952, 0
  %v6080 = vsel %vm1421, %v5953, 0
  %v6083 = vsel %vm1421, %v5954, 0
  %v6086 = vsel %vm1421, %v5955, 0
  %v6089 = vsel %vm1421, %v5956, 0
  %v6092 = vsel %vm1421, %v5957, 0
  %v6095 = vsel %vm1421, %v5958, 0
  %v6098 = vsel %vm1421, %v5959, 0
  %v6101 = vsel %vm1421, %v5960, 0
  %v6104 = vsel %vm1421, %v5961, 0
  %v6107 = vsel %vm1421, %v5962, 0
  %v6110 = vsel %vm1421, %v5963, 0
  %v6113 = vsel %vm1421, %v5964, 0
  %v6116 = vsel %vm1421, %v5965, 0
  %v6119 = vsel %vm1421, %v5966, 0
  %v6122 = vsel %vm1421, %v5967, 0
  %v6125 = vsel %vm1421, %v5968, 0
  %v6128 = vsel %vm1421, %v5969, 0
  %v6131 = vsel %vm1421, %v5970, 0
  %v6134 = vsel %vm1421, %v5971, 0
  %v6137 = vsel %vm1421, %v5972, 0
  %v6140 = vsel %vm1421, %v5973, 0
  %v6143 = vsel %vm1421, %v5974, 0
  %v6146 = vsel %vm1421, %v5975, 0
  %v6149 = vsel %vm1421, %v5976, 0
  %v6152 = vsel %vm1421, %v5977, 0
  %v6155 = vsel %vm1421, %v5978, 0
  %v6158 = vsel %vm1421, %v5979, 0
  %v6161 = vsel %vm1421, %v5980, 0
  %v6164 = vsel %vm1421, %v5981, 0
  %v6167 = vsel %vm1421, %v5982, 0
  %v6170 = vsel %vm1421, %v5983, 0
  %v6173 = vsel %vm1421, %v5984, 0
  %v6176 = vsel %vm1421, %v5985, 0
  %v6179 = vsel %vm1421, %v5986, 0
  %6181 = vmatprep.subr.mxu0 0.0
  %6182 = vmatpush1.msra.mxu0 %v5988
  %6183 = vmatprep.subr.mxu0 0.0
  %6184 = vmatpush1.msra.mxu0 0.0
  %6185 = vmatprep.subr.mxu0 0.0
  %6186 = vmatpush1.msra.mxu0 0.0
  %6187 = vmatprep.subr.mxu0 0.0
  %6188 = vmatpush1.msra.mxu0 0.0
  %6189 = vmatprep.subr.mxu0 0.0
  %6190 = vmatpush1.msra.mxu0 0.0
  %6191 = vmatprep.subr.mxu0 0.0
  %6192 = vmatpush1.msra.mxu0 0.0
  %6193 = vmatprep.subr.mxu0 0.0
  %6194 = vmatpush1.msra.mxu0 0.0
  %6195 = vmatprep.subr.mxu0 0.0
  %6196 = vmatpush1.msra.mxu0 0.0
  %6197 = vmatprep.subr.mxu0 0.0
  %6198 = vmatpush1.msra.mxu0 0.0
  %6199 = vmatprep.subr.mxu0 0.0
  %6200 = vmatpush1.msra.mxu0 0.0
  %6201 = vmatprep.subr.mxu0 0.0
  %6202 = vmatpush1.msra.mxu0 0.0
  %6203 = vmatprep.subr.mxu0 0.0
  %6204 = vmatpush1.msra.mxu0 0.0
  %6205 = vmatprep.subr.mxu0 0.0
  %6206 = vmatpush1.msra.mxu0 0.0
  %6207 = vmatprep.subr.mxu0 0.0
  %6208 = vmatpush1.msra.mxu0 0.0
  %6209 = vmatprep.subr.mxu0 0.0
  %6210 = vmatpush1.msra.mxu0 0.0
  %6211 = vmatprep.subr.mxu0 0.0
  %6212 = vmatpush1.msra.mxu0 0.0
  %6213 = vmatprep.subr.mxu0 0.0
  %6214 = vmatpush1.msra.mxu0 0.0
  %6215 = vmatprep.subr.mxu0 0.0
  %6216 = vmatpush1.msra.mxu0 0.0
  %6217 = vmatprep.subr.mxu0 0.0
  %6218 = vmatpush1.msra.mxu0 0.0
  %6219 = vmatprep.subr.mxu0 0.0
  %6220 = vmatpush1.msra.mxu0 0.0
  %6221 = vmatprep.subr.mxu0 0.0
  %6222 = vmatpush1.msra.mxu0 0.0
  %6223 = vmatprep.subr.mxu0 0.0
  %6224 = vmatpush1.msra.mxu0 0.0
  %6225 = vmatprep.subr.mxu0 0.0
  %6226 = vmatpush1.msra.mxu0 0.0
  %6227 = vmatprep.subr.mxu0 0.0
  %6228 = vmatpush1.msra.mxu0 0.0
  %6229 = vmatprep.subr.mxu0 0.0
  %6230 = vmatpush1.msra.mxu0 0.0
  %6231 = vmatprep.subr.mxu0 0.0
  %6232 = vmatpush1.msra.mxu0 0.0
  %6233 = vmatprep.subr.mxu0 0.0
  %6234 = vmatpush1.msra.mxu0 0.0
  %6235 = vmatprep.subr.mxu0 0.0
  %6236 = vmatpush1.msra.mxu0 0.0
  %6237 = vmatprep.subr.mxu0 0.0
  %6238 = vmatpush1.msra.mxu0 0.0
  %6239 = vmatprep.subr.mxu0 0.0
  %6240 = vmatpush1.msra.mxu0 0.0
  %6241 = vmatprep.subr.mxu0 0.0
  %6242 = vmatpush1.msra.mxu0 0.0
  %6243 = vmatprep.subr.mxu0 0.0
  %6244 = vmatpush1.msra.mxu0 0.0
  %6245 = vmatprep.mubr.f32.mxu0 0.0
  %6246 = vmatmul.mubr.f32.gmra.mrb[0].mxu0 %v5990
  %v6247 = vpop.f32.mrb[0].mxu0
  %v6248 = vadd.f32 0.0, %v6247
  %v6249 = vpop.f32.mrb[0].mxu0
  %6250 = vmatprep.mubr.f32.mxu0 0.0
  %6251 = vmatmul.mubr.f32.gmra.mrb[0].mxu0 %v5993
  %v6252 = vpop.f32.mrb[0].mxu0
  %v6253 = vadd.f32 0.0, %v6252
  %v6254 = vpop.f32.mrb[0].mxu0
  %6255 = vmatprep.mubr.f32.mxu0 0.0
  %6256 = vmatmul.mubr.f32.gmra.mrb[0].mxu0 %v5996
  %v6257 = vpop.f32.mrb[0].mxu0
  %v6258 = vadd.f32 0.0, %v6257
  %v6259 = vpop.f32.mrb[0].mxu0
  %6260 = vmatprep.mubr.f32.mxu0 0.0
  %6261 = vmatmul.mubr.f32.gmra.mrb[0].mxu0 %v5999
  %v6262 = vpop.f32.mrb[0].mxu0
  %v6263 = vadd.f32 0.0, %v6262
  %v6264 = vpop.f32.mrb[0].mxu0
  %6265 = vmatprep.mubr.f32.mxu0 0.0
  %6266 = vmatmul.mubr.f32.gmra.mrb[0].mxu0 %v6002
  %v6267 = vpop.f32.mrb[0].mxu0
  %v6268 = vadd.f32 0.0, %v6267
  %v6269 = vpop.f32.mrb[0].mxu0
  %6270 = vmatprep.mubr.f32.mxu0 0.0
  %6271 = vmatmul.mubr.f32.gmra.mrb[0].mxu0 %v6005
  %v6272 = vpop.f32.mrb[0].mxu0
  %v6273 = vadd.f32 0.0, %v6272
  %v6274 = vpop.f32.mrb[0].mxu0
  %6275 = vmatprep.mubr.f32.mxu0 0.0
  %6276 = vmatmul.mubr.f32.gmra.mrb[0].mxu0 %v6008
  %v6277 = vpop.f32.mrb[0].mxu0
  %v6278 = vadd.f32 0.0, %v6277
  %v6279 = vpop.f32.mrb[0].mxu0
  %6280 = vmatprep.mubr.f32.mxu0 0.0
  %6281 = vmatmul.mubr.f32.gmra.mrb[0].mxu0 %v6011
  %v6282 = vpop.f32.mrb[0].mxu0
  %v6283 = vadd.f32 0.0, %v6282
  %v6284 = vpop.f32.mrb[0].mxu0
  %6285 = vmatprep.mubr.f32.mxu0 0.0
  %6286 = vmatmul.mubr.f32.gmra.mrb[0].mxu0 %v6014
  %v6287 = vpop.f32.mrb[0].mxu0
  %v6288 = vadd.f32 0.0, %v6287
  %v6289 = vpop.f32.mrb[0].mxu0
  %6290 = vmatprep.mubr.f32.mxu0 0.0
  %6291 = vmatmul.mubr.f32.gmra.mrb[0].mxu0 %v6017
  %v6292 = vpop.f32.mrb[0].mxu0
  %v6293 = vadd.f32 0.0, %v6292
  %v6294 = vpop.f32.mrb[0].mxu0
  %6295 = vmatprep.mubr.f32.mxu0 0.0
  %6296 = vmatmul.mubr.f32.gmra.mrb[0].mxu0 %v6020
  %v6297 = vpop.f32.mrb[0].mxu0
  %v6298 = vadd.f32 0.0, %v6297
  %v6299 = vpop.f32.mrb[0].mxu0
  %6300 = vmatprep.mubr.f32.mxu0 0.0
  %6301 = vmatmul.mubr.f32.gmra.mrb[0].mxu0 %v6023
  %v6302 = vpop.f32.mrb[0].mxu0
  %v6303 = vadd.f32 0.0, %v6302
  %v6304 = vpop.f32.mrb[0].mxu0
  %6305 = vmatprep.mubr.f32.mxu0 0.0
  %6306 = vmatmul.mubr.f32.gmra.mrb[0].mxu0 %v6026
  %v6307 = vpop.f32.mrb[0].mxu0
  %v6308 = vadd.f32 0.0, %v6307
  %v6309 = vpop.f32.mrb[0].mxu0
  %6310 = vmatprep.mubr.f32.mxu0 0.0
  %6311 = vmatmul.mubr.f32.gmra.mrb[0].mxu0 %v6029
  %v6312 = vpop.f32.mrb[0].mxu0
  %v6313 = vadd.f32 0.0, %v6312
  %v6314 = vpop.f32.mrb[0].mxu0
  %6315 = vmatprep.mubr.f32.mxu0 0.0
  %6316 = vmatmul.mubr.f32.gmra.mrb[0].mxu0 %v6032
  %v6317 = vpop.f32.mrb[0].mxu0
  %v6318 = vadd.f32 0.0, %v6317
  %v6319 = vpop.f32.mrb[0].mxu0
  %6320 = vmatprep.mubr.f32.mxu0 0.0
  %6321 = vmatmul.mubr.f32.gmra.mrb[0].mxu0 %v6035
  %v6322 = vpop.f32.mrb[0].mxu0
  %v6323 = vadd.f32 0.0, %v6322
  %v6324 = vpop.f32.mrb[0].mxu0
  %6325 = vmatprep.mubr.f32.mxu0 0.0
  %6326 = vmatmul.mubr.f32.gmra.mrb[0].mxu0 %v6038
  %v6327 = vpop.f32.mrb[0].mxu0
  %v6328 = vadd.f32 0.0, %v6327
  %v6329 = vpop.f32.mrb[0].mxu0
  %6330 = vmatprep.mubr.f32.mxu0 0.0
  %6331 = vmatmul.mubr.f32.gmra.mrb[0].mxu0 %v6041
  %v6332 = vpop.f32.mrb[0].mxu0
  %v6333 = vadd.f32 0.0, %v6332
  %v6334 = vpop.f32.mrb[0].mxu0
  %6335 = vmatprep.mubr.f32.mxu0 0.0
  %6336 = vmatmul.mubr.f32.gmra.mrb[0].mxu0 %v6044
  %v6337 = vpop.f32.mrb[0].mxu0
  %v6338 = vadd.f32 0.0, %v6337
  %v6339 = vpop.f32.mrb[0].mxu0
  %6340 = vmatprep.mubr.f32.mxu0 0.0
  %6341 = vmatmul.mubr.f32.gmra.mrb[0].mxu0 %v6047
  %v6342 = vpop.f32.mrb[0].mxu0
  %v6343 = vadd.f32 0.0, %v6342
  %v6344 = vpop.f32.mrb[0].mxu0
  %6345 = vmatprep.mubr.f32.mxu0 0.0
  %6346 = vmatmul.mubr.f32.gmra.mrb[0].mxu0 %v6050
  %v6347 = vpop.f32.mrb[0].mxu0
  %v6348 = vadd.f32 0.0, %v6347
  %v6349 = vpop.f32.mrb[0].mxu0
  %6350 = vmatprep.mubr.f32.mxu0 0.0
  %6351 = vmatmul.mubr.f32.gmra.mrb[0].mxu0 %v6053
  %v6352 = vpop.f32.mrb[0].mxu0
  %v6353 = vadd.f32 0.0, %v6352
  %v6354 = vpop.f32.mrb[0].mxu0
  %6355 = vmatprep.mubr.f32.mxu0 0.0
  %6356 = vmatmul.mubr.f32.gmra.mrb[0].mxu0 %v6056
  %v6357 = vpop.f32.mrb[0].mxu0
  %v6358 = vadd.f32 0.0, %v6357
  %v6359 = vpop.f32.mrb[0].mxu0
  %6360 = vmatprep.mubr.f32.mxu0 0.0
  %6361 = vmatmul.mubr.f32.gmra.mrb[0].mxu0 %v6059
  %v6362 = vpop.f32.mrb[0].mxu0
  %v6363 = vadd.f32 0.0, %v6362
  %v6364 = vpop.f32.mrb[0].mxu0
  %6365 = vmatprep.mubr.f32.mxu0 0.0
  %6366 = vmatmul.mubr.f32.gmra.mrb[0].mxu0 %v6062
  %v6367 = vpop.f32.mrb[0].mxu0
  %v6368 = vadd.f32 0.0, %v6367
  %v6369 = vpop.f32.mrb[0].mxu0
  %6370 = vmatprep.mubr.f32.mxu0 0.0
  %6371 = vmatmul.mubr.f32.gmra.mrb[0].mxu0 %v6065
  %v6372 = vpop.f32.mrb[0].mxu0
  %v6373 = vadd.f32 0.0, %v6372
  %v6374 = vpop.f32.mrb[0].mxu0
  %6375 = vmatprep.mubr.f32.mxu0 0.0
  %6376 = vmatmul.mubr.f32.gmra.mrb[0].mxu0 %v6068
  %v6377 = vpop.f32.mrb[0].mxu0
  %v6378 = vadd.f32 0.0, %v6377
  %v6379 = vpop.f32.mrb[0].mxu0
  %6380 = vmatprep.mubr.f32.mxu0 0.0
  %6381 = vmatmul.mubr.f32.gmra.mrb[0].mxu0 %v6071
  %v6382 = vpop.f32.mrb[0].mxu0
  %v6383 = vadd.f32 0.0, %v6382
  %v6384 = vpop.f32.mrb[0].mxu0
  %6385 = vmatprep.mubr.f32.mxu0 0.0
  %6386 = vmatmul.mubr.f32.gmra.mrb[0].mxu0 %v6074
  %v6387 = vpop.f32.mrb[0].mxu0
  %v6388 = vadd.f32 0.0, %v6387
  %v6389 = vpop.f32.mrb[0].mxu0
  %6390 = vmatprep.mubr.f32.mxu0 0.0
  %6391 = vmatmul.mubr.f32.gmra.mrb[0].mxu0 %v6077
  %v6392 = vpop.f32.mrb[0].mxu0
  %v6393 = vadd.f32 0.0, %v6392
  %v6394 = vpop.f32.mrb[0].mxu0
  %6395 = vmatprep.mubr.f32.mxu0 0.0
  %6396 = vmatmul.mubr.f32.gmra.mrb[0].mxu0 %v6080
  %v6397 = vpop.f32.mrb[0].mxu0
  %v6398 = vadd.f32 0.0, %v6397
  %v6399 = vpop.f32.mrb[0].mxu0
  %6400 = vmatprep.mubr.f32.mxu0 0.0
  %6401 = vmatmul.mubr.f32.gmra.mrb[0].mxu0 %v6083
  %v6402 = vpop.f32.mrb[0].mxu0
  %v6403 = vadd.f32 0.0, %v6402
  %v6404 = vpop.f32.mrb[0].mxu0
  %6405 = vmatprep.mubr.f32.mxu0 0.0
  %6406 = vmatmul.mubr.f32.gmra.mrb[0].mxu0 %v6086
  %v6407 = vpop.f32.mrb[0].mxu0
  %v6408 = vadd.f32 0.0, %v6407
  %v6409 = vpop.f32.mrb[0].mxu0
  %6410 = vmatprep.mubr.f32.mxu0 0.0
  %6411 = vmatmul.mubr.f32.gmra.mrb[0].mxu0 %v6089
  %v6412 = vpop.f32.mrb[0].mxu0
  %v6413 = vadd.f32 0.0, %v6412
  %v6414 = vpop.f32.mrb[0].mxu0
  %6415 = vmatprep.mubr.f32.mxu0 0.0
  %6416 = vmatmul.mubr.f32.gmra.mrb[0].mxu0 %v6092
  %v6417 = vpop.f32.mrb[0].mxu0
  %v6418 = vadd.f32 0.0, %v6417
  %v6419 = vpop.f32.mrb[0].mxu0
  %6420 = vmatprep.mubr.f32.mxu0 0.0
  %6421 = vmatmul.mubr.f32.gmra.mrb[0].mxu0 %v6095
  %v6422 = vpop.f32.mrb[0].mxu0
  %v6423 = vadd.f32 0.0, %v6422
  %v6424 = vpop.f32.mrb[0].mxu0
  %6425 = vmatprep.mubr.f32.mxu0 0.0
  %6426 = vmatmul.mubr.f32.gmra.mrb[0].mxu0 %v6098
  %v6427 = vpop.f32.mrb[0].mxu0
  %v6428 = vadd.f32 0.0, %v6427
  %v6429 = vpop.f32.mrb[0].mxu0
  %6430 = vmatprep.mubr.f32.mxu0 0.0
  %6431 = vmatmul.mubr.f32.gmra.mrb[0].mxu0 %v6101
  %v6432 = vpop.f32.mrb[0].mxu0
  %v6433 = vadd.f32 0.0, %v6432
  %v6434 = vpop.f32.mrb[0].mxu0
  %6435 = vmatprep.mubr.f32.mxu0 0.0
  %6436 = vmatmul.mubr.f32.gmra.mrb[0].mxu0 %v6104
  %v6437 = vpop.f32.mrb[0].mxu0
  %v6438 = vadd.f32 0.0, %v6437
  %v6439 = vpop.f32.mrb[0].mxu0
  %6440 = vmatprep.mubr.f32.mxu0 0.0
  %6441 = vmatmul.mubr.f32.gmra.mrb[0].mxu0 %v6107
  %v6442 = vpop.f32.mrb[0].mxu0
  %v6443 = vadd.f32 0.0, %v6442
  %v6444 = vpop.f32.mrb[0].mxu0
  %6445 = vmatprep.mubr.f32.mxu0 0.0
  %6446 = vmatmul.mubr.f32.gmra.mrb[0].mxu0 %v6110
  %v6447 = vpop.f32.mrb[0].mxu0
  %v6448 = vadd.f32 0.0, %v6447
  %v6449 = vpop.f32.mrb[0].mxu0
  %6450 = vmatprep.mubr.f32.mxu0 0.0
  %6451 = vmatmul.mubr.f32.gmra.mrb[0].mxu0 %v6113
  %v6452 = vpop.f32.mrb[0].mxu0
  %v6453 = vadd.f32 0.0, %v6452
  %v6454 = vpop.f32.mrb[0].mxu0
  %6455 = vmatprep.mubr.f32.mxu0 0.0
  %6456 = vmatmul.mubr.f32.gmra.mrb[0].mxu0 %v6116
  %v6457 = vpop.f32.mrb[0].mxu0
  %v6458 = vadd.f32 0.0, %v6457
  %v6459 = vpop.f32.mrb[0].mxu0
  %6460 = vmatprep.mubr.f32.mxu0 0.0
  %6461 = vmatmul.mubr.f32.gmra.mrb[0].mxu0 %v6119
  %v6462 = vpop.f32.mrb[0].mxu0
  %v6463 = vadd.f32 0.0, %v6462
  %v6464 = vpop.f32.mrb[0].mxu0
  %6465 = vmatprep.mubr.f32.mxu0 0.0
  %6466 = vmatmul.mubr.f32.gmra.mrb[0].mxu0 %v6122
  %v6467 = vpop.f32.mrb[0].mxu0
  %v6468 = vadd.f32 0.0, %v6467
  %v6469 = vpop.f32.mrb[0].mxu0
  %6470 = vmatprep.mubr.f32.mxu0 0.0
  %6471 = vmatmul.mubr.f32.gmra.mrb[0].mxu0 %v6125
  %v6472 = vpop.f32.mrb[0].mxu0
  %v6473 = vadd.f32 0.0, %v6472
  %v6474 = vpop.f32.mrb[0].mxu0
  %6475 = vmatprep.mubr.f32.mxu0 0.0
  %6476 = vmatmul.mubr.f32.gmra.mrb[0].mxu0 %v6128
  %v6477 = vpop.f32.mrb[0].mxu0
  %v6478 = vadd.f32 0.0, %v6477
  %v6479 = vpop.f32.mrb[0].mxu0
  %6480 = vmatprep.mubr.f32.mxu0 0.0
  %6481 = vmatmul.mubr.f32.gmra.mrb[0].mxu0 %v6131
  %v6482 = vpop.f32.mrb[0].mxu0
  %v6483 = vadd.f32 0.0, %v6482
  %v6484 = vpop.f32.mrb[0].mxu0
  %6485 = vmatprep.mubr.f32.mxu0 0.0
  %6486 = vmatmul.mubr.f32.gmra.mrb[0].mxu0 %v6134
  %v6487 = vpop.f32.mrb[0].mxu0
  %v6488 = vadd.f32 0.0, %v6487
  %v6489 = vpop.f32.mrb[0].mxu0
  %6490 = vmatprep.mubr.f32.mxu0 0.0
  %6491 = vmatmul.mubr.f32.gmra.mrb[0].mxu0 %v6137
  %v6492 = vpop.f32.mrb[0].mxu0
  %v6493 = vadd.f32 0.0, %v6492
  %v6494 = vpop.f32.mrb[0].mxu0
  %6495 = vmatprep.mubr.f32.mxu0 0.0
  %6496 = vmatmul.mubr.f32.gmra.mrb[0].mxu0 %v6140
  %v6497 = vpop.f32.mrb[0].mxu0
  %v6498 = vadd.f32 0.0, %v6497
  %v6499 = vpop.f32.mrb[0].mxu0
  %6500 = vmatprep.mubr.f32.mxu0 0.0
  %6501 = vmatmul.mubr.f32.gmra.mrb[0].mxu0 %v6143
  %v6502 = vpop.f32.mrb[0].mxu0
  %v6503 = vadd.f32 0.0, %v6502
  %v6504 = vpop.f32.mrb[0].mxu0
  %6505 = vmatprep.mubr.f32.mxu0 0.0
  %6506 = vmatmul.mubr.f32.gmra.mrb[0].mxu0 %v6146
  %v6507 = vpop.f32.mrb[0].mxu0
  %v6508 = vadd.f32 0.0, %v6507
  %v6509 = vpop.f32.mrb[0].mxu0
  %6510 = vmatprep.mubr.f32.mxu0 0.0
  %6511 = vmatmul.mubr.f32.gmra.mrb[0].mxu0 %v6149
  %v6512 = vpop.f32.mrb[0].mxu0
  %v6513 = vadd.f32 0.0, %v6512
  %v6514 = vpop.f32.mrb[0].mxu0
  %6515 = vmatprep.mubr.f32.mxu0 0.0
  %6516 = vmatmul.mubr.f32.gmra.mrb[0].mxu0 %v6152
  %v6517 = vpop.f32.mrb[0].mxu0
  %v6518 = vadd.f32 0.0, %v6517
  %v6519 = vpop.f32.mrb[0].mxu0
  %6520 = vmatprep.mubr.f32.mxu0 0.0
  %6521 = vmatmul.mubr.f32.gmra.mrb[0].mxu0 %v6155
  %v6522 = vpop.f32.mrb[0].mxu0
  %v6523 = vadd.f32 0.0, %v6522
  %v6524 = vpop.f32.mrb[0].mxu0
  %6525 = vmatprep.mubr.f32.mxu0 0.0
  %6526 = vmatmul.mubr.f32.gmra.mrb[0].mxu0 %v6158
  %v6527 = vpop.f32.mrb[0].mxu0
  %v6528 = vadd.f32 0.0, %v6527
  %v6529 = vpop.f32.mrb[0].mxu0
  %6530 = vmatprep.mubr.f32.mxu0 0.0
  %6531 = vmatmul.mubr.f32.gmra.mrb[0].mxu0 %v6161
  %v6532 = vpop.f32.mrb[0].mxu0
  %v6533 = vadd.f32 0.0, %v6532
  %v6534 = vpop.f32.mrb[0].mxu0
  %6535 = vmatprep.mubr.f32.mxu0 0.0
  %6536 = vmatmul.mubr.f32.gmra.mrb[0].mxu0 %v6164
  %v6537 = vpop.f32.mrb[0].mxu0
  %v6538 = vadd.f32 0.0, %v6537
  %v6539 = vpop.f32.mrb[0].mxu0
  %6540 = vmatprep.mubr.f32.mxu0 0.0
  %6541 = vmatmul.mubr.f32.gmra.mrb[0].mxu0 %v6167
  %v6542 = vpop.f32.mrb[0].mxu0
  %v6543 = vadd.f32 0.0, %v6542
  %v6544 = vpop.f32.mrb[0].mxu0
  %6545 = vmatprep.mubr.f32.mxu0 0.0
  %6546 = vmatmul.mubr.f32.gmra.mrb[0].mxu0 %v6170
  %v6547 = vpop.f32.mrb[0].mxu0
  %v6548 = vadd.f32 0.0, %v6547
  %v6549 = vpop.f32.mrb[0].mxu0
  %6550 = vmatprep.mubr.f32.mxu0 0.0
  %6551 = vmatmul.mubr.f32.gmra.mrb[0].mxu0 %v6173
  %v6552 = vpop.f32.mrb[0].mxu0
  %v6553 = vadd.f32 0.0, %v6552
  %v6554 = vpop.f32.mrb[0].mxu0
  %6555 = vmatprep.mubr.f32.mxu0 0.0
  %6556 = vmatmul.mubr.f32.gmra.mrb[0].mxu0 %v6176
  %v6557 = vpop.f32.mrb[0].mxu0
  %v6558 = vadd.f32 0.0, %v6557
  %v6559 = vpop.f32.mrb[0].mxu0
  %6560 = vmatprep.mubr.f32.mxu0 0.0
  %6561 = vmatmul.mubr.f32.gmra.mrb[0].mxu0 %v6179
  %v6562 = vpop.f32.mrb[0].mxu0
  %v6563 = vadd.f32 0.0, %v6562
  %v6564 = vpop.f32.mrb[0].mxu0
  %6565 = vdwg.mxu0
  %v6566 = vld [vmem:[%s166 + $0x1] sm:$0xff]
  %v6567 = vld [vmem:[%s166 + $0x9] sm:$0xff]
  %v6568 = vld [vmem:[%s166 + $0x19] sm:$0xff]
  %v6569 = vld [vmem:[%s166 + $0x21] sm:$0xff]
  %v6570 = vld [vmem:[%s166 + $0x31] sm:$0xff]
  %v6571 = vld [vmem:[%s166 + $0x39] sm:$0xff]
  %v6572 = vld [vmem:[%s166 + $0x49] sm:$0xff]
  %v6573 = vld [vmem:[%s166 + $0x51] sm:$0xff]
  %v6574 = vld [vmem:[%s166 + $0x61] sm:$0xff]
  %v6575 = vld [vmem:[%s166 + $0x69] sm:$0xff]
  %v6576 = vld [vmem:[%s166 + $0x79] sm:$0xff]
  %v6577 = vld [vmem:[%s166 + $0x81] sm:$0xff]
  %v6578 = vld [vmem:[%s166 + $0x91] sm:$0xff]
  %v6579 = vld [vmem:[%s166 + $0x99] sm:$0xff]
  %v6580 = vld [vmem:[%s166 + $0xa9] sm:$0xff]
  %v6581 = vld [vmem:[%s166 + $0xb1] sm:$0xff]
  %v6582 = vld [vmem:[%s166 + $0xc1] sm:$0xff]
  %v6583 = vld [vmem:[%s166 + $0xc9] sm:$0xff]
  %v6584 = vld [vmem:[%s166 + $0xd9] sm:$0xff]
  %v6585 = vld [vmem:[%s166 + $0xe1] sm:$0xff]
  %v6586 = vld [vmem:[%s166 + $0xf1] sm:$0xff]
  %v6587 = vld [vmem:[%s166 + $0xf9] sm:$0xff]
  %v6588 = vld [vmem:[%s166 + $0x109] sm:$0xff]
  %v6589 = vld [vmem:[%s166 + $0x111] sm:$0xff]
  %v6590 = vld [vmem:[%s166 + $0x121] sm:$0xff]
  %v6591 = vld [vmem:[%s166 + $0x129] sm:$0xff]
  %v6592 = vld [vmem:[%s166 + $0x139] sm:$0xff]
  %v6593 = vld [vmem:[%s166 + $0x141] sm:$0xff]
  %v6594 = vld [vmem:[%s166 + $0x151] sm:$0xff]
  %v6595 = vld [vmem:[%s166 + $0x159] sm:$0xff]
  %v6596 = vld [vmem:[%s166 + $0x169] sm:$0xff]
  %v6597 = vld [vmem:[%s166 + $0x171] sm:$0xff]
  %v6598 = vld [vmem:[%s166 + $0x1b1] sm:$0xff]
  %v6599 = vld [vmem:[%s166 + $0x1b9] sm:$0xff]
  %v6600 = vld [vmem:[%s166 + $0x1c9] sm:$0xff]
  %v6601 = vld [vmem:[%s166 + $0x1d1] sm:$0xff]
  %v6602 = vld [vmem:[%s166 + $0x1e1] sm:$0xff]
  %v6603 = vld [vmem:[%s166 + $0x1e9] sm:$0xff]
  %v6604 = vld [vmem:[%s166 + $0x1f9] sm:$0xff]
  %v6605 = vld [vmem:[%s166 + $0x201] sm:$0xff]
  %v6606 = vld [vmem:[%s166 + $0x211] sm:$0xff]
  %v6607 = vld [vmem:[%s166 + $0x219] sm:$0xff]
  %v6608 = vld [vmem:[%s166 + $0x229] sm:$0xff]
  %v6609 = vld [vmem:[%s166 + $0x231] sm:$0xff]
  %v6610 = vld [vmem:[%s166 + $0x241] sm:$0xff]
  %v6611 = vld [vmem:[%s166 + $0x249] sm:$0xff]
  %v6612 = vld [vmem:[%s166 + $0x259] sm:$0xff]
  %v6613 = vld [vmem:[%s166 + $0x261] sm:$0xff]
  %v6614 = vld [vmem:[%s166 + $0x271] sm:$0xff]
  %v6615 = vld [vmem:[%s166 + $0x279] sm:$0xff]
  %v6616 = vld [vmem:[%s166 + $0x289] sm:$0xff]
  %v6617 = vld [vmem:[%s166 + $0x291] sm:$0xff]
  %v6618 = vld [vmem:[%s166 + $0x2a1] sm:$0xff]
  %v6619 = vld [vmem:[%s166 + $0x2a9] sm:$0xff]
  %v6620 = vld [vmem:[%s166 + $0x2b9] sm:$0xff]
  %v6621 = vld [vmem:[%s166 + $0x2c1] sm:$0xff]
  %v6622 = vld [vmem:[%s166 + $0x2d1] sm:$0xff]
  %v6623 = vld [vmem:[%s166 + $0x2d9] sm:$0xff]
  %v6624 = vld [vmem:[%s166 + $0x2e9] sm:$0xff]
  %v6625 = vld [vmem:[%s166 + $0x2f1] sm:$0xff]
  %v6626 = vld [vmem:[%s166 + $0x301] sm:$0xff]
  %v6627 = vld [vmem:[%s166 + $0x309] sm:$0xff]
  %v6628 = vld [vmem:[%s166 + $0x319] sm:$0xff]
  %v6629 = vld [vmem:[%s166 + $0x321] sm:$0xff]
  %v6630 = vadd.f32 %v6566, %v6248
  %v6631 = vadd.f32 %v6567, %v6253
  %v6632 = vadd.f32 %v6568, %v6258
  %v6633 = vadd.f32 %v6569, %v6263
  %v6634 = vadd.f32 %v6570, %v6268
  %v6635 = vadd.f32 %v6571, %v6273
  %v6636 = vadd.f32 %v6572, %v6278
  %v6637 = vadd.f32 %v6573, %v6283
  %v6638 = vadd.f32 %v6574, %v6288
  %v6639 = vadd.f32 %v6575, %v6293
  %v6640 = vadd.f32 %v6576, %v6298
  %v6641 = vadd.f32 %v6577, %v6303
  %v6642 = vadd.f32 %v6578, %v6308
  %v6643 = vadd.f32 %v6579, %v6313
  %v6644 = vadd.f32 %v6580, %v6318
  %v6645 = vadd.f32 %v6581, %v6323
  %v6646 = vadd.f32 %v6582, %v6328
  %v6647 = vadd.f32 %v6583, %v6333
  %v6648 = vadd.f32 %v6584, %v6338
  %v6649 = vadd.f32 %v6585, %v6343
  %v6650 = vadd.f32 %v6586, %v6348
  %v6651 = vadd.f32 %v6587, %v6353
  %v6652 = vadd.f32 %v6588, %v6358
  %v6653 = vadd.f32 %v6589, %v6363
  %v6654 = vadd.f32 %v6590, %v6368
  %v6655 = vadd.f32 %v6591, %v6373
  %v6656 = vadd.f32 %v6592, %v6378
  %v6657 = vadd.f32 %v6593, %v6383
  %v6658 = vadd.f32 %v6594, %v6388
  %v6659 = vadd.f32 %v6595, %v6393
  %v6660 = vadd.f32 %v6596, %v6398
  %v6661 = vadd.f32 %v6597, %v6403
  %v6662 = vadd.f32 %v6598, %v6408
  %v6663 = vadd.f32 %v6599, %v6413
  %v6664 = vadd.f32 %v6600, %v6418
  %v6665 = vadd.f32 %v6601, %v6423
  %v6666 = vadd.f32 %v6602, %v6428
  %v6667 = vadd.f32 %v6603, %v6433
  %v6668 = vadd.f32 %v6604, %v6438
  %v6669 = vadd.f32 %v6605, %v6443
  %v6670 = vadd.f32 %v6606, %v6448
  %v6671 = vadd.f32 %v6607, %v6453
  %v6672 = vadd.f32 %v6608, %v6458
  %v6673 = vadd.f32 %v6609, %v6463
  %v6674 = vadd.f32 %v6610, %v6468
  %v6675 = vadd.f32 %v6611, %v6473
  %v6676 = vadd.f32 %v6612, %v6478
  %v6677 = vadd.f32 %v6613, %v6483
  %v6678 = vadd.f32 %v6614, %v6488
  %v6679 = vadd.f32 %v6615, %v6493
  %v6680 = vadd.f32 %v6616, %v6498
  %v6681 = vadd.f32 %v6617, %v6503
  %v6682 = vadd.f32 %v6618, %v6508
  %v6683 = vadd.f32 %v6619, %v6513
  %v6684 = vadd.f32 %v6620, %v6518
  %v6685 = vadd.f32 %v6621, %v6523
  %v6686 = vadd.f32 %v6622, %v6528
  %v6687 = vadd.f32 %v6623, %v6533
  %v6688 = vadd.f32 %v6624, %v6538
  %v6689 = vadd.f32 %v6625, %v6543
  %v6690 = vadd.f32 %v6626, %v6548
  %v6691 = vadd.f32 %v6627, %v6553
  %v6692 = vadd.f32 %v6628, %v6558
  %v6693 = vadd.f32 %v6629, %v6563
  %v6694 = vmax.f32 %v6630, 0.0
  %v6695 = vmax.f32 %v6631, 0.0
  %v6696 = vmax.f32 %v6632, 0.0
  %v6697 = vmax.f32 %v6633, 0.0
  %v6698 = vmax.f32 %v6634, 0.0
  %v6699 = vmax.f32 %v6635, 0.0
  %v6700 = vmax.f32 %v6636, 0.0
  %v6701 = vmax.f32 %v6637, 0.0
  %v6702 = vmax.f32 %v6638, 0.0
  %v6703 = vmax.f32 %v6639, 0.0
  %v6704 = vmax.f32 %v6640, 0.0
  %v6705 = vmax.f32 %v6641, 0.0
  %v6706 = vmax.f32 %v6642, 0.0
  %v6707 = vmax.f32 %v6643, 0.0
  %v6708 = vmax.f32 %v6644, 0.0
  %v6709 = vmax.f32 %v6645, 0.0
  %v6710 = vmax.f32 %v6646, 0.0
  %v6711 = vmax.f32 %v6647, 0.0
  %v6712 = vmax.f32 %v6648, 0.0
  %v6713 = vmax.f32 %v6649, 0.0
  %v6714 = vmax.f32 %v6650, 0.0
  %v6715 = vmax.f32 %v6651, 0.0
  %v6716 = vmax.f32 %v6652, 0.0
  %v6717 = vmax.f32 %v6653, 0.0
  %v6718 = vmax.f32 %v6654, 0.0
  %v6719 = vmax.f32 %v6655, 0.0
  %v6720 = vmax.f32 %v6656, 0.0
  %v6721 = vmax.f32 %v6657, 0.0
  %v6722 = vmax.f32 %v6658, 0.0
  %v6723 = vmax.f32 %v6659, 0.0
  %v6724 = vmax.f32 %v6660, 0.0
  %v6725 = vmax.f32 %v6661, 0.0
  %v6726 = vmax.f32 %v6662, 0.0
  %v6727 = vmax.f32 %v6663, 0.0
  %v6728 = vmax.f32 %v6664, 0.0
  %v6729 = vmax.f32 %v6665, 0.0
  %v6730 = vmax.f32 %v6666, 0.0
  %v6731 = vmax.f32 %v6667, 0.0
  %v6732 = vmax.f32 %v6668, 0.0
  %v6733 = vmax.f32 %v6669, 0.0
  %v6734 = vmax.f32 %v6670, 0.0
  %v6735 = vmax.f32 %v6671, 0.0
  %v6736 = vmax.f32 %v6672, 0.0
  %v6737 = vmax.f32 %v6673, 0.0
  %v6738 = vmax.f32 %v6674, 0.0
  %v6739 = vmax.f32 %v6675, 0.0
  %v6740 = vmax.f32 %v6676, 0.0
  %v6741 = vmax.f32 %v6677, 0.0
  %v6742 = vmax.f32 %v6678, 0.0
  %v6743 = vmax.f32 %v6679, 0.0
  %v6744 = vmax.f32 %v6680, 0.0
  %v6745 = vmax.f32 %v6681, 0.0
  %v6746 = vmax.f32 %v6682, 0.0
  %v6747 = vmax.f32 %v6683, 0.0
  %v6748 = vmax.f32 %v6684, 0.0
  %v6749 = vmax.f32 %v6685, 0.0
  %v6750 = vmax.f32 %v6686, 0.0
  %v6751 = vmax.f32 %v6687, 0.0
  %v6752 = vmax.f32 %v6688, 0.0
  %v6753 = vmax.f32 %v6689, 0.0
  %v6754 = vmax.f32 %v6690, 0.0
  %v6755 = vmax.f32 %v6691, 0.0
  %v6756 = vmax.f32 %v6692, 0.0
  %v6757 = vmax.f32 %v6693, 0.0
  %6758 = vst.msk [vmem:[%s3] sm:$0xff] %vm14, %v6694
  %6759 = vst.msk [vmem:[%s3 + $0x8] sm:$0xff] %vm14, %v6695
  %6760 = vst.msk [vmem:[%s3 + $0x10] sm:$0xff] %vm14, %v6696
  %6761 = vst.msk [vmem:[%s3 + $0x18] sm:$0xff] %vm14, %v6697
  %6762 = vst.msk [vmem:[%s3 + $0x20] sm:$0xff] %vm14, %v6698
  %6763 = vst.msk [vmem:[%s3 + $0x28] sm:$0xff] %vm14, %v6699
  %6764 = vst.msk [vmem:[%s3 + $0x30] sm:$0xff] %vm14, %v6700
  %6765 = vst.msk [vmem:[%s3 + $0x38] sm:$0xff] %vm14, %v6701
  %6766 = vst.msk [vmem:[%s3 + $0x40] sm:$0xff] %vm14, %v6702
  %6767 = vst.msk [vmem:[%s3 + $0x48] sm:$0xff] %vm14, %v6703
  %6768 = vst.msk [vmem:[%s3 + $0x50] sm:$0xff] %vm14, %v6704
  %6769 = vst.msk [vmem:[%s3 + $0x58] sm:$0xff] %vm14, %v6705
  %6770 = vst.msk [vmem:[%s3 + $0x60] sm:$0xff] %vm14, %v6706
  %6771 = vst.msk [vmem:[%s3 + $0x68] sm:$0xff] %vm14, %v6707
  %6772 = vst.msk [vmem:[%s3 + $0x70] sm:$0xff] %vm14, %v6708
  %6773 = vst.msk [vmem:[%s3 + $0x78] sm:$0xff] %vm14, %v6709
  %6774 = vst.msk [vmem:[%s3 + $0x80] sm:$0xff] %vm14, %v6710
  %6775 = vst.msk [vmem:[%s3 + $0x88] sm:$0xff] %vm14, %v6711
  %6776 = vst.msk [vmem:[%s3 + $0x90] sm:$0xff] %vm14, %v6712
  %6777 = vst.msk [vmem:[%s3 + $0x98] sm:$0xff] %vm14, %v6713
  %6778 = vst.msk [vmem:[%s3 + $0xa0] sm:$0xff] %vm14, %v6714
  %6779 = vst.msk [vmem:[%s3 + $0xa8] sm:$0xff] %vm14, %v6715
  %6780 = vst.msk [vmem:[%s3 + $0xb0] sm:$0xff] %vm14, %v6716
  %6781 = vst.msk [vmem:[%s3 + $0xb8] sm:$0xff] %vm14, %v6717
  %6782 = vst.msk [vmem:[%s3 + $0xc0] sm:$0xff] %vm14, %v6718
  %6783 = vst.msk [vmem:[%s3 + $0xc8] sm:$0xff] %vm14, %v6719
  %6784 = vst.msk [vmem:[%s3 + $0xd0] sm:$0xff] %vm14, %v6720
  %6785 = vst.msk [vmem:[%s3 + $0xd8] sm:$0xff] %vm14, %v6721
  %6786 = vst.msk [vmem:[%s3 + $0xe0] sm:$0xff] %vm14, %v6722
  %6787 = vst.msk [vmem:[%s3 + $0xe8] sm:$0xff] %vm14, %v6723
  %6788 = vst.msk [vmem:[%s3 + $0xf0] sm:$0xff] %vm14, %v6724
  %6789 = vst.msk [vmem:[%s3 + $0xf8] sm:$0xff] %vm14, %v6725
  %6790 = vst.msk [vmem:[%s3 + $0x100] sm:$0xff] %vm14, %v6726
  %6791 = vst.msk [vmem:[%s3 + $0x108] sm:$0xff] %vm14, %v6727
  %6792 = vst.msk [vmem:[%s3 + $0x110] sm:$0xff] %vm14, %v6728
  %6793 = vst.msk [vmem:[%s3 + $0x118] sm:$0xff] %vm14, %v6729
  %6794 = vst.msk [vmem:[%s3 + $0x120] sm:$0xff] %vm14, %v6730
  %6795 = vst.msk [vmem:[%s3 + $0x128] sm:$0xff] %vm14, %v6731
  %6796 = vst.msk [vmem:[%s3 + $0x130] sm:$0xff] %vm14, %v6732
  %6797 = vst.msk [vmem:[%s3 + $0x138] sm:$0xff] %vm14, %v6733
  %6798 = vst.msk [vmem:[%s3 + $0x140] sm:$0xff] %vm14, %v6734
  %6799 = vst.msk [vmem:[%s3 + $0x148] sm:$0xff] %vm14, %v6735
  %6800 = vst.msk [vmem:[%s3 + $0x150] sm:$0xff] %vm14, %v6736
  %6801 = vst.msk [vmem:[%s3 + $0x158] sm:$0xff] %vm14, %v6737
  %6802 = vst.msk [vmem:[%s3 + $0x160] sm:$0xff] %vm14, %v6738
  %6803 = vst.msk [vmem:[%s3 + $0x168] sm:$0xff] %vm14, %v6739
  %6804 = vst.msk [vmem:[%s3 + $0x170] sm:$0xff] %vm14, %v6740
  %6805 = vst.msk [vmem:[%s3 + $0x178] sm:$0xff] %vm14, %v6741
  %6806 = vst.msk [vmem:[%s3 + $0x180] sm:$0xff] %vm14, %v6742
  %6807 = vst.msk [vmem:[%s3 + $0x188] sm:$0xff] %vm14, %v6743
  %6808 = vst.msk [vmem:[%s3 + $0x190] sm:$0xff] %vm14, %v6744
  %6809 = vst.msk [vmem:[%s3 + $0x198] sm:$0xff] %vm14, %v6745
  %6810 = vst.msk [vmem:[%s3 + $0x1a0] sm:$0xff] %vm14, %v6746
  %6811 = vst.msk [vmem:[%s3 + $0x1a8] sm:$0xff] %vm14, %v6747
  %6812 = vst.msk [vmem:[%s3 + $0x1b0] sm:$0xff] %vm14, %v6748
  %6813 = vst.msk [vmem:[%s3 + $0x1b8] sm:$0xff] %vm14, %v6749
  %6814 = vst.msk [vmem:[%s3 + $0x1c0] sm:$0xff] %vm14, %v6750
  %6815 = vst.msk [vmem:[%s3 + $0x1c8] sm:$0xff] %vm14, %v6751
  %6816 = vst.msk [vmem:[%s3 + $0x1d0] sm:$0xff] %vm14, %v6752
  %6817 = vst.msk [vmem:[%s3 + $0x1d8] sm:$0xff] %vm14, %v6753
  %6818 = vst.msk [vmem:[%s3 + $0x1e0] sm:$0xff] %vm14, %v6754
  %6819 = vst.msk [vmem:[%s3 + $0x1e8] sm:$0xff] %vm14, %v6755
  %6820 = vst.msk [vmem:[%s3 + $0x1f0] sm:$0xff] %vm14, %v6756
  %6821 = vst.msk [vmem:[%s3 + $0x1f8] sm:$0xff] %vm14, %v6757
  // Predicated region
  $region14: #{residual_stack_forward.1} parent=0 // pred_check
    _
  $region15: #{residual_stack_forward.1} parent=0 // pred_check_branch
    %6823 = sbr.rel (0) target = $region17
  $region16: #{residual_stack_forward.1} parent=0 // pred_region
    _
  $region17: #{residual_stack_forward.1} parent=0 // pred_fallthru
    _
  // Predicated region
  $region18: #{residual_stack_forward.1} parent=0 // pred_check
    _
  $region19: #{residual_stack_forward.1} parent=0 // pred_check_branch
    %6825 = sbr.rel (0) target = $region21
  $region20: #{residual_stack_forward.1} parent=0 // pred_region
    _
  $region21: #{residual_stack_forward.1} parent=0 // pred_fallthru
    _

</llo_original>
